<compile_context>
chip_gen: v7x
topology: tpu7x:2x2x1
jax: 0.10.0
libtpu: 0.0.40
codegen_flags: <defaults>
</compile_context>

<pallas_src>
import functools

import jax
import jax.numpy as jnp
from jax.experimental import pallas as pl
from jax.experimental.pallas import tpu as pltpu

# Small-shape analogue of layer_sizes = [784, 1000, 500, 250, 250, 250, 10]
layer_sizes = [32, 64, 48, 40, 40, 40, 8]
L = len(layer_sizes) - 1
denoising_cost = [10.0, 1.0, 0.1, 0.1, 0.1, 0.1, 0.1]
BN_EPS = 1e-5      # nn.BatchNorm1d default eps
DEN_EPS = 1e-6     # Denoise.forward eps
NOISE_STD = 0.2
SLAB = 128         # lane-aligned band width (everything runs 128-lane dense)
NEG_BIG = -1e30    # softmax mask value (exp underflows to exactly 0)


def _batch_norm(z_pre):
    """Non-affine BatchNorm1d with batch statistics -> (z, mean, unbiased var)."""
    b = z_pre.shape[0]                                         # requires b > 1
    m = jnp.mean(z_pre, axis=0, keepdims=True)                 # torch.mean(input, 0)
    diff = z_pre - m
    var_b = jnp.mean(diff * diff, axis=0, keepdims=True)       # biased (BatchNorm1d)
    var_u = var_b * (b / (b - 1.0))                            # unbiased (torch.var)
    z = diff * jax.lax.rsqrt(var_b + BN_EPS)
    return z, m, var_u


# --------------------- single fused kernel: encoders + decoder --------------------
def dae_fused_kernel(x_ref, noise_ref, wp_ref, vp_ref, ap_ref,
                     h_ref, ucost_ref, *, noise_std):
    b = x_ref.shape[0]
    dL = layer_sizes[L]

    # ---- stacked encoders: rows [0,b) clean, rows [b,2b) noisy ------------------
    x_pad = x_ref[...]                                    # (b, 128), lane-padded x
    x_noisy = x_pad + noise_std * noise_ref[:, 0:SLAB]
    h = jnp.concatenate([x_pad, x_noisy], axis=0)         # (2b, 128)

    z_clean, z_corr, stats_m, stats_v = [], [], [], []
    for l in range(1, L + 1):
        # One shared MXU matmul for both encoders.  Zero-padded W rows/cols keep
        # the clean path's padding lanes exactly 0.
        z_pre = jnp.dot(h, wp_ref[l - 1], preferred_element_type=jnp.float32)
        z_pre_c = z_pre[:b]
        # Full 128-lane noise band: noisy padding lanes become nonzero but never
        # reach a returned value (they only ever hit zero-padded W/V rows and are
        # zeroed by the zero-padded A in the Denoise step).
        z_pre_n = z_pre[b:] + noise_std * noise_ref[:, l * SLAB:(l + 1) * SLAB]
        zc, m, v_u = _batch_norm(z_pre_c)
        zn, _, _ = _batch_norm(z_pre_n)
        z_clean.append(zc)
        z_corr.append(zn)
        stats_m.append(m)
        stats_v.append(v_u)
        if l < L:
            h = jnp.maximum(jnp.concatenate([zc, zn], axis=0), 0.0)

    # Top layer: clean -> softmax over the dL valid lanes (iota mask keeps it
    # lane-dense); noisy -> ReLU at every layer incl. the top (as in reference).
    col = jax.lax.broadcasted_iota(jnp.int32, (b, SLAB), 1)
    h_clean = jax.nn.softmax(jnp.where(col < dL, z_clean[-1], NEG_BIG), axis=1)
    h_corr = jnp.maximum(z_corr[-1], 0.0)
    h_ref[...] = jnp.concatenate([h_clean, h_corr], axis=0)   # one dense (2b,128) store

    # ---- decoder: dense + BN + Denoise + weighted recon norms -------------------
    acc = jnp.zeros((b, 1), jnp.float32)   # weighted per-row recon L2 norms
    z_est = None
    for l in range(L, 0, -1):
        if l == L:
            u_pre = h_corr
        else:
            u_pre = jnp.dot(z_est, vp_ref[l - 1],
                            preferred_element_type=jnp.float32)
        u, _, _ = _batch_norm(u_pre)

        # Denoise.denoise_function: a-rows hoisted once per layer from the packed
        # (10,128) block; padding lanes of A are zero so mu/vv padding is zero.
        a = ap_ref[l - 1]                                   # (10, 128)
        a1, a2, a3, a4, a5 = a[0:1], a[1:2], a[2:3], a[3:4], a[4:5]
        a6, a7, a8, a9, a10 = a[5:6], a[6:7], a[7:8], a[8:9], a[9:10]
        mu = a1 * jax.nn.sigmoid(a2 * u + a3) + a4 * u + a5
        vv = a6 * jax.nn.sigmoid(a7 * u + a8) + a9 * u + a10
        z_e = (z_corr[l - 1] - mu) * vv + mu
        # Denoise.forward: (z_est - m) / (v + 1e-6)**0.5  (m, v from clean encoder)
        z_bn = (z_e - stats_m[l - 1]) * jax.lax.rsqrt(stats_v[l - 1] + DEN_EPS)

        # reconstruction: per-row L2 norm vs the clean target, weighted.
        # Padding lanes of both z_bn and z_clean are exactly 0 -> contribute 0.
        diff = z_bn - z_clean[l - 1]
        per_row = jnp.sqrt(jnp.sum(diff * diff, axis=1, keepdims=True))
        acc = acc + denoising_cost[l] * per_row
        z_est = z_bn

    total = jnp.sum(acc, axis=0, keepdims=True)             # (1, 1)
    ucost_ref[...] = jnp.broadcast_to(total, (1, SLAB))     # lane-dense scalar store


def dae_fused(x_pad, noise, Wp, Vp, Ap, noise_std):
    b = x_pad.shape[0]
    kernel = functools.partial(dae_fused_kernel, noise_std=float(noise_std))
    in_specs = [pl.BlockSpec(memory_space=pltpu.MemorySpace.VMEM) for _ in range(5)]
    out_specs = (pl.BlockSpec(memory_space=pltpu.MemorySpace.VMEM),
                 pl.BlockSpec(memory_space=pltpu.MemorySpace.VMEM))
    return pl.pallas_call(
        kernel,
        out_shape=(
            jax.ShapeDtypeStruct((2 * b, SLAB), jnp.float32),   # [clean; corr] rows
            jax.ShapeDtypeStruct((1, SLAB), jnp.float32),       # u_cost broadcast
        ),
        in_specs=in_specs,
        out_specs=out_specs,
    )(x_pad, noise, Wp, Vp, Ap)


# ---------------- model glue (plain JAX) ------------------------------------------
def cross_entropy(logits, target):
    logp = jax.nn.log_softmax(logits, axis=1)
    return -jnp.mean(jnp.take_along_axis(logp, target[:, None], axis=1))


def dae_forward(x, params, noise_key, target=None,
                labeled=False, validation=False, test=False):
    Wp, Vp, Ap = params['Wp'], params['Vp'], params['Ap']
    b = x.shape[0]                                  # batch-norm assumes b > 1
    dL = layer_sizes[L]
    # Lane-pad the input once host-side so the kernel input DMA is dense.
    x_pad = jnp.pad(x, ((0, 0), (0, SLAB - layer_sizes[0])))
    # Single fused RNG draw: input band + one 128-lane band per layer, consumed
    # directly by the fused kernel (the valid lanes match the previous version).
    noise = jax.random.normal(noise_key, (b, (L + 1) * SLAB), jnp.float32)

    h, ucost = dae_fused(x_pad, noise, Wp, Vp, Ap, NOISE_STD)
    h_clean = h[:b, :dL]
    h_corr = h[b:, :dL]
    u_cost = ucost[0, 0]

    if test:
        return h_clean, None
    if validation:
        return h_clean, cross_entropy(h_corr, target)
    if labeled:
        return h_clean, cross_entropy(h_corr, target)
    return h_corr, u_cost


def init_params(key):
    W, V, A = [], [], []
    ks = jax.random.split(key, 2 * L)
    for i in range(L):
        # wi(): torch.randn(in, out) for W, torch.randn(out, in) for V
        W.append(jax.random.normal(ks[2 * i], (layer_sizes[i], layer_sizes[i + 1]),
                                   jnp.float32))
        V.append(jax.random.normal(ks[2 * i + 1], (layer_sizes[i + 1], layer_sizes[i]),
                                   jnp.float32))
    for l in range(L + 1):
        # Denoise: a1..a10 all initialized to ones(1, size); stacked as (10, size)
        A.append(jnp.ones((10, layer_sizes[l]), jnp.float32))

    # Pack into 3 lane-dense, ZERO-padded slabs (zero padding is load-bearing:
    # it keeps every padding lane of every returned value at exactly 0).
    Wp = jnp.zeros((L, SLAB, SLAB), jnp.float32)
    Vp = jnp.zeros((L - 1, SLAB, SLAB), jnp.float32)
    Ap = jnp.zeros((L, 10, SLAB), jnp.float32)
    for l in range(L):
        Wp = Wp.at[l, :layer_sizes[l], :layer_sizes[l + 1]].set(W[l])
    for l in range(1, L):                      # decoder uses V[1] .. V[L-1]
        Vp = Vp.at[l - 1, :layer_sizes[l + 1], :layer_sizes[l]].set(V[l])
    for l in range(1, L + 1):                  # decoder uses A[1] .. A[L]
        Ap = Ap.at[l - 1, :, :layer_sizes[l]].set(A[l])
    return {'Wp': Wp, 'Vp': Vp, 'Ap': Ap}


if __name__ == "__main__":
    key = jax.random.PRNGKey(0)
    pkey, xkey, nkey, tkey = jax.random.split(key, 4)
    params = init_params(pkey)

    B = 16
    x = jax.random.normal(xkey, (B, layer_sizes[0]), jnp.float32)
    target = jax.random.randint(tkey, (B,), 0, layer_sizes[-1])

    fwd = jax.jit(dae_forward, static_argnames=('labeled', 'validation', 'test'))

    # default training path: labeled=False, validation=False, test=False
    h_corr, u_cost = fwd(x, params, nkey, target,
                         labeled=False, validation=False, test=False)
    jax.block_until_ready((h_corr, u_cost))
    assert h_corr.shape == (B, layer_sizes[-1])
    assert u_cost.shape == ()
    print("KERNEL_OK")
</pallas_src>

<mosaic_0001>
module attributes {stable_mosaic.version = 11 : i64} {
  func.func @dae_fused_kernel(%arg0: memref<16x128xf32, #tpu.memory_space<vmem>>, %arg1: memref<16x896xf32, #tpu.memory_space<vmem>>, %arg2: memref<6x128x128xf32, #tpu.memory_space<vmem>>, %arg3: memref<5x128x128xf32, #tpu.memory_space<vmem>>, %arg4: memref<6x10x128xf32, #tpu.memory_space<vmem>>, %arg5: memref<32x128xf32, #tpu.memory_space<vmem>>, %arg6: memref<1x128xf32, #tpu.memory_space<vmem>>) attributes {dimension_semantics = [], scalar_prefetch = 0 : i64, scratch_operands = 0 : i64, tpu.core_type = #tpu.core_type<tc>} {
    %c0 = arith.constant 0 : index
    %c0_0 = arith.constant 0 : index
    %0 = vector.load %arg0[%c0, %c0_0] : memref<16x128xf32, #tpu.memory_space<vmem>>, vector<16x128xf32>
    %c0_1 = arith.constant 0 : index
    %c0_2 = arith.constant 0 : index
    %1 = vector.load %arg1[%c0_1, %c0_2] : memref<16x896xf32, #tpu.memory_space<vmem>>, vector<16x128xf32>
    %cst = arith.constant 2.000000e-01 : f32
    %2 = vector.broadcast %cst : f32 to vector<16x128xf32>
    %3 = arith.mulf %2, %1 : vector<16x128xf32>
    %4 = arith.addf %0, %3 : vector<16x128xf32>
    %5 = tpu.concatenate %0, %4 in 0 : vector<16x128xf32>, vector<16x128xf32> -> vector<32x128xf32>
    %c0_3 = arith.constant 0 : index
    %c0_4 = arith.constant 0 : index
    %c0_5 = arith.constant 0 : index
    %6 = vector.load %arg2[%c0_3, %c0_4, %c0_5] : memref<6x128x128xf32, #tpu.memory_space<vmem>>, vector<1x128x128xf32>
    %7 = vector.shape_cast %6 : vector<1x128x128xf32> to vector<128x128xf32>
    %cst_6 = arith.constant dense<0.000000e+00> : vector<32x128xf32>
    %8 = tpu.matmul %5, %7, %cst_6 {dimension_numbers = #tpu.dot_dimension_numbers<[1], [0], [0], [1], [0, 0, 1, 1], [], []>} : vector<32x128xf32>, vector<128x128xf32>, vector<32x128xf32> -> vector<32x128xf32>
    %9 = vector.extract_strided_slice %8 {offsets = [0, 0], sizes = [16, 128], strides = [1, 1]} : vector<32x128xf32> to vector<16x128xf32>
    %10 = vector.extract_strided_slice %8 {offsets = [16, 0], sizes = [16, 128], strides = [1, 1]} : vector<32x128xf32> to vector<16x128xf32>
    %c0_7 = arith.constant 0 : index
    %c128 = arith.constant 128 : index
    %11 = vector.load %arg1[%c0_7, %c128] : memref<16x896xf32, #tpu.memory_space<vmem>>, vector<16x128xf32>
    %cst_8 = arith.constant 2.000000e-01 : f32
    %12 = vector.broadcast %cst_8 : f32 to vector<16x128xf32>
    %13 = arith.mulf %12, %11 : vector<16x128xf32>
    %14 = arith.addf %10, %13 : vector<16x128xf32>
    %cst_9 = arith.constant dense<0.000000e+00> : vector<128xf32>
    %15 = vector.multi_reduction <add>, %9, %cst_9 [0] : vector<16x128xf32> to vector<128xf32>
    %16 = vector.shape_cast %15 : vector<128xf32> to vector<1x128xf32>
    %cst_10 = arith.constant 1.600000e+01 : f32
    %17 = vector.broadcast %cst_10 : f32 to vector<1x128xf32>
    %18 = arith.divf %16, %17 : vector<1x128xf32>
    %19 = vector.broadcast %18 : vector<1x128xf32> to vector<16x128xf32>
    %20 = arith.subf %9, %19 : vector<16x128xf32>
    %21 = arith.mulf %20, %20 : vector<16x128xf32>
    %cst_11 = arith.constant dense<0.000000e+00> : vector<128xf32>
    %22 = vector.multi_reduction <add>, %21, %cst_11 [0] : vector<16x128xf32> to vector<128xf32>
    %23 = vector.shape_cast %22 : vector<128xf32> to vector<1x128xf32>
    %cst_12 = arith.constant 1.600000e+01 : f32
    %24 = vector.broadcast %cst_12 : f32 to vector<1x128xf32>
    %25 = arith.divf %23, %24 : vector<1x128xf32>
    %cst_13 = arith.constant 1.06666672 : f32
    %26 = vector.broadcast %cst_13 : f32 to vector<1x128xf32>
    %27 = arith.mulf %25, %26 : vector<1x128xf32>
    %cst_14 = arith.constant 9.99999974E-6 : f32
    %28 = vector.broadcast %cst_14 : f32 to vector<1x128xf32>
    %29 = arith.addf %25, %28 : vector<1x128xf32>
    %30 = math.rsqrt %29 : vector<1x128xf32>
    %31 = vector.broadcast %30 : vector<1x128xf32> to vector<16x128xf32>
    %32 = arith.mulf %20, %31 : vector<16x128xf32>
    %cst_15 = arith.constant dense<0.000000e+00> : vector<128xf32>
    %33 = vector.multi_reduction <add>, %14, %cst_15 [0] : vector<16x128xf32> to vector<128xf32>
    %34 = vector.shape_cast %33 : vector<128xf32> to vector<1x128xf32>
    %cst_16 = arith.constant 1.600000e+01 : f32
    %35 = vector.broadcast %cst_16 : f32 to vector<1x128xf32>
    %36 = arith.divf %34, %35 : vector<1x128xf32>
    %37 = vector.broadcast %36 : vector<1x128xf32> to vector<16x128xf32>
    %38 = arith.subf %14, %37 : vector<16x128xf32>
    %39 = arith.mulf %38, %38 : vector<16x128xf32>
    %cst_17 = arith.constant dense<0.000000e+00> : vector<128xf32>
    %40 = vector.multi_reduction <add>, %39, %cst_17 [0] : vector<16x128xf32> to vector<128xf32>
    %41 = vector.shape_cast %40 : vector<128xf32> to vector<1x128xf32>
    %cst_18 = arith.constant 1.600000e+01 : f32
    %42 = vector.broadcast %cst_18 : f32 to vector<1x128xf32>
    %43 = arith.divf %41, %42 : vector<1x128xf32>
    %cst_19 = arith.constant 9.99999974E-6 : f32
    %44 = vector.broadcast %cst_19 : f32 to vector<1x128xf32>
    %45 = arith.addf %43, %44 : vector<1x128xf32>
    %46 = math.rsqrt %45 : vector<1x128xf32>
    %47 = vector.broadcast %46 : vector<1x128xf32> to vector<16x128xf32>
    %48 = arith.mulf %38, %47 : vector<16x128xf32>
    %49 = tpu.concatenate %32, %48 in 0 : vector<16x128xf32>, vector<16x128xf32> -> vector<32x128xf32>
    %cst_20 = arith.constant 0.000000e+00 : f32
    %50 = vector.broadcast %cst_20 : f32 to vector<32x128xf32>
    %51 = arith.maximumf %49, %50 : vector<32x128xf32>
    %c1 = arith.constant 1 : index
    %c0_21 = arith.constant 0 : index
    %c0_22 = arith.constant 0 : index
    %52 = vector.load %arg2[%c1, %c0_21, %c0_22] : memref<6x128x128xf32, #tpu.memory_space<vmem>>, vector<1x128x128xf32>
    %53 = vector.shape_cast %52 : vector<1x128x128xf32> to vector<128x128xf32>
    %cst_23 = arith.constant dense<0.000000e+00> : vector<32x128xf32>
    %54 = tpu.matmul %51, %53, %cst_23 {dimension_numbers = #tpu.dot_dimension_numbers<[1], [0], [0], [1], [0, 0, 1, 1], [], []>} : vector<32x128xf32>, vector<128x128xf32>, vector<32x128xf32> -> vector<32x128xf32>
    %55 = vector.extract_strided_slice %54 {offsets = [0, 0], sizes = [16, 128], strides = [1, 1]} : vector<32x128xf32> to vector<16x128xf32>
    %56 = vector.extract_strided_slice %54 {offsets = [16, 0], sizes = [16, 128], strides = [1, 1]} : vector<32x128xf32> to vector<16x128xf32>
    %c0_24 = arith.constant 0 : index
    %c256 = arith.constant 256 : index
    %57 = vector.load %arg1[%c0_24, %c256] : memref<16x896xf32, #tpu.memory_space<vmem>>, vector<16x128xf32>
    %cst_25 = arith.constant 2.000000e-01 : f32
    %58 = vector.broadcast %cst_25 : f32 to vector<16x128xf32>
    %59 = arith.mulf %58, %57 : vector<16x128xf32>
    %60 = arith.addf %56, %59 : vector<16x128xf32>
    %cst_26 = arith.constant dense<0.000000e+00> : vector<128xf32>
    %61 = vector.multi_reduction <add>, %55, %cst_26 [0] : vector<16x128xf32> to vector<128xf32>
    %62 = vector.shape_cast %61 : vector<128xf32> to vector<1x128xf32>
    %cst_27 = arith.constant 1.600000e+01 : f32
    %63 = vector.broadcast %cst_27 : f32 to vector<1x128xf32>
    %64 = arith.divf %62, %63 : vector<1x128xf32>
    %65 = vector.broadcast %64 : vector<1x128xf32> to vector<16x128xf32>
    %66 = arith.subf %55, %65 : vector<16x128xf32>
    %67 = arith.mulf %66, %66 : vector<16x128xf32>
    %cst_28 = arith.constant dense<0.000000e+00> : vector<128xf32>
    %68 = vector.multi_reduction <add>, %67, %cst_28 [0] : vector<16x128xf32> to vector<128xf32>
    %69 = vector.shape_cast %68 : vector<128xf32> to vector<1x128xf32>
    %cst_29 = arith.constant 1.600000e+01 : f32
    %70 = vector.broadcast %cst_29 : f32 to vector<1x128xf32>
    %71 = arith.divf %69, %70 : vector<1x128xf32>
    %cst_30 = arith.constant 1.06666672 : f32
    %72 = vector.broadcast %cst_30 : f32 to vector<1x128xf32>
    %73 = arith.mulf %71, %72 : vector<1x128xf32>
    %cst_31 = arith.constant 9.99999974E-6 : f32
    %74 = vector.broadcast %cst_31 : f32 to vector<1x128xf32>
    %75 = arith.addf %71, %74 : vector<1x128xf32>
    %76 = math.rsqrt %75 : vector<1x128xf32>
    %77 = vector.broadcast %76 : vector<1x128xf32> to vector<16x128xf32>
    %78 = arith.mulf %66, %77 : vector<16x128xf32>
    %cst_32 = arith.constant dense<0.000000e+00> : vector<128xf32>
    %79 = vector.multi_reduction <add>, %60, %cst_32 [0] : vector<16x128xf32> to vector<128xf32>
    %80 = vector.shape_cast %79 : vector<128xf32> to vector<1x128xf32>
    %cst_33 = arith.constant 1.600000e+01 : f32
    %81 = vector.broadcast %cst_33 : f32 to vector<1x128xf32>
    %82 = arith.divf %80, %81 : vector<1x128xf32>
    %83 = vector.broadcast %82 : vector<1x128xf32> to vector<16x128xf32>
    %84 = arith.subf %60, %83 : vector<16x128xf32>
    %85 = arith.mulf %84, %84 : vector<16x128xf32>
    %cst_34 = arith.constant dense<0.000000e+00> : vector<128xf32>
    %86 = vector.multi_reduction <add>, %85, %cst_34 [0] : vector<16x128xf32> to vector<128xf32>
    %87 = vector.shape_cast %86 : vector<128xf32> to vector<1x128xf32>
    %cst_35 = arith.constant 1.600000e+01 : f32
    %88 = vector.broadcast %cst_35 : f32 to vector<1x128xf32>
    %89 = arith.divf %87, %88 : vector<1x128xf32>
    %cst_36 = arith.constant 9.99999974E-6 : f32
    %90 = vector.broadcast %cst_36 : f32 to vector<1x128xf32>
    %91 = arith.addf %89, %90 : vector<1x128xf32>
    %92 = math.rsqrt %91 : vector<1x128xf32>
    %93 = vector.broadcast %92 : vector<1x128xf32> to vector<16x128xf32>
    %94 = arith.mulf %84, %93 : vector<16x128xf32>
    %95 = tpu.concatenate %78, %94 in 0 : vector<16x128xf32>, vector<16x128xf32> -> vector<32x128xf32>
    %cst_37 = arith.constant 0.000000e+00 : f32
    %96 = vector.broadcast %cst_37 : f32 to vector<32x128xf32>
    %97 = arith.maximumf %95, %96 : vector<32x128xf32>
    %c2 = arith.constant 2 : index
    %c0_38 = arith.constant 0 : index
    %c0_39 = arith.constant 0 : index
    %98 = vector.load %arg2[%c2, %c0_38, %c0_39] : memref<6x128x128xf32, #tpu.memory_space<vmem>>, vector<1x128x128xf32>
    %99 = vector.shape_cast %98 : vector<1x128x128xf32> to vector<128x128xf32>
    %cst_40 = arith.constant dense<0.000000e+00> : vector<32x128xf32>
    %100 = tpu.matmul %97, %99, %cst_40 {dimension_numbers = #tpu.dot_dimension_numbers<[1], [0], [0], [1], [0, 0, 1, 1], [], []>} : vector<32x128xf32>, vector<128x128xf32>, vector<32x128xf32> -> vector<32x128xf32>
    %101 = vector.extract_strided_slice %100 {offsets = [0, 0], sizes = [16, 128], strides = [1, 1]} : vector<32x128xf32> to vector<16x128xf32>
    %102 = vector.extract_strided_slice %100 {offsets = [16, 0], sizes = [16, 128], strides = [1, 1]} : vector<32x128xf32> to vector<16x128xf32>
    %c0_41 = arith.constant 0 : index
    %c384 = arith.constant 384 : index
    %103 = vector.load %arg1[%c0_41, %c384] : memref<16x896xf32, #tpu.memory_space<vmem>>, vector<16x128xf32>
    %cst_42 = arith.constant 2.000000e-01 : f32
    %104 = vector.broadcast %cst_42 : f32 to vector<16x128xf32>
    %105 = arith.mulf %104, %103 : vector<16x128xf32>
    %106 = arith.addf %102, %105 : vector<16x128xf32>
    %cst_43 = arith.constant dense<0.000000e+00> : vector<128xf32>
    %107 = vector.multi_reduction <add>, %101, %cst_43 [0] : vector<16x128xf32> to vector<128xf32>
    %108 = vector.shape_cast %107 : vector<128xf32> to vector<1x128xf32>
    %cst_44 = arith.constant 1.600000e+01 : f32
    %109 = vector.broadcast %cst_44 : f32 to vector<1x128xf32>
    %110 = arith.divf %108, %109 : vector<1x128xf32>
    %111 = vector.broadcast %110 : vector<1x128xf32> to vector<16x128xf32>
    %112 = arith.subf %101, %111 : vector<16x128xf32>
    %113 = arith.mulf %112, %112 : vector<16x128xf32>
    %cst_45 = arith.constant dense<0.000000e+00> : vector<128xf32>
    %114 = vector.multi_reduction <add>, %113, %cst_45 [0] : vector<16x128xf32> to vector<128xf32>
    %115 = vector.shape_cast %114 : vector<128xf32> to vector<1x128xf32>
    %cst_46 = arith.constant 1.600000e+01 : f32
    %116 = vector.broadcast %cst_46 : f32 to vector<1x128xf32>
    %117 = arith.divf %115, %116 : vector<1x128xf32>
    %cst_47 = arith.constant 1.06666672 : f32
    %118 = vector.broadcast %cst_47 : f32 to vector<1x128xf32>
    %119 = arith.mulf %117, %118 : vector<1x128xf32>
    %cst_48 = arith.constant 9.99999974E-6 : f32
    %120 = vector.broadcast %cst_48 : f32 to vector<1x128xf32>
    %121 = arith.addf %117, %120 : vector<1x128xf32>
    %122 = math.rsqrt %121 : vector<1x128xf32>
    %123 = vector.broadcast %122 : vector<1x128xf32> to vector<16x128xf32>
    %124 = arith.mulf %112, %123 : vector<16x128xf32>
    %cst_49 = arith.constant dense<0.000000e+00> : vector<128xf32>
    %125 = vector.multi_reduction <add>, %106, %cst_49 [0] : vector<16x128xf32> to vector<128xf32>
    %126 = vector.shape_cast %125 : vector<128xf32> to vector<1x128xf32>
    %cst_50 = arith.constant 1.600000e+01 : f32
    %127 = vector.broadcast %cst_50 : f32 to vector<1x128xf32>
    %128 = arith.divf %126, %127 : vector<1x128xf32>
    %129 = vector.broadcast %128 : vector<1x128xf32> to vector<16x128xf32>
    %130 = arith.subf %106, %129 : vector<16x128xf32>
    %131 = arith.mulf %130, %130 : vector<16x128xf32>
    %cst_51 = arith.constant dense<0.000000e+00> : vector<128xf32>
    %132 = vector.multi_reduction <add>, %131, %cst_51 [0] : vector<16x128xf32> to vector<128xf32>
    %133 = vector.shape_cast %132 : vector<128xf32> to vector<1x128xf32>
    %cst_52 = arith.constant 1.600000e+01 : f32
    %134 = vector.broadcast %cst_52 : f32 to vector<1x128xf32>
    %135 = arith.divf %133, %134 : vector<1x128xf32>
    %cst_53 = arith.constant 9.99999974E-6 : f32
    %136 = vector.broadcast %cst_53 : f32 to vector<1x128xf32>
    %137 = arith.addf %135, %136 : vector<1x128xf32>
    %138 = math.rsqrt %137 : vector<1x128xf32>
    %139 = vector.broadcast %138 : vector<1x128xf32> to vector<16x128xf32>
    %140 = arith.mulf %130, %139 : vector<16x128xf32>
    %141 = tpu.concatenate %124, %140 in 0 : vector<16x128xf32>, vector<16x128xf32> -> vector<32x128xf32>
    %cst_54 = arith.constant 0.000000e+00 : f32
    %142 = vector.broadcast %cst_54 : f32 to vector<32x128xf32>
    %143 = arith.maximumf %141, %142 : vector<32x128xf32>
    %c3 = arith.constant 3 : index
    %c0_55 = arith.constant 0 : index
    %c0_56 = arith.constant 0 : index
    %144 = vector.load %arg2[%c3, %c0_55, %c0_56] : memref<6x128x128xf32, #tpu.memory_space<vmem>>, vector<1x128x128xf32>
    %145 = vector.shape_cast %144 : vector<1x128x128xf32> to vector<128x128xf32>
    %cst_57 = arith.constant dense<0.000000e+00> : vector<32x128xf32>
    %146 = tpu.matmul %143, %145, %cst_57 {dimension_numbers = #tpu.dot_dimension_numbers<[1], [0], [0], [1], [0, 0, 1, 1], [], []>} : vector<32x128xf32>, vector<128x128xf32>, vector<32x128xf32> -> vector<32x128xf32>
    %147 = vector.extract_strided_slice %146 {offsets = [0, 0], sizes = [16, 128], strides = [1, 1]} : vector<32x128xf32> to vector<16x128xf32>
    %148 = vector.extract_strided_slice %146 {offsets = [16, 0], sizes = [16, 128], strides = [1, 1]} : vector<32x128xf32> to vector<16x128xf32>
    %c0_58 = arith.constant 0 : index
    %c512 = arith.constant 512 : index
    %149 = vector.load %arg1[%c0_58, %c512] : memref<16x896xf32, #tpu.memory_space<vmem>>, vector<16x128xf32>
    %cst_59 = arith.constant 2.000000e-01 : f32
    %150 = vector.broadcast %cst_59 : f32 to vector<16x128xf32>
    %151 = arith.mulf %150, %149 : vector<16x128xf32>
    %152 = arith.addf %148, %151 : vector<16x128xf32>
    %cst_60 = arith.constant dense<0.000000e+00> : vector<128xf32>
    %153 = vector.multi_reduction <add>, %147, %cst_60 [0] : vector<16x128xf32> to vector<128xf32>
    %154 = vector.shape_cast %153 : vector<128xf32> to vector<1x128xf32>
    %cst_61 = arith.constant 1.600000e+01 : f32
    %155 = vector.broadcast %cst_61 : f32 to vector<1x128xf32>
    %156 = arith.divf %154, %155 : vector<1x128xf32>
    %157 = vector.broadcast %156 : vector<1x128xf32> to vector<16x128xf32>
    %158 = arith.subf %147, %157 : vector<16x128xf32>
    %159 = arith.mulf %158, %158 : vector<16x128xf32>
    %cst_62 = arith.constant dense<0.000000e+00> : vector<128xf32>
    %160 = vector.multi_reduction <add>, %159, %cst_62 [0] : vector<16x128xf32> to vector<128xf32>
    %161 = vector.shape_cast %160 : vector<128xf32> to vector<1x128xf32>
    %cst_63 = arith.constant 1.600000e+01 : f32
    %162 = vector.broadcast %cst_63 : f32 to vector<1x128xf32>
    %163 = arith.divf %161, %162 : vector<1x128xf32>
    %cst_64 = arith.constant 1.06666672 : f32
    %164 = vector.broadcast %cst_64 : f32 to vector<1x128xf32>
    %165 = arith.mulf %163, %164 : vector<1x128xf32>
    %cst_65 = arith.constant 9.99999974E-6 : f32
    %166 = vector.broadcast %cst_65 : f32 to vector<1x128xf32>
    %167 = arith.addf %163, %166 : vector<1x128xf32>
    %168 = math.rsqrt %167 : vector<1x128xf32>
    %169 = vector.broadcast %168 : vector<1x128xf32> to vector<16x128xf32>
    %170 = arith.mulf %158, %169 : vector<16x128xf32>
    %cst_66 = arith.constant dense<0.000000e+00> : vector<128xf32>
    %171 = vector.multi_reduction <add>, %152, %cst_66 [0] : vector<16x128xf32> to vector<128xf32>
    %172 = vector.shape_cast %171 : vector<128xf32> to vector<1x128xf32>
    %cst_67 = arith.constant 1.600000e+01 : f32
    %173 = vector.broadcast %cst_67 : f32 to vector<1x128xf32>
    %174 = arith.divf %172, %173 : vector<1x128xf32>
    %175 = vector.broadcast %174 : vector<1x128xf32> to vector<16x128xf32>
    %176 = arith.subf %152, %175 : vector<16x128xf32>
    %177 = arith.mulf %176, %176 : vector<16x128xf32>
    %cst_68 = arith.constant dense<0.000000e+00> : vector<128xf32>
    %178 = vector.multi_reduction <add>, %177, %cst_68 [0] : vector<16x128xf32> to vector<128xf32>
    %179 = vector.shape_cast %178 : vector<128xf32> to vector<1x128xf32>
    %cst_69 = arith.constant 1.600000e+01 : f32
    %180 = vector.broadcast %cst_69 : f32 to vector<1x128xf32>
    %181 = arith.divf %179, %180 : vector<1x128xf32>
    %cst_70 = arith.constant 9.99999974E-6 : f32
    %182 = vector.broadcast %cst_70 : f32 to vector<1x128xf32>
    %183 = arith.addf %181, %182 : vector<1x128xf32>
    %184 = math.rsqrt %183 : vector<1x128xf32>
    %185 = vector.broadcast %184 : vector<1x128xf32> to vector<16x128xf32>
    %186 = arith.mulf %176, %185 : vector<16x128xf32>
    %187 = tpu.concatenate %170, %186 in 0 : vector<16x128xf32>, vector<16x128xf32> -> vector<32x128xf32>
    %cst_71 = arith.constant 0.000000e+00 : f32
    %188 = vector.broadcast %cst_71 : f32 to vector<32x128xf32>
    %189 = arith.maximumf %187, %188 : vector<32x128xf32>
    %c4 = arith.constant 4 : index
    %c0_72 = arith.constant 0 : index
    %c0_73 = arith.constant 0 : index
    %190 = vector.load %arg2[%c4, %c0_72, %c0_73] : memref<6x128x128xf32, #tpu.memory_space<vmem>>, vector<1x128x128xf32>
    %191 = vector.shape_cast %190 : vector<1x128x128xf32> to vector<128x128xf32>
    %cst_74 = arith.constant dense<0.000000e+00> : vector<32x128xf32>
    %192 = tpu.matmul %189, %191, %cst_74 {dimension_numbers = #tpu.dot_dimension_numbers<[1], [0], [0], [1], [0, 0, 1, 1], [], []>} : vector<32x128xf32>, vector<128x128xf32>, vector<32x128xf32> -> vector<32x128xf32>
    %193 = vector.extract_strided_slice %192 {offsets = [0, 0], sizes = [16, 128], strides = [1, 1]} : vector<32x128xf32> to vector<16x128xf32>
    %194 = vector.extract_strided_slice %192 {offsets = [16, 0], sizes = [16, 128], strides = [1, 1]} : vector<32x128xf32> to vector<16x128xf32>
    %c0_75 = arith.constant 0 : index
    %c640 = arith.constant 640 : index
    %195 = vector.load %arg1[%c0_75, %c640] : memref<16x896xf32, #tpu.memory_space<vmem>>, vector<16x128xf32>
    %cst_76 = arith.constant 2.000000e-01 : f32
    %196 = vector.broadcast %cst_76 : f32 to vector<16x128xf32>
    %197 = arith.mulf %196, %195 : vector<16x128xf32>
    %198 = arith.addf %194, %197 : vector<16x128xf32>
    %cst_77 = arith.constant dense<0.000000e+00> : vector<128xf32>
    %199 = vector.multi_reduction <add>, %193, %cst_77 [0] : vector<16x128xf32> to vector<128xf32>
    %200 = vector.shape_cast %199 : vector<128xf32> to vector<1x128xf32>
    %cst_78 = arith.constant 1.600000e+01 : f32
    %201 = vector.broadcast %cst_78 : f32 to vector<1x128xf32>
    %202 = arith.divf %200, %201 : vector<1x128xf32>
    %203 = vector.broadcast %202 : vector<1x128xf32> to vector<16x128xf32>
    %204 = arith.subf %193, %203 : vector<16x128xf32>
    %205 = arith.mulf %204, %204 : vector<16x128xf32>
    %cst_79 = arith.constant dense<0.000000e+00> : vector<128xf32>
    %206 = vector.multi_reduction <add>, %205, %cst_79 [0] : vector<16x128xf32> to vector<128xf32>
    %207 = vector.shape_cast %206 : vector<128xf32> to vector<1x128xf32>
    %cst_80 = arith.constant 1.600000e+01 : f32
    %208 = vector.broadcast %cst_80 : f32 to vector<1x128xf32>
    %209 = arith.divf %207, %208 : vector<1x128xf32>
    %cst_81 = arith.constant 1.06666672 : f32
    %210 = vector.broadcast %cst_81 : f32 to vector<1x128xf32>
    %211 = arith.mulf %209, %210 : vector<1x128xf32>
    %cst_82 = arith.constant 9.99999974E-6 : f32
    %212 = vector.broadcast %cst_82 : f32 to vector<1x128xf32>
    %213 = arith.addf %209, %212 : vector<1x128xf32>
    %214 = math.rsqrt %213 : vector<1x128xf32>
    %215 = vector.broadcast %214 : vector<1x128xf32> to vector<16x128xf32>
    %216 = arith.mulf %204, %215 : vector<16x128xf32>
    %cst_83 = arith.constant dense<0.000000e+00> : vector<128xf32>
    %217 = vector.multi_reduction <add>, %198, %cst_83 [0] : vector<16x128xf32> to vector<128xf32>
    %218 = vector.shape_cast %217 : vector<128xf32> to vector<1x128xf32>
    %cst_84 = arith.constant 1.600000e+01 : f32
    %219 = vector.broadcast %cst_84 : f32 to vector<1x128xf32>
    %220 = arith.divf %218, %219 : vector<1x128xf32>
    %221 = vector.broadcast %220 : vector<1x128xf32> to vector<16x128xf32>
    %222 = arith.subf %198, %221 : vector<16x128xf32>
    %223 = arith.mulf %222, %222 : vector<16x128xf32>
    %cst_85 = arith.constant dense<0.000000e+00> : vector<128xf32>
    %224 = vector.multi_reduction <add>, %223, %cst_85 [0] : vector<16x128xf32> to vector<128xf32>
    %225 = vector.shape_cast %224 : vector<128xf32> to vector<1x128xf32>
    %cst_86 = arith.constant 1.600000e+01 : f32
    %226 = vector.broadcast %cst_86 : f32 to vector<1x128xf32>
    %227 = arith.divf %225, %226 : vector<1x128xf32>
    %cst_87 = arith.constant 9.99999974E-6 : f32
    %228 = vector.broadcast %cst_87 : f32 to vector<1x128xf32>
    %229 = arith.addf %227, %228 : vector<1x128xf32>
    %230 = math.rsqrt %229 : vector<1x128xf32>
    %231 = vector.broadcast %230 : vector<1x128xf32> to vector<16x128xf32>
    %232 = arith.mulf %222, %231 : vector<16x128xf32>
    %233 = tpu.concatenate %216, %232 in 0 : vector<16x128xf32>, vector<16x128xf32> -> vector<32x128xf32>
    %cst_88 = arith.constant 0.000000e+00 : f32
    %234 = vector.broadcast %cst_88 : f32 to vector<32x128xf32>
    %235 = arith.maximumf %233, %234 : vector<32x128xf32>
    %c5 = arith.constant 5 : index
    %c0_89 = arith.constant 0 : index
    %c0_90 = arith.constant 0 : index
    %236 = vector.load %arg2[%c5, %c0_89, %c0_90] : memref<6x128x128xf32, #tpu.memory_space<vmem>>, vector<1x128x128xf32>
    %237 = vector.shape_cast %236 : vector<1x128x128xf32> to vector<128x128xf32>
    %cst_91 = arith.constant dense<0.000000e+00> : vector<32x128xf32>
    %238 = tpu.matmul %235, %237, %cst_91 {dimension_numbers = #tpu.dot_dimension_numbers<[1], [0], [0], [1], [0, 0, 1, 1], [], []>} : vector<32x128xf32>, vector<128x128xf32>, vector<32x128xf32> -> vector<32x128xf32>
    %239 = vector.extract_strided_slice %238 {offsets = [0, 0], sizes = [16, 128], strides = [1, 1]} : vector<32x128xf32> to vector<16x128xf32>
    %240 = vector.extract_strided_slice %238 {offsets = [16, 0], sizes = [16, 128], strides = [1, 1]} : vector<32x128xf32> to vector<16x128xf32>
    %c0_92 = arith.constant 0 : index
    %c768 = arith.constant 768 : index
    %241 = vector.load %arg1[%c0_92, %c768] : memref<16x896xf32, #tpu.memory_space<vmem>>, vector<16x128xf32>
    %cst_93 = arith.constant 2.000000e-01 : f32
    %242 = vector.broadcast %cst_93 : f32 to vector<16x128xf32>
    %243 = arith.mulf %242, %241 : vector<16x128xf32>
    %244 = arith.addf %240, %243 : vector<16x128xf32>
    %cst_94 = arith.constant dense<0.000000e+00> : vector<128xf32>
    %245 = vector.multi_reduction <add>, %239, %cst_94 [0] : vector<16x128xf32> to vector<128xf32>
    %246 = vector.shape_cast %245 : vector<128xf32> to vector<1x128xf32>
    %cst_95 = arith.constant 1.600000e+01 : f32
    %247 = vector.broadcast %cst_95 : f32 to vector<1x128xf32>
    %248 = arith.divf %246, %247 : vector<1x128xf32>
    %249 = vector.broadcast %248 : vector<1x128xf32> to vector<16x128xf32>
    %250 = arith.subf %239, %249 : vector<16x128xf32>
    %251 = arith.mulf %250, %250 : vector<16x128xf32>
    %cst_96 = arith.constant dense<0.000000e+00> : vector<128xf32>
    %252 = vector.multi_reduction <add>, %251, %cst_96 [0] : vector<16x128xf32> to vector<128xf32>
    %253 = vector.shape_cast %252 : vector<128xf32> to vector<1x128xf32>
    %cst_97 = arith.constant 1.600000e+01 : f32
    %254 = vector.broadcast %cst_97 : f32 to vector<1x128xf32>
    %255 = arith.divf %253, %254 : vector<1x128xf32>
    %cst_98 = arith.constant 1.06666672 : f32
    %256 = vector.broadcast %cst_98 : f32 to vector<1x128xf32>
    %257 = arith.mulf %255, %256 : vector<1x128xf32>
    %cst_99 = arith.constant 9.99999974E-6 : f32
    %258 = vector.broadcast %cst_99 : f32 to vector<1x128xf32>
    %259 = arith.addf %255, %258 : vector<1x128xf32>
    %260 = math.rsqrt %259 : vector<1x128xf32>
    %261 = vector.broadcast %260 : vector<1x128xf32> to vector<16x128xf32>
    %262 = arith.mulf %250, %261 : vector<16x128xf32>
    %cst_100 = arith.constant dense<0.000000e+00> : vector<128xf32>
    %263 = vector.multi_reduction <add>, %244, %cst_100 [0] : vector<16x128xf32> to vector<128xf32>
    %264 = vector.shape_cast %263 : vector<128xf32> to vector<1x128xf32>
    %cst_101 = arith.constant 1.600000e+01 : f32
    %265 = vector.broadcast %cst_101 : f32 to vector<1x128xf32>
    %266 = arith.divf %264, %265 : vector<1x128xf32>
    %267 = vector.broadcast %266 : vector<1x128xf32> to vector<16x128xf32>
    %268 = arith.subf %244, %267 : vector<16x128xf32>
    %269 = arith.mulf %268, %268 : vector<16x128xf32>
    %cst_102 = arith.constant dense<0.000000e+00> : vector<128xf32>
    %270 = vector.multi_reduction <add>, %269, %cst_102 [0] : vector<16x128xf32> to vector<128xf32>
    %271 = vector.shape_cast %270 : vector<128xf32> to vector<1x128xf32>
    %cst_103 = arith.constant 1.600000e+01 : f32
    %272 = vector.broadcast %cst_103 : f32 to vector<1x128xf32>
    %273 = arith.divf %271, %272 : vector<1x128xf32>
    %cst_104 = arith.constant 9.99999974E-6 : f32
    %274 = vector.broadcast %cst_104 : f32 to vector<1x128xf32>
    %275 = arith.addf %273, %274 : vector<1x128xf32>
    %276 = math.rsqrt %275 : vector<1x128xf32>
    %277 = vector.broadcast %276 : vector<1x128xf32> to vector<16x128xf32>
    %278 = arith.mulf %268, %277 : vector<16x128xf32>
    %279 = tpu.iota {dimensions = array<i32: 1>} : vector<16x128xi32>
    %c8_i32 = arith.constant 8 : i32
    %280 = vector.broadcast %c8_i32 : i32 to vector<16x128xi32>
    %281 = arith.cmpi slt, %279, %280 : vector<16x128xi32>
    %cst_105 = arith.constant -1.000000e+30 : f32
    %282 = vector.broadcast %cst_105 : f32 to vector<16x128xf32>
    %283 = arith.select %281, %262, %282 : vector<16x128xi1>, vector<16x128xf32>
    %cst_106 = arith.constant dense<0xFF800000> : vector<16xf32>
    %284 = vector.multi_reduction <maximumf>, %283, %cst_106 [1] : vector<16x128xf32> to vector<16xf32>
    %cst_107 = arith.constant 0xFF800000 : f32
    %285 = vector.broadcast %cst_107 : f32 to vector<16xf32>
    %286 = arith.maximumf %285, %284 : vector<16xf32>
    %287 = vector.shape_cast %286 : vector<16xf32> to vector<16x1xf32>
    %288 = vector.broadcast %287 : vector<16x1xf32> to vector<16x128xf32>
    %289 = arith.subf %283, %288 : vector<16x128xf32>
    %290 = math.exp %289 : vector<16x128xf32>
    %cst_108 = arith.constant dense<0.000000e+00> : vector<16xf32>
    %291 = vector.multi_reduction <add>, %290, %cst_108 [1] : vector<16x128xf32> to vector<16xf32>
    %292 = vector.shape_cast %291 : vector<16xf32> to vector<16x1xf32>
    %293 = vector.broadcast %292 : vector<16x1xf32> to vector<16x128xf32>
    %294 = arith.divf %290, %293 : vector<16x128xf32>
    %cst_109 = arith.constant 0.000000e+00 : f32
    %295 = vector.broadcast %cst_109 : f32 to vector<16x128xf32>
    %296 = arith.maximumf %278, %295 : vector<16x128xf32>
    %297 = tpu.concatenate %294, %296 in 0 : vector<16x128xf32>, vector<16x128xf32> -> vector<32x128xf32>
    %c0_110 = arith.constant 0 : index
    %c0_111 = arith.constant 0 : index
    %298 = vector.load %arg5[%c0_110, %c0_111] : memref<32x128xf32, #tpu.memory_space<vmem>>, vector<32x128xf32>
    tpu.vector_store %arg5[%c0_110, %c0_111], %297 {strides = array<i32>} : memref<32x128xf32, #tpu.memory_space<vmem>>, vector<32x128xf32>,
    %cst_112 = arith.constant 0.000000e+00 : f32
    %299 = vector.broadcast %cst_112 : f32 to vector<16x1xf32>
    %cst_113 = arith.constant dense<0.000000e+00> : vector<128xf32>
    %300 = vector.multi_reduction <add>, %296, %cst_113 [0] : vector<16x128xf32> to vector<128xf32>
    %301 = vector.shape_cast %300 : vector<128xf32> to vector<1x128xf32>
    %cst_114 = arith.constant 1.600000e+01 : f32
    %302 = vector.broadcast %cst_114 : f32 to vector<1x128xf32>
    %303 = arith.divf %301, %302 : vector<1x128xf32>
    %304 = vector.broadcast %303 : vector<1x128xf32> to vector<16x128xf32>
    %305 = arith.subf %296, %304 : vector<16x128xf32>
    %306 = arith.mulf %305, %305 : vector<16x128xf32>
    %cst_115 = arith.constant dense<0.000000e+00> : vector<128xf32>
    %307 = vector.multi_reduction <add>, %306, %cst_115 [0] : vector<16x128xf32> to vector<128xf32>
    %308 = vector.shape_cast %307 : vector<128xf32> to vector<1x128xf32>
    %cst_116 = arith.constant 1.600000e+01 : f32
    %309 = vector.broadcast %cst_116 : f32 to vector<1x128xf32>
    %310 = arith.divf %308, %309 : vector<1x128xf32>
    %cst_117 = arith.constant 9.99999974E-6 : f32
    %311 = vector.broadcast %cst_117 : f32 to vector<1x128xf32>
    %312 = arith.addf %310, %311 : vector<1x128xf32>
    %313 = math.rsqrt %312 : vector<1x128xf32>
    %314 = vector.broadcast %313 : vector<1x128xf32> to vector<16x128xf32>
    %315 = arith.mulf %305, %314 : vector<16x128xf32>
    %c5_118 = arith.constant 5 : index
    %c0_119 = arith.constant 0 : index
    %c0_120 = arith.constant 0 : index
    %316 = vector.load %arg4[%c5_118, %c0_119, %c0_120] : memref<6x10x128xf32, #tpu.memory_space<vmem>>, vector<1x10x128xf32>
    %317 = vector.shape_cast %316 : vector<1x10x128xf32> to vector<10x128xf32>
    %318 = vector.extract_strided_slice %317 {offsets = [0, 0], sizes = [1, 128], strides = [1, 1]} : vector<10x128xf32> to vector<1x128xf32>
    %319 = vector.extract_strided_slice %317 {offsets = [1, 0], sizes = [1, 128], strides = [1, 1]} : vector<10x128xf32> to vector<1x128xf32>
    %320 = vector.extract_strided_slice %317 {offsets = [2, 0], sizes = [1, 128], strides = [1, 1]} : vector<10x128xf32> to vector<1x128xf32>
    %321 = vector.extract_strided_slice %317 {offsets = [3, 0], sizes = [1, 128], strides = [1, 1]} : vector<10x128xf32> to vector<1x128xf32>
    %322 = vector.extract_strided_slice %317 {offsets = [4, 0], sizes = [1, 128], strides = [1, 1]} : vector<10x128xf32> to vector<1x128xf32>
    %323 = vector.extract_strided_slice %317 {offsets = [5, 0], sizes = [1, 128], strides = [1, 1]} : vector<10x128xf32> to vector<1x128xf32>
    %324 = vector.extract_strided_slice %317 {offsets = [6, 0], sizes = [1, 128], strides = [1, 1]} : vector<10x128xf32> to vector<1x128xf32>
    %325 = vector.extract_strided_slice %317 {offsets = [7, 0], sizes = [1, 128], strides = [1, 1]} : vector<10x128xf32> to vector<1x128xf32>
    %326 = vector.extract_strided_slice %317 {offsets = [8, 0], sizes = [1, 128], strides = [1, 1]} : vector<10x128xf32> to vector<1x128xf32>
    %327 = vector.extract_strided_slice %317 {offsets = [9, 0], sizes = [1, 128], strides = [1, 1]} : vector<10x128xf32> to vector<1x128xf32>
    %328 = vector.broadcast %319 : vector<1x128xf32> to vector<16x128xf32>
    %329 = arith.mulf %328, %315 : vector<16x128xf32>
    %330 = vector.broadcast %320 : vector<1x128xf32> to vector<16x128xf32>
    %331 = arith.addf %329, %330 : vector<16x128xf32>
    %332 = arith.negf %331 : vector<16x128xf32>
    %333 = math.exp %332 : vector<16x128xf32>
    %cst_121 = arith.constant 1.000000e+00 : f32
    %334 = vector.broadcast %cst_121 : f32 to vector<16x128xf32>
    %335 = arith.addf %334, %333 : vector<16x128xf32>
    %336 = arith.divf %334, %335 : vector<16x128xf32>
    %337 = vector.broadcast %318 : vector<1x128xf32> to vector<16x128xf32>
    %338 = arith.mulf %337, %336 : vector<16x128xf32>
    %339 = vector.broadcast %321 : vector<1x128xf32> to vector<16x128xf32>
    %340 = arith.mulf %339, %315 : vector<16x128xf32>
    %341 = arith.addf %338, %340 : vector<16x128xf32>
    %342 = vector.broadcast %322 : vector<1x128xf32> to vector<16x128xf32>
    %343 = arith.addf %341, %342 : vector<16x128xf32>
    %344 = vector.broadcast %324 : vector<1x128xf32> to vector<16x128xf32>
    %345 = arith.mulf %344, %315 : vector<16x128xf32>
    %346 = vector.broadcast %325 : vector<1x128xf32> to vector<16x128xf32>
    %347 = arith.addf %345, %346 : vector<16x128xf32>
    %348 = arith.negf %347 : vector<16x128xf32>
    %349 = math.exp %348 : vector<16x128xf32>
    %cst_122 = arith.constant 1.000000e+00 : f32
    %350 = vector.broadcast %cst_122 : f32 to vector<16x128xf32>
    %351 = arith.addf %350, %349 : vector<16x128xf32>
    %352 = arith.divf %350, %351 : vector<16x128xf32>
    %353 = vector.broadcast %323 : vector<1x128xf32> to vector<16x128xf32>
    %354 = arith.mulf %353, %352 : vector<16x128xf32>
    %355 = vector.broadcast %326 : vector<1x128xf32> to vector<16x128xf32>
    %356 = arith.mulf %355, %315 : vector<16x128xf32>
    %357 = arith.addf %354, %356 : vector<16x128xf32>
    %358 = vector.broadcast %327 : vector<1x128xf32> to vector<16x128xf32>
    %359 = arith.addf %357, %358 : vector<16x128xf32>
    %360 = arith.subf %278, %343 : vector<16x128xf32>
    %361 = arith.mulf %360, %359 : vector<16x128xf32>
    %362 = arith.addf %361, %343 : vector<16x128xf32>
    %363 = vector.broadcast %248 : vector<1x128xf32> to vector<16x128xf32>
    %364 = arith.subf %362, %363 : vector<16x128xf32>
    %cst_123 = arith.constant 9.99999997E-7 : f32
    %365 = vector.broadcast %cst_123 : f32 to vector<1x128xf32>
    %366 = arith.addf %257, %365 : vector<1x128xf32>
    %367 = math.rsqrt %366 : vector<1x128xf32>
    %368 = vector.broadcast %367 : vector<1x128xf32> to vector<16x128xf32>
    %369 = arith.mulf %364, %368 : vector<16x128xf32>
    %370 = arith.subf %369, %262 : vector<16x128xf32>
    %371 = arith.mulf %370, %370 : vector<16x128xf32>
    %cst_124 = arith.constant dense<0.000000e+00> : vector<16xf32>
    %372 = vector.multi_reduction <add>, %371, %cst_124 [1] : vector<16x128xf32> to vector<16xf32>
    %373 = vector.shape_cast %372 : vector<16xf32> to vector<16x1xf32>
    %374 = math.sqrt %373 : vector<16x1xf32>
    %cst_125 = arith.constant 1.000000e-01 : f32
    %375 = vector.broadcast %cst_125 : f32 to vector<16x1xf32>
    %376 = arith.mulf %375, %374 : vector<16x1xf32>
    %377 = arith.addf %299, %376 : vector<16x1xf32>
    %c4_126 = arith.constant 4 : index
    %c0_127 = arith.constant 0 : index
    %c0_128 = arith.constant 0 : index
    %378 = vector.load %arg3[%c4_126, %c0_127, %c0_128] : memref<5x128x128xf32, #tpu.memory_space<vmem>>, vector<1x128x128xf32>
    %379 = vector.shape_cast %378 : vector<1x128x128xf32> to vector<128x128xf32>
    %cst_129 = arith.constant dense<0.000000e+00> : vector<16x128xf32>
    %380 = tpu.matmul %369, %379, %cst_129 {dimension_numbers = #tpu.dot_dimension_numbers<[1], [0], [0], [1], [0, 0, 1, 1], [], []>} : vector<16x128xf32>, vector<128x128xf32>, vector<16x128xf32> -> vector<16x128xf32>
    %cst_130 = arith.constant dense<0.000000e+00> : vector<128xf32>
    %381 = vector.multi_reduction <add>, %380, %cst_130 [0] : vector<16x128xf32> to vector<128xf32>
    %382 = vector.shape_cast %381 : vector<128xf32> to vector<1x128xf32>
    %cst_131 = arith.constant 1.600000e+01 : f32
    %383 = vector.broadcast %cst_131 : f32 to vector<1x128xf32>
    %384 = arith.divf %382, %383 : vector<1x128xf32>
    %385 = vector.broadcast %384 : vector<1x128xf32> to vector<16x128xf32>
    %386 = arith.subf %380, %385 : vector<16x128xf32>
    %387 = arith.mulf %386, %386 : vector<16x128xf32>
    %cst_132 = arith.constant dense<0.000000e+00> : vector<128xf32>
    %388 = vector.multi_reduction <add>, %387, %cst_132 [0] : vector<16x128xf32> to vector<128xf32>
    %389 = vector.shape_cast %388 : vector<128xf32> to vector<1x128xf32>
    %cst_133 = arith.constant 1.600000e+01 : f32
    %390 = vector.broadcast %cst_133 : f32 to vector<1x128xf32>
    %391 = arith.divf %389, %390 : vector<1x128xf32>
    %cst_134 = arith.constant 9.99999974E-6 : f32
    %392 = vector.broadcast %cst_134 : f32 to vector<1x128xf32>
    %393 = arith.addf %391, %392 : vector<1x128xf32>
    %394 = math.rsqrt %393 : vector<1x128xf32>
    %395 = vector.broadcast %394 : vector<1x128xf32> to vector<16x128xf32>
    %396 = arith.mulf %386, %395 : vector<16x128xf32>
    %c4_135 = arith.constant 4 : index
    %c0_136 = arith.constant 0 : index
    %c0_137 = arith.constant 0 : index
    %397 = vector.load %arg4[%c4_135, %c0_136, %c0_137] : memref<6x10x128xf32, #tpu.memory_space<vmem>>, vector<1x10x128xf32>
    %398 = vector.shape_cast %397 : vector<1x10x128xf32> to vector<10x128xf32>
    %399 = vector.extract_strided_slice %398 {offsets = [0, 0], sizes = [1, 128], strides = [1, 1]} : vector<10x128xf32> to vector<1x128xf32>
    %400 = vector.extract_strided_slice %398 {offsets = [1, 0], sizes = [1, 128], strides = [1, 1]} : vector<10x128xf32> to vector<1x128xf32>
    %401 = vector.extract_strided_slice %398 {offsets = [2, 0], sizes = [1, 128], strides = [1, 1]} : vector<10x128xf32> to vector<1x128xf32>
    %402 = vector.extract_strided_slice %398 {offsets = [3, 0], sizes = [1, 128], strides = [1, 1]} : vector<10x128xf32> to vector<1x128xf32>
    %403 = vector.extract_strided_slice %398 {offsets = [4, 0], sizes = [1, 128], strides = [1, 1]} : vector<10x128xf32> to vector<1x128xf32>
    %404 = vector.extract_strided_slice %398 {offsets = [5, 0], sizes = [1, 128], strides = [1, 1]} : vector<10x128xf32> to vector<1x128xf32>
    %405 = vector.extract_strided_slice %398 {offsets = [6, 0], sizes = [1, 128], strides = [1, 1]} : vector<10x128xf32> to vector<1x128xf32>
    %406 = vector.extract_strided_slice %398 {offsets = [7, 0], sizes = [1, 128], strides = [1, 1]} : vector<10x128xf32> to vector<1x128xf32>
    %407 = vector.extract_strided_slice %398 {offsets = [8, 0], sizes = [1, 128], strides = [1, 1]} : vector<10x128xf32> to vector<1x128xf32>
    %408 = vector.extract_strided_slice %398 {offsets = [9, 0], sizes = [1, 128], strides = [1, 1]} : vector<10x128xf32> to vector<1x128xf32>
    %409 = vector.broadcast %400 : vector<1x128xf32> to vector<16x128xf32>
    %410 = arith.mulf %409, %396 : vector<16x128xf32>
    %411 = vector.broadcast %401 : vector<1x128xf32> to vector<16x128xf32>
    %412 = arith.addf %410, %411 : vector<16x128xf32>
    %413 = arith.negf %412 : vector<16x128xf32>
    %414 = math.exp %413 : vector<16x128xf32>
    %cst_138 = arith.constant 1.000000e+00 : f32
    %415 = vector.broadcast %cst_138 : f32 to vector<16x128xf32>
    %416 = arith.addf %415, %414 : vector<16x128xf32>
    %417 = arith.divf %415, %416 : vector<16x128xf32>
    %418 = vector.broadcast %399 : vector<1x128xf32> to vector<16x128xf32>
    %419 = arith.mulf %418, %417 : vector<16x128xf32>
    %420 = vector.broadcast %402 : vector<1x128xf32> to vector<16x128xf32>
    %421 = arith.mulf %420, %396 : vector<16x128xf32>
    %422 = arith.addf %419, %421 : vector<16x128xf32>
    %423 = vector.broadcast %403 : vector<1x128xf32> to vector<16x128xf32>
    %424 = arith.addf %422, %423 : vector<16x128xf32>
    %425 = vector.broadcast %405 : vector<1x128xf32> to vector<16x128xf32>
    %426 = arith.mulf %425, %396 : vector<16x128xf32>
    %427 = vector.broadcast %406 : vector<1x128xf32> to vector<16x128xf32>
    %428 = arith.addf %426, %427 : vector<16x128xf32>
    %429 = arith.negf %428 : vector<16x128xf32>
    %430 = math.exp %429 : vector<16x128xf32>
    %cst_139 = arith.constant 1.000000e+00 : f32
    %431 = vector.broadcast %cst_139 : f32 to vector<16x128xf32>
    %432 = arith.addf %431, %430 : vector<16x128xf32>
    %433 = arith.divf %431, %432 : vector<16x128xf32>
    %434 = vector.broadcast %404 : vector<1x128xf32> to vector<16x128xf32>
    %435 = arith.mulf %434, %433 : vector<16x128xf32>
    %436 = vector.broadcast %407 : vector<1x128xf32> to vector<16x128xf32>
    %437 = arith.mulf %436, %396 : vector<16x128xf32>
    %438 = arith.addf %435, %437 : vector<16x128xf32>
    %439 = vector.broadcast %408 : vector<1x128xf32> to vector<16x128xf32>
    %440 = arith.addf %438, %439 : vector<16x128xf32>
    %441 = arith.subf %232, %424 : vector<16x128xf32>
    %442 = arith.mulf %441, %440 : vector<16x128xf32>
    %443 = arith.addf %442, %424 : vector<16x128xf32>
    %444 = vector.broadcast %202 : vector<1x128xf32> to vector<16x128xf32>
    %445 = arith.subf %443, %444 : vector<16x128xf32>
    %cst_140 = arith.constant 9.99999997E-7 : f32
    %446 = vector.broadcast %cst_140 : f32 to vector<1x128xf32>
    %447 = arith.addf %211, %446 : vector<1x128xf32>
    %448 = math.rsqrt %447 : vector<1x128xf32>
    %449 = vector.broadcast %448 : vector<1x128xf32> to vector<16x128xf32>
    %450 = arith.mulf %445, %449 : vector<16x128xf32>
    %451 = arith.subf %450, %216 : vector<16x128xf32>
    %452 = arith.mulf %451, %451 : vector<16x128xf32>
    %cst_141 = arith.constant dense<0.000000e+00> : vector<16xf32>
    %453 = vector.multi_reduction <add>, %452, %cst_141 [1] : vector<16x128xf32> to vector<16xf32>
    %454 = vector.shape_cast %453 : vector<16xf32> to vector<16x1xf32>
    %455 = math.sqrt %454 : vector<16x1xf32>
    %cst_142 = arith.constant 1.000000e-01 : f32
    %456 = vector.broadcast %cst_142 : f32 to vector<16x1xf32>
    %457 = arith.mulf %456, %455 : vector<16x1xf32>
    %458 = arith.addf %377, %457 : vector<16x1xf32>
    %c3_143 = arith.constant 3 : index
    %c0_144 = arith.constant 0 : index
    %c0_145 = arith.constant 0 : index
    %459 = vector.load %arg3[%c3_143, %c0_144, %c0_145] : memref<5x128x128xf32, #tpu.memory_space<vmem>>, vector<1x128x128xf32>
    %460 = vector.shape_cast %459 : vector<1x128x128xf32> to vector<128x128xf32>
    %cst_146 = arith.constant dense<0.000000e+00> : vector<16x128xf32>
    %461 = tpu.matmul %450, %460, %cst_146 {dimension_numbers = #tpu.dot_dimension_numbers<[1], [0], [0], [1], [0, 0, 1, 1], [], []>} : vector<16x128xf32>, vector<128x128xf32>, vector<16x128xf32> -> vector<16x128xf32>
    %cst_147 = arith.constant dense<0.000000e+00> : vector<128xf32>
    %462 = vector.multi_reduction <add>, %461, %cst_147 [0] : vector<16x128xf32> to vector<128xf32>
    %463 = vector.shape_cast %462 : vector<128xf32> to vector<1x128xf32>
    %cst_148 = arith.constant 1.600000e+01 : f32
    %464 = vector.broadcast %cst_148 : f32 to vector<1x128xf32>
    %465 = arith.divf %463, %464 : vector<1x128xf32>
    %466 = vector.broadcast %465 : vector<1x128xf32> to vector<16x128xf32>
    %467 = arith.subf %461, %466 : vector<16x128xf32>
    %468 = arith.mulf %467, %467 : vector<16x128xf32>
    %cst_149 = arith.constant dense<0.000000e+00> : vector<128xf32>
    %469 = vector.multi_reduction <add>, %468, %cst_149 [0] : vector<16x128xf32> to vector<128xf32>
    %470 = vector.shape_cast %469 : vector<128xf32> to vector<1x128xf32>
    %cst_150 = arith.constant 1.600000e+01 : f32
    %471 = vector.broadcast %cst_150 : f32 to vector<1x128xf32>
    %472 = arith.divf %470, %471 : vector<1x128xf32>
    %cst_151 = arith.constant 9.99999974E-6 : f32
    %473 = vector.broadcast %cst_151 : f32 to vector<1x128xf32>
    %474 = arith.addf %472, %473 : vector<1x128xf32>
    %475 = math.rsqrt %474 : vector<1x128xf32>
    %476 = vector.broadcast %475 : vector<1x128xf32> to vector<16x128xf32>
    %477 = arith.mulf %467, %476 : vector<16x128xf32>
    %c3_152 = arith.constant 3 : index
    %c0_153 = arith.constant 0 : index
    %c0_154 = arith.constant 0 : index
    %478 = vector.load %arg4[%c3_152, %c0_153, %c0_154] : memref<6x10x128xf32, #tpu.memory_space<vmem>>, vector<1x10x128xf32>
    %479 = vector.shape_cast %478 : vector<1x10x128xf32> to vector<10x128xf32>
    %480 = vector.extract_strided_slice %479 {offsets = [0, 0], sizes = [1, 128], strides = [1, 1]} : vector<10x128xf32> to vector<1x128xf32>
    %481 = vector.extract_strided_slice %479 {offsets = [1, 0], sizes = [1, 128], strides = [1, 1]} : vector<10x128xf32> to vector<1x128xf32>
    %482 = vector.extract_strided_slice %479 {offsets = [2, 0], sizes = [1, 128], strides = [1, 1]} : vector<10x128xf32> to vector<1x128xf32>
    %483 = vector.extract_strided_slice %479 {offsets = [3, 0], sizes = [1, 128], strides = [1, 1]} : vector<10x128xf32> to vector<1x128xf32>
    %484 = vector.extract_strided_slice %479 {offsets = [4, 0], sizes = [1, 128], strides = [1, 1]} : vector<10x128xf32> to vector<1x128xf32>
    %485 = vector.extract_strided_slice %479 {offsets = [5, 0], sizes = [1, 128], strides = [1, 1]} : vector<10x128xf32> to vector<1x128xf32>
    %486 = vector.extract_strided_slice %479 {offsets = [6, 0], sizes = [1, 128], strides = [1, 1]} : vector<10x128xf32> to vector<1x128xf32>
    %487 = vector.extract_strided_slice %479 {offsets = [7, 0], sizes = [1, 128], strides = [1, 1]} : vector<10x128xf32> to vector<1x128xf32>
    %488 = vector.extract_strided_slice %479 {offsets = [8, 0], sizes = [1, 128], strides = [1, 1]} : vector<10x128xf32> to vector<1x128xf32>
    %489 = vector.extract_strided_slice %479 {offsets = [9, 0], sizes = [1, 128], strides = [1, 1]} : vector<10x128xf32> to vector<1x128xf32>
    %490 = vector.broadcast %481 : vector<1x128xf32> to vector<16x128xf32>
    %491 = arith.mulf %490, %477 : vector<16x128xf32>
    %492 = vector.broadcast %482 : vector<1x128xf32> to vector<16x128xf32>
    %493 = arith.addf %491, %492 : vector<16x128xf32>
    %494 = arith.negf %493 : vector<16x128xf32>
    %495 = math.exp %494 : vector<16x128xf32>
    %cst_155 = arith.constant 1.000000e+00 : f32
    %496 = vector.broadcast %cst_155 : f32 to vector<16x128xf32>
    %497 = arith.addf %496, %495 : vector<16x128xf32>
    %498 = arith.divf %496, %497 : vector<16x128xf32>
    %499 = vector.broadcast %480 : vector<1x128xf32> to vector<16x128xf32>
    %500 = arith.mulf %499, %498 : vector<16x128xf32>
    %501 = vector.broadcast %483 : vector<1x128xf32> to vector<16x128xf32>
    %502 = arith.mulf %501, %477 : vector<16x128xf32>
    %503 = arith.addf %500, %502 : vector<16x128xf32>
    %504 = vector.broadcast %484 : vector<1x128xf32> to vector<16x128xf32>
    %505 = arith.addf %503, %504 : vector<16x128xf32>
    %506 = vector.broadcast %486 : vector<1x128xf32> to vector<16x128xf32>
    %507 = arith.mulf %506, %477 : vector<16x128xf32>
    %508 = vector.broadcast %487 : vector<1x128xf32> to vector<16x128xf32>
    %509 = arith.addf %507, %508 : vector<16x128xf32>
    %510 = arith.negf %509 : vector<16x128xf32>
    %511 = math.exp %510 : vector<16x128xf32>
    %cst_156 = arith.constant 1.000000e+00 : f32
    %512 = vector.broadcast %cst_156 : f32 to vector<16x128xf32>
    %513 = arith.addf %512, %511 : vector<16x128xf32>
    %514 = arith.divf %512, %513 : vector<16x128xf32>
    %515 = vector.broadcast %485 : vector<1x128xf32> to vector<16x128xf32>
    %516 = arith.mulf %515, %514 : vector<16x128xf32>
    %517 = vector.broadcast %488 : vector<1x128xf32> to vector<16x128xf32>
    %518 = arith.mulf %517, %477 : vector<16x128xf32>
    %519 = arith.addf %516, %518 : vector<16x128xf32>
    %520 = vector.broadcast %489 : vector<1x128xf32> to vector<16x128xf32>
    %521 = arith.addf %519, %520 : vector<16x128xf32>
    %522 = arith.subf %186, %505 : vector<16x128xf32>
    %523 = arith.mulf %522, %521 : vector<16x128xf32>
    %524 = arith.addf %523, %505 : vector<16x128xf32>
    %525 = vector.broadcast %156 : vector<1x128xf32> to vector<16x128xf32>
    %526 = arith.subf %524, %525 : vector<16x128xf32>
    %cst_157 = arith.constant 9.99999997E-7 : f32
    %527 = vector.broadcast %cst_157 : f32 to vector<1x128xf32>
    %528 = arith.addf %165, %527 : vector<1x128xf32>
    %529 = math.rsqrt %528 : vector<1x128xf32>
    %530 = vector.broadcast %529 : vector<1x128xf32> to vector<16x128xf32>
    %531 = arith.mulf %526, %530 : vector<16x128xf32>
    %532 = arith.subf %531, %170 : vector<16x128xf32>
    %533 = arith.mulf %532, %532 : vector<16x128xf32>
    %cst_158 = arith.constant dense<0.000000e+00> : vector<16xf32>
    %534 = vector.multi_reduction <add>, %533, %cst_158 [1] : vector<16x128xf32> to vector<16xf32>
    %535 = vector.shape_cast %534 : vector<16xf32> to vector<16x1xf32>
    %536 = math.sqrt %535 : vector<16x1xf32>
    %cst_159 = arith.constant 1.000000e-01 : f32
    %537 = vector.broadcast %cst_159 : f32 to vector<16x1xf32>
    %538 = arith.mulf %537, %536 : vector<16x1xf32>
    %539 = arith.addf %458, %538 : vector<16x1xf32>
    %c2_160 = arith.constant 2 : index
    %c0_161 = arith.constant 0 : index
    %c0_162 = arith.constant 0 : index
    %540 = vector.load %arg3[%c2_160, %c0_161, %c0_162] : memref<5x128x128xf32, #tpu.memory_space<vmem>>, vector<1x128x128xf32>
    %541 = vector.shape_cast %540 : vector<1x128x128xf32> to vector<128x128xf32>
    %cst_163 = arith.constant dense<0.000000e+00> : vector<16x128xf32>
    %542 = tpu.matmul %531, %541, %cst_163 {dimension_numbers = #tpu.dot_dimension_numbers<[1], [0], [0], [1], [0, 0, 1, 1], [], []>} : vector<16x128xf32>, vector<128x128xf32>, vector<16x128xf32> -> vector<16x128xf32>
    %cst_164 = arith.constant dense<0.000000e+00> : vector<128xf32>
    %543 = vector.multi_reduction <add>, %542, %cst_164 [0] : vector<16x128xf32> to vector<128xf32>
    %544 = vector.shape_cast %543 : vector<128xf32> to vector<1x128xf32>
    %cst_165 = arith.constant 1.600000e+01 : f32
    %545 = vector.broadcast %cst_165 : f32 to vector<1x128xf32>
    %546 = arith.divf %544, %545 : vector<1x128xf32>
    %547 = vector.broadcast %546 : vector<1x128xf32> to vector<16x128xf32>
    %548 = arith.subf %542, %547 : vector<16x128xf32>
    %549 = arith.mulf %548, %548 : vector<16x128xf32>
    %cst_166 = arith.constant dense<0.000000e+00> : vector<128xf32>
    %550 = vector.multi_reduction <add>, %549, %cst_166 [0] : vector<16x128xf32> to vector<128xf32>
    %551 = vector.shape_cast %550 : vector<128xf32> to vector<1x128xf32>
    %cst_167 = arith.constant 1.600000e+01 : f32
    %552 = vector.broadcast %cst_167 : f32 to vector<1x128xf32>
    %553 = arith.divf %551, %552 : vector<1x128xf32>
    %cst_168 = arith.constant 9.99999974E-6 : f32
    %554 = vector.broadcast %cst_168 : f32 to vector<1x128xf32>
    %555 = arith.addf %553, %554 : vector<1x128xf32>
    %556 = math.rsqrt %555 : vector<1x128xf32>
    %557 = vector.broadcast %556 : vector<1x128xf32> to vector<16x128xf32>
    %558 = arith.mulf %548, %557 : vector<16x128xf32>
    %c2_169 = arith.constant 2 : index
    %c0_170 = arith.constant 0 : index
    %c0_171 = arith.constant 0 : index
    %559 = vector.load %arg4[%c2_169, %c0_170, %c0_171] : memref<6x10x128xf32, #tpu.memory_space<vmem>>, vector<1x10x128xf32>
    %560 = vector.shape_cast %559 : vector<1x10x128xf32> to vector<10x128xf32>
    %561 = vector.extract_strided_slice %560 {offsets = [0, 0], sizes = [1, 128], strides = [1, 1]} : vector<10x128xf32> to vector<1x128xf32>
    %562 = vector.extract_strided_slice %560 {offsets = [1, 0], sizes = [1, 128], strides = [1, 1]} : vector<10x128xf32> to vector<1x128xf32>
    %563 = vector.extract_strided_slice %560 {offsets = [2, 0], sizes = [1, 128], strides = [1, 1]} : vector<10x128xf32> to vector<1x128xf32>
    %564 = vector.extract_strided_slice %560 {offsets = [3, 0], sizes = [1, 128], strides = [1, 1]} : vector<10x128xf32> to vector<1x128xf32>
    %565 = vector.extract_strided_slice %560 {offsets = [4, 0], sizes = [1, 128], strides = [1, 1]} : vector<10x128xf32> to vector<1x128xf32>
    %566 = vector.extract_strided_slice %560 {offsets = [5, 0], sizes = [1, 128], strides = [1, 1]} : vector<10x128xf32> to vector<1x128xf32>
    %567 = vector.extract_strided_slice %560 {offsets = [6, 0], sizes = [1, 128], strides = [1, 1]} : vector<10x128xf32> to vector<1x128xf32>
    %568 = vector.extract_strided_slice %560 {offsets = [7, 0], sizes = [1, 128], strides = [1, 1]} : vector<10x128xf32> to vector<1x128xf32>
    %569 = vector.extract_strided_slice %560 {offsets = [8, 0], sizes = [1, 128], strides = [1, 1]} : vector<10x128xf32> to vector<1x128xf32>
    %570 = vector.extract_strided_slice %560 {offsets = [9, 0], sizes = [1, 128], strides = [1, 1]} : vector<10x128xf32> to vector<1x128xf32>
    %571 = vector.broadcast %562 : vector<1x128xf32> to vector<16x128xf32>
    %572 = arith.mulf %571, %558 : vector<16x128xf32>
    %573 = vector.broadcast %563 : vector<1x128xf32> to vector<16x128xf32>
    %574 = arith.addf %572, %573 : vector<16x128xf32>
    %575 = arith.negf %574 : vector<16x128xf32>
    %576 = math.exp %575 : vector<16x128xf32>
    %cst_172 = arith.constant 1.000000e+00 : f32
    %577 = vector.broadcast %cst_172 : f32 to vector<16x128xf32>
    %578 = arith.addf %577, %576 : vector<16x128xf32>
    %579 = arith.divf %577, %578 : vector<16x128xf32>
    %580 = vector.broadcast %561 : vector<1x128xf32> to vector<16x128xf32>
    %581 = arith.mulf %580, %579 : vector<16x128xf32>
    %582 = vector.broadcast %564 : vector<1x128xf32> to vector<16x128xf32>
    %583 = arith.mulf %582, %558 : vector<16x128xf32>
    %584 = arith.addf %581, %583 : vector<16x128xf32>
    %585 = vector.broadcast %565 : vector<1x128xf32> to vector<16x128xf32>
    %586 = arith.addf %584, %585 : vector<16x128xf32>
    %587 = vector.broadcast %567 : vector<1x128xf32> to vector<16x128xf32>
    %588 = arith.mulf %587, %558 : vector<16x128xf32>
    %589 = vector.broadcast %568 : vector<1x128xf32> to vector<16x128xf32>
    %590 = arith.addf %588, %589 : vector<16x128xf32>
    %591 = arith.negf %590 : vector<16x128xf32>
    %592 = math.exp %591 : vector<16x128xf32>
    %cst_173 = arith.constant 1.000000e+00 : f32
    %593 = vector.broadcast %cst_173 : f32 to vector<16x128xf32>
    %594 = arith.addf %593, %592 : vector<16x128xf32>
    %595 = arith.divf %593, %594 : vector<16x128xf32>
    %596 = vector.broadcast %566 : vector<1x128xf32> to vector<16x128xf32>
    %597 = arith.mulf %596, %595 : vector<16x128xf32>
    %598 = vector.broadcast %569 : vector<1x128xf32> to vector<16x128xf32>
    %599 = arith.mulf %598, %558 : vector<16x128xf32>
    %600 = arith.addf %597, %599 : vector<16x128xf32>
    %601 = vector.broadcast %570 : vector<1x128xf32> to vector<16x128xf32>
    %602 = arith.addf %600, %601 : vector<16x128xf32>
    %603 = arith.subf %140, %586 : vector<16x128xf32>
    %604 = arith.mulf %603, %602 : vector<16x128xf32>
    %605 = arith.addf %604, %586 : vector<16x128xf32>
    %606 = vector.broadcast %110 : vector<1x128xf32> to vector<16x128xf32>
    %607 = arith.subf %605, %606 : vector<16x128xf32>
    %cst_174 = arith.constant 9.99999997E-7 : f32
    %608 = vector.broadcast %cst_174 : f32 to vector<1x128xf32>
    %609 = arith.addf %119, %608 : vector<1x128xf32>
    %610 = math.rsqrt %609 : vector<1x128xf32>
    %611 = vector.broadcast %610 : vector<1x128xf32> to vector<16x128xf32>
    %612 = arith.mulf %607, %611 : vector<16x128xf32>
    %613 = arith.subf %612, %124 : vector<16x128xf32>
    %614 = arith.mulf %613, %613 : vector<16x128xf32>
    %cst_175 = arith.constant dense<0.000000e+00> : vector<16xf32>
    %615 = vector.multi_reduction <add>, %614, %cst_175 [1] : vector<16x128xf32> to vector<16xf32>
    %616 = vector.shape_cast %615 : vector<16xf32> to vector<16x1xf32>
    %617 = math.sqrt %616 : vector<16x1xf32>
    %cst_176 = arith.constant 1.000000e-01 : f32
    %618 = vector.broadcast %cst_176 : f32 to vector<16x1xf32>
    %619 = arith.mulf %618, %617 : vector<16x1xf32>
    %620 = arith.addf %539, %619 : vector<16x1xf32>
    %c1_177 = arith.constant 1 : index
    %c0_178 = arith.constant 0 : index
    %c0_179 = arith.constant 0 : index
    %621 = vector.load %arg3[%c1_177, %c0_178, %c0_179] : memref<5x128x128xf32, #tpu.memory_space<vmem>>, vector<1x128x128xf32>
    %622 = vector.shape_cast %621 : vector<1x128x128xf32> to vector<128x128xf32>
    %cst_180 = arith.constant dense<0.000000e+00> : vector<16x128xf32>
    %623 = tpu.matmul %612, %622, %cst_180 {dimension_numbers = #tpu.dot_dimension_numbers<[1], [0], [0], [1], [0, 0, 1, 1], [], []>} : vector<16x128xf32>, vector<128x128xf32>, vector<16x128xf32> -> vector<16x128xf32>
    %cst_181 = arith.constant dense<0.000000e+00> : vector<128xf32>
    %624 = vector.multi_reduction <add>, %623, %cst_181 [0] : vector<16x128xf32> to vector<128xf32>
    %625 = vector.shape_cast %624 : vector<128xf32> to vector<1x128xf32>
    %cst_182 = arith.constant 1.600000e+01 : f32
    %626 = vector.broadcast %cst_182 : f32 to vector<1x128xf32>
    %627 = arith.divf %625, %626 : vector<1x128xf32>
    %628 = vector.broadcast %627 : vector<1x128xf32> to vector<16x128xf32>
    %629 = arith.subf %623, %628 : vector<16x128xf32>
    %630 = arith.mulf %629, %629 : vector<16x128xf32>
    %cst_183 = arith.constant dense<0.000000e+00> : vector<128xf32>
    %631 = vector.multi_reduction <add>, %630, %cst_183 [0] : vector<16x128xf32> to vector<128xf32>
    %632 = vector.shape_cast %631 : vector<128xf32> to vector<1x128xf32>
    %cst_184 = arith.constant 1.600000e+01 : f32
    %633 = vector.broadcast %cst_184 : f32 to vector<1x128xf32>
    %634 = arith.divf %632, %633 : vector<1x128xf32>
    %cst_185 = arith.constant 9.99999974E-6 : f32
    %635 = vector.broadcast %cst_185 : f32 to vector<1x128xf32>
    %636 = arith.addf %634, %635 : vector<1x128xf32>
    %637 = math.rsqrt %636 : vector<1x128xf32>
    %638 = vector.broadcast %637 : vector<1x128xf32> to vector<16x128xf32>
    %639 = arith.mulf %629, %638 : vector<16x128xf32>
    %c1_186 = arith.constant 1 : index
    %c0_187 = arith.constant 0 : index
    %c0_188 = arith.constant 0 : index
    %640 = vector.load %arg4[%c1_186, %c0_187, %c0_188] : memref<6x10x128xf32, #tpu.memory_space<vmem>>, vector<1x10x128xf32>
    %641 = vector.shape_cast %640 : vector<1x10x128xf32> to vector<10x128xf32>
    %642 = vector.extract_strided_slice %641 {offsets = [0, 0], sizes = [1, 128], strides = [1, 1]} : vector<10x128xf32> to vector<1x128xf32>
    %643 = vector.extract_strided_slice %641 {offsets = [1, 0], sizes = [1, 128], strides = [1, 1]} : vector<10x128xf32> to vector<1x128xf32>
    %644 = vector.extract_strided_slice %641 {offsets = [2, 0], sizes = [1, 128], strides = [1, 1]} : vector<10x128xf32> to vector<1x128xf32>
    %645 = vector.extract_strided_slice %641 {offsets = [3, 0], sizes = [1, 128], strides = [1, 1]} : vector<10x128xf32> to vector<1x128xf32>
    %646 = vector.extract_strided_slice %641 {offsets = [4, 0], sizes = [1, 128], strides = [1, 1]} : vector<10x128xf32> to vector<1x128xf32>
    %647 = vector.extract_strided_slice %641 {offsets = [5, 0], sizes = [1, 128], strides = [1, 1]} : vector<10x128xf32> to vector<1x128xf32>
    %648 = vector.extract_strided_slice %641 {offsets = [6, 0], sizes = [1, 128], strides = [1, 1]} : vector<10x128xf32> to vector<1x128xf32>
    %649 = vector.extract_strided_slice %641 {offsets = [7, 0], sizes = [1, 128], strides = [1, 1]} : vector<10x128xf32> to vector<1x128xf32>
    %650 = vector.extract_strided_slice %641 {offsets = [8, 0], sizes = [1, 128], strides = [1, 1]} : vector<10x128xf32> to vector<1x128xf32>
    %651 = vector.extract_strided_slice %641 {offsets = [9, 0], sizes = [1, 128], strides = [1, 1]} : vector<10x128xf32> to vector<1x128xf32>
    %652 = vector.broadcast %643 : vector<1x128xf32> to vector<16x128xf32>
    %653 = arith.mulf %652, %639 : vector<16x128xf32>
    %654 = vector.broadcast %644 : vector<1x128xf32> to vector<16x128xf32>
    %655 = arith.addf %653, %654 : vector<16x128xf32>
    %656 = arith.negf %655 : vector<16x128xf32>
    %657 = math.exp %656 : vector<16x128xf32>
    %cst_189 = arith.constant 1.000000e+00 : f32
    %658 = vector.broadcast %cst_189 : f32 to vector<16x128xf32>
    %659 = arith.addf %658, %657 : vector<16x128xf32>
    %660 = arith.divf %658, %659 : vector<16x128xf32>
    %661 = vector.broadcast %642 : vector<1x128xf32> to vector<16x128xf32>
    %662 = arith.mulf %661, %660 : vector<16x128xf32>
    %663 = vector.broadcast %645 : vector<1x128xf32> to vector<16x128xf32>
    %664 = arith.mulf %663, %639 : vector<16x128xf32>
    %665 = arith.addf %662, %664 : vector<16x128xf32>
    %666 = vector.broadcast %646 : vector<1x128xf32> to vector<16x128xf32>
    %667 = arith.addf %665, %666 : vector<16x128xf32>
    %668 = vector.broadcast %648 : vector<1x128xf32> to vector<16x128xf32>
    %669 = arith.mulf %668, %639 : vector<16x128xf32>
    %670 = vector.broadcast %649 : vector<1x128xf32> to vector<16x128xf32>
    %671 = arith.addf %669, %670 : vector<16x128xf32>
    %672 = arith.negf %671 : vector<16x128xf32>
    %673 = math.exp %672 : vector<16x128xf32>
    %cst_190 = arith.constant 1.000000e+00 : f32
    %674 = vector.broadcast %cst_190 : f32 to vector<16x128xf32>
    %675 = arith.addf %674, %673 : vector<16x128xf32>
    %676 = arith.divf %674, %675 : vector<16x128xf32>
    %677 = vector.broadcast %647 : vector<1x128xf32> to vector<16x128xf32>
    %678 = arith.mulf %677, %676 : vector<16x128xf32>
    %679 = vector.broadcast %650 : vector<1x128xf32> to vector<16x128xf32>
    %680 = arith.mulf %679, %639 : vector<16x128xf32>
    %681 = arith.addf %678, %680 : vector<16x128xf32>
    %682 = vector.broadcast %651 : vector<1x128xf32> to vector<16x128xf32>
    %683 = arith.addf %681, %682 : vector<16x128xf32>
    %684 = arith.subf %94, %667 : vector<16x128xf32>
    %685 = arith.mulf %684, %683 : vector<16x128xf32>
    %686 = arith.addf %685, %667 : vector<16x128xf32>
    %687 = vector.broadcast %64 : vector<1x128xf32> to vector<16x128xf32>
    %688 = arith.subf %686, %687 : vector<16x128xf32>
    %cst_191 = arith.constant 9.99999997E-7 : f32
    %689 = vector.broadcast %cst_191 : f32 to vector<1x128xf32>
    %690 = arith.addf %73, %689 : vector<1x128xf32>
    %691 = math.rsqrt %690 : vector<1x128xf32>
    %692 = vector.broadcast %691 : vector<1x128xf32> to vector<16x128xf32>
    %693 = arith.mulf %688, %692 : vector<16x128xf32>
    %694 = arith.subf %693, %78 : vector<16x128xf32>
    %695 = arith.mulf %694, %694 : vector<16x128xf32>
    %cst_192 = arith.constant dense<0.000000e+00> : vector<16xf32>
    %696 = vector.multi_reduction <add>, %695, %cst_192 [1] : vector<16x128xf32> to vector<16xf32>
    %697 = vector.shape_cast %696 : vector<16xf32> to vector<16x1xf32>
    %698 = math.sqrt %697 : vector<16x1xf32>
    %cst_193 = arith.constant 1.000000e-01 : f32
    %699 = vector.broadcast %cst_193 : f32 to vector<16x1xf32>
    %700 = arith.mulf %699, %698 : vector<16x1xf32>
    %701 = arith.addf %620, %700 : vector<16x1xf32>
    %c0_194 = arith.constant 0 : index
    %c0_195 = arith.constant 0 : index
    %c0_196 = arith.constant 0 : index
    %702 = vector.load %arg3[%c0_194, %c0_195, %c0_196] : memref<5x128x128xf32, #tpu.memory_space<vmem>>, vector<1x128x128xf32>
    %703 = vector.shape_cast %702 : vector<1x128x128xf32> to vector<128x128xf32>
    %cst_197 = arith.constant dense<0.000000e+00> : vector<16x128xf32>
    %704 = tpu.matmul %693, %703, %cst_197 {dimension_numbers = #tpu.dot_dimension_numbers<[1], [0], [0], [1], [0, 0, 1, 1], [], []>} : vector<16x128xf32>, vector<128x128xf32>, vector<16x128xf32> -> vector<16x128xf32>
    %cst_198 = arith.constant dense<0.000000e+00> : vector<128xf32>
    %705 = vector.multi_reduction <add>, %704, %cst_198 [0] : vector<16x128xf32> to vector<128xf32>
    %706 = vector.shape_cast %705 : vector<128xf32> to vector<1x128xf32>
    %cst_199 = arith.constant 1.600000e+01 : f32
    %707 = vector.broadcast %cst_199 : f32 to vector<1x128xf32>
    %708 = arith.divf %706, %707 : vector<1x128xf32>
    %709 = vector.broadcast %708 : vector<1x128xf32> to vector<16x128xf32>
    %710 = arith.subf %704, %709 : vector<16x128xf32>
    %711 = arith.mulf %710, %710 : vector<16x128xf32>
    %cst_200 = arith.constant dense<0.000000e+00> : vector<128xf32>
    %712 = vector.multi_reduction <add>, %711, %cst_200 [0] : vector<16x128xf32> to vector<128xf32>
    %713 = vector.shape_cast %712 : vector<128xf32> to vector<1x128xf32>
    %cst_201 = arith.constant 1.600000e+01 : f32
    %714 = vector.broadcast %cst_201 : f32 to vector<1x128xf32>
    %715 = arith.divf %713, %714 : vector<1x128xf32>
    %cst_202 = arith.constant 9.99999974E-6 : f32
    %716 = vector.broadcast %cst_202 : f32 to vector<1x128xf32>
    %717 = arith.addf %715, %716 : vector<1x128xf32>
    %718 = math.rsqrt %717 : vector<1x128xf32>
    %719 = vector.broadcast %718 : vector<1x128xf32> to vector<16x128xf32>
    %720 = arith.mulf %710, %719 : vector<16x128xf32>
    %c0_203 = arith.constant 0 : index
    %c0_204 = arith.constant 0 : index
    %c0_205 = arith.constant 0 : index
    %721 = vector.load %arg4[%c0_203, %c0_204, %c0_205] : memref<6x10x128xf32, #tpu.memory_space<vmem>>, vector<1x10x128xf32>
    %722 = vector.shape_cast %721 : vector<1x10x128xf32> to vector<10x128xf32>
    %723 = vector.extract_strided_slice %722 {offsets = [0, 0], sizes = [1, 128], strides = [1, 1]} : vector<10x128xf32> to vector<1x128xf32>
    %724 = vector.extract_strided_slice %722 {offsets = [1, 0], sizes = [1, 128], strides = [1, 1]} : vector<10x128xf32> to vector<1x128xf32>
    %725 = vector.extract_strided_slice %722 {offsets = [2, 0], sizes = [1, 128], strides = [1, 1]} : vector<10x128xf32> to vector<1x128xf32>
    %726 = vector.extract_strided_slice %722 {offsets = [3, 0], sizes = [1, 128], strides = [1, 1]} : vector<10x128xf32> to vector<1x128xf32>
    %727 = vector.extract_strided_slice %722 {offsets = [4, 0], sizes = [1, 128], strides = [1, 1]} : vector<10x128xf32> to vector<1x128xf32>
    %728 = vector.extract_strided_slice %722 {offsets = [5, 0], sizes = [1, 128], strides = [1, 1]} : vector<10x128xf32> to vector<1x128xf32>
    %729 = vector.extract_strided_slice %722 {offsets = [6, 0], sizes = [1, 128], strides = [1, 1]} : vector<10x128xf32> to vector<1x128xf32>
    %730 = vector.extract_strided_slice %722 {offsets = [7, 0], sizes = [1, 128], strides = [1, 1]} : vector<10x128xf32> to vector<1x128xf32>
    %731 = vector.extract_strided_slice %722 {offsets = [8, 0], sizes = [1, 128], strides = [1, 1]} : vector<10x128xf32> to vector<1x128xf32>
    %732 = vector.extract_strided_slice %722 {offsets = [9, 0], sizes = [1, 128], strides = [1, 1]} : vector<10x128xf32> to vector<1x128xf32>
    %733 = vector.broadcast %724 : vector<1x128xf32> to vector<16x128xf32>
    %734 = arith.mulf %733, %720 : vector<16x128xf32>
    %735 = vector.broadcast %725 : vector<1x128xf32> to vector<16x128xf32>
    %736 = arith.addf %734, %735 : vector<16x128xf32>
    %737 = arith.negf %736 : vector<16x128xf32>
    %738 = math.exp %737 : vector<16x128xf32>
    %cst_206 = arith.constant 1.000000e+00 : f32
    %739 = vector.broadcast %cst_206 : f32 to vector<16x128xf32>
    %740 = arith.addf %739, %738 : vector<16x128xf32>
    %741 = arith.divf %739, %740 : vector<16x128xf32>
    %742 = vector.broadcast %723 : vector<1x128xf32> to vector<16x128xf32>
    %743 = arith.mulf %742, %741 : vector<16x128xf32>
    %744 = vector.broadcast %726 : vector<1x128xf32> to vector<16x128xf32>
    %745 = arith.mulf %744, %720 : vector<16x128xf32>
    %746 = arith.addf %743, %745 : vector<16x128xf32>
    %747 = vector.broadcast %727 : vector<1x128xf32> to vector<16x128xf32>
    %748 = arith.addf %746, %747 : vector<16x128xf32>
    %749 = vector.broadcast %729 : vector<1x128xf32> to vector<16x128xf32>
    %750 = arith.mulf %749, %720 : vector<16x128xf32>
    %751 = vector.broadcast %730 : vector<1x128xf32> to vector<16x128xf32>
    %752 = arith.addf %750, %751 : vector<16x128xf32>
    %753 = arith.negf %752 : vector<16x128xf32>
    %754 = math.exp %753 : vector<16x128xf32>
    %cst_207 = arith.constant 1.000000e+00 : f32
    %755 = vector.broadcast %cst_207 : f32 to vector<16x128xf32>
    %756 = arith.addf %755, %754 : vector<16x128xf32>
    %757 = arith.divf %755, %756 : vector<16x128xf32>
    %758 = vector.broadcast %728 : vector<1x128xf32> to vector<16x128xf32>
    %759 = arith.mulf %758, %757 : vector<16x128xf32>
    %760 = vector.broadcast %731 : vector<1x128xf32> to vector<16x128xf32>
    %761 = arith.mulf %760, %720 : vector<16x128xf32>
    %762 = arith.addf %759, %761 : vector<16x128xf32>
    %763 = vector.broadcast %732 : vector<1x128xf32> to vector<16x128xf32>
    %764 = arith.addf %762, %763 : vector<16x128xf32>
    %765 = arith.subf %48, %748 : vector<16x128xf32>
    %766 = arith.mulf %765, %764 : vector<16x128xf32>
    %767 = arith.addf %766, %748 : vector<16x128xf32>
    %768 = vector.broadcast %18 : vector<1x128xf32> to vector<16x128xf32>
    %769 = arith.subf %767, %768 : vector<16x128xf32>
    %cst_208 = arith.constant 9.99999997E-7 : f32
    %770 = vector.broadcast %cst_208 : f32 to vector<1x128xf32>
    %771 = arith.addf %27, %770 : vector<1x128xf32>
    %772 = math.rsqrt %771 : vector<1x128xf32>
    %773 = vector.broadcast %772 : vector<1x128xf32> to vector<16x128xf32>
    %774 = arith.mulf %769, %773 : vector<16x128xf32>
    %775 = arith.subf %774, %32 : vector<16x128xf32>
    %776 = arith.mulf %775, %775 : vector<16x128xf32>
    %cst_209 = arith.constant dense<0.000000e+00> : vector<16xf32>
    %777 = vector.multi_reduction <add>, %776, %cst_209 [1] : vector<16x128xf32> to vector<16xf32>
    %778 = vector.shape_cast %777 : vector<16xf32> to vector<16x1xf32>
    %779 = math.sqrt %778 : vector<16x1xf32>
    %cst_210 = arith.constant 1.000000e+00 : f32
    %780 = vector.broadcast %cst_210 : f32 to vector<16x1xf32>
    %781 = arith.mulf %780, %779 : vector<16x1xf32>
    %782 = arith.addf %701, %781 : vector<16x1xf32>
    %cst_211 = arith.constant dense<0.000000e+00> : vector<1xf32>
    %783 = vector.multi_reduction <add>, %782, %cst_211 [0] : vector<16x1xf32> to vector<1xf32>
    %784 = vector.shape_cast %783 : vector<1xf32> to vector<1x1xf32>
    %785 = vector.shape_cast %784 : vector<1x1xf32> to vector<1x1xf32>
    %786 = vector.broadcast %785 : vector<1x1xf32> to vector<1x128xf32>
    %c0_212 = arith.constant 0 : index
    %c0_213 = arith.constant 0 : index
    %787 = vector.load %arg6[%c0_212, %c0_213] : memref<1x128xf32, #tpu.memory_space<vmem>>, vector<1x128xf32>
    tpu.vector_store %arg6[%c0_212, %c0_213], %786 {strides = array<i32>} : memref<1x128xf32, #tpu.memory_space<vmem>>, vector<1x128xf32>,
    return
  }
}

</mosaic_0001>

<llo_original>
// kernel: dae_forward.1
$region0: #{dae_forward.1}
  #allocation0 [shape = 'u32[]', space=smem, size = 0x4, offset = 0x4, fixed_abs, tag = 'smem constant byte address 0x4 - core index']
  #allocation1 [shape = 'u32[144,128]{1,0:T(1,128)}', space=vmem, size = 0x12000, scoped, tag = 'internal scratch']
  %s0 = inlined_call_operand.vmem [shape: f32[16,128], index: 0, kind: input, shape index: {}]
  %s1 = inlined_call_operand.vmem [shape: f32[16,896], index: 1, kind: input, shape index: {}]
  %s2 = inlined_call_operand.hbm [shape: f32[6,128,128], index: 2, kind: input, shape index: {}]
  %s3 = inlined_call_operand.hbm [shape: f32[5,128,128], index: 3, kind: input, shape index: {}]
  %s4 = inlined_call_operand.vmem [shape: f32[6,10,128], index: 4, kind: input, shape index: {}]
  %s5 = inlined_call_operand.vmem [shape: f32[32,128], index: 5, kind: output, shape index: {0}]
  %s6 = inlined_call_operand.hbm [shape: f32[1,128], index: 6, kind: output, shape index: {1}]
  %7 = xla_tuple %s5, %s6
  %s8 = sld [smem:[#allocation0]]
  $region46: #{dae_forward.1} parent=0
    _
  %s10 = ssub.s32 1, %s8
  %s11 = scalar_select 0, %s10, %s8
  $region1: #{dae_forward.1} parent=0
    #allocation2 [shape = 'u8[393216]{0}', space=vmem, size = 0x60000, scoped, tag = 'input window, operand 2, single buffered']
    #allocation3 [shape = 's32[1]{0}', space=sflag, size = 0x4, scoped, tag = 'scoped memory for dae_forward.1']
    #allocation4 [shape = 's32[1]{0}', space=sflag, size = 0x4, scoped, tag = 'scoped memory for dae_forward.1']
    #allocation5 [shape = 'u8[327680]{0}', space=vmem, size = 0x50000, scoped, tag = 'input window, operand 3, single buffered']
    #allocation6 [shape = 's32[1]{0}', space=sflag, size = 0x4, scoped, tag = 'scoped memory for dae_forward.1']
    #allocation7 [shape = 'u8[512]{0}', space=vmem, size = 0x400, scoped, tag = 'output window, operand 1, single buffered']
    %12 = vsyncpa [#allocation3], 0
    %13 = vsyncpa [#allocation6], 0
    %14 = vsyncpa [#allocation4], 0
    // Predicated region
    $region2: #{dae_forward.1} parent=1 // pred_check
      _
    $region3: #{dae_forward.1} parent=1 // pred_check_branch
      %16 = sbr.rel (0) target = $region5
    $region4: #{dae_forward.1} parent=1 // pred_region
      _
    $region5: #{dae_forward.1} parent=1 // pred_fallthru
      _
    // Predicated region
    $region6: #{dae_forward.1} parent=1 // pred_check
      _
    $region7: #{dae_forward.1} parent=1 // pred_check_branch
      %18 = sbr.rel (0) target = $region9
    $region8: #{dae_forward.1} parent=1 // pred_region
      _
    $region9: #{dae_forward.1} parent=1 // pred_fallthru
      _
    // Predicated region
    $region10: #{dae_forward.1} parent=1 // pred_check
      _
    $region11: #{dae_forward.1} parent=1 // pred_check_branch
      %20 = sbr.rel (0) target = $region13
    $region12: #{dae_forward.1} parent=1 // pred_region
      %s22 = ssub.s32 12288, 12288
      %23 = vsyncadd [#allocation3], %s22
      %s24 = sshll.u32 [#allocation2], 4
      %s25 = int_to_ptr.vmem [resolvable:$true] %s24
      %30 = dma.hbm_to_vmem [thread:$0]  %s2, 12288, %s25, [#allocation3], 128, 128, 8
    $region13: #{dae_forward.1} parent=1 // pred_fallthru
      _
    // Predicated region
    $region14: #{dae_forward.1} parent=1 // pred_check
      _
    $region15: #{dae_forward.1} parent=1 // pred_check_branch
      %32 = sbr.rel (0) target = $region17
    $region16: #{dae_forward.1} parent=1 // pred_region
      %s34 = ssub.s32 10240, 10240
      %35 = vsyncadd [#allocation6], %s34
      %s36 = sshll.u32 [#allocation5], 4
      %s37 = int_to_ptr.vmem [resolvable:$true] %s36
      %42 = dma.hbm_to_vmem [thread:$0]  %s3, 10240, %s37, [#allocation6], 128, 128, 8
    $region17: #{dae_forward.1} parent=1 // pred_fallthru
      _
    // Predicated region
    $region18: #{dae_forward.1} parent=1 // pred_check
      _
    $region19: #{dae_forward.1} parent=1 // pred_check_branch
      %44 = sbr.rel (0) target = $region21
    $region20: #{dae_forward.1} parent=1 // pred_region
      _
    $region21: #{dae_forward.1} parent=1 // pred_fallthru
      _
    // Predicated region
    $region22: #{dae_forward.1} parent=1 // pred_check
      _
    $region23: #{dae_forward.1} parent=1 // pred_check_branch
      %46 = sbr.rel (0) target = $region25
    $region24: #{dae_forward.1} parent=1 // pred_region
      %47 = dma.done [#allocation3], 12288
    $region25: #{dae_forward.1} parent=1 // pred_fallthru
      _
    // Predicated region
    $region26: #{dae_forward.1} parent=1 // pred_check
      _
    $region27: #{dae_forward.1} parent=1 // pred_check_branch
      %49 = sbr.rel (0) target = $region29
    $region28: #{dae_forward.1} parent=1 // pred_region
      %50 = dma.done [#allocation6], 10240
    $region29: #{dae_forward.1} parent=1 // pred_fallthru
      _
    %v51 = vld [vmem:[%s0] sm:$0xff]
    %v52 = vld [vmem:[%s0 + $0x8] sm:$0xff]
    %v53 = vld [vmem:[%s1] sm:$0xff]
    %v54 = vld [vmem:[%s1 + $0x38] sm:$0xff]
    %v55 = vmul.f32 %v53, 0.2
    %v56 = vmul.f32 %v54, 0.2
    %v57 = vadd.f32 %v51, %v55
    %v58 = vadd.f32 %v52, %v56
    %v59 = vld [vmem:[#allocation2] sm:$0xff]
    %v60 = vld [vmem:[#allocation2 + $0x8] sm:$0xff]
    %v61 = vld [vmem:[#allocation2 + $0x10] sm:$0xff]
    %v62 = vld [vmem:[#allocation2 + $0x18] sm:$0xff]
    %v63 = vld [vmem:[#allocation2 + $0x20] sm:$0xff]
    %v64 = vld [vmem:[#allocation2 + $0x28] sm:$0xff]
    %v65 = vld [vmem:[#allocation2 + $0x30] sm:$0xff]
    %v66 = vld [vmem:[#allocation2 + $0x38] sm:$0xff]
    %v67 = vld [vmem:[#allocation2 + $0x40] sm:$0xff]
    %v68 = vld [vmem:[#allocation2 + $0x48] sm:$0xff]
    %v69 = vld [vmem:[#allocation2 + $0x50] sm:$0xff]
    %v70 = vld [vmem:[#allocation2 + $0x58] sm:$0xff]
    %v71 = vld [vmem:[#allocation2 + $0x60] sm:$0xff]
    %v72 = vld [vmem:[#allocation2 + $0x68] sm:$0xff]
    %v73 = vld [vmem:[#allocation2 + $0x70] sm:$0xff]
    %v74 = vld [vmem:[#allocation2 + $0x78] sm:$0xff]
    %75 = vmatprep.subr.mxu0 0.0
    %76 = vmatpush1.msra.mxu0 %v59
    %77 = vmatprep.subr.mxu0 0.0
    %78 = vmatpush1.msra.mxu0 %v60
    %79 = vmatprep.subr.mxu0 0.0
    %80 = vmatpush1.msra.mxu0 %v61
    %81 = vmatprep.subr.mxu0 0.0
    %82 = vmatpush1.msra.mxu0 %v62
    %83 = vmatprep.subr.mxu0 0.0
    %84 = vmatpush1.msra.mxu0 %v63
    %85 = vmatprep.subr.mxu0 0.0
    %86 = vmatpush1.msra.mxu0 %v64
    %87 = vmatprep.subr.mxu0 0.0
    %88 = vmatpush1.msra.mxu0 %v65
    %89 = vmatprep.subr.mxu0 0.0
    %90 = vmatpush1.msra.mxu0 %v66
    %91 = vmatprep.subr.mxu0 0.0
    %92 = vmatpush1.msra.mxu0 %v67
    %93 = vmatprep.subr.mxu0 0.0
    %94 = vmatpush1.msra.mxu0 %v68
    %95 = vmatprep.subr.mxu0 0.0
    %96 = vmatpush1.msra.mxu0 %v69
    %97 = vmatprep.subr.mxu0 0.0
    %98 = vmatpush1.msra.mxu0 %v70
    %99 = vmatprep.subr.mxu0 0.0
    %100 = vmatpush1.msra.mxu0 %v71
    %101 = vmatprep.subr.mxu0 0.0
    %102 = vmatpush1.msra.mxu0 %v72
    %103 = vmatprep.subr.mxu0 0.0
    %104 = vmatpush1.msra.mxu0 %v73
    %105 = vmatprep.subr.mxu0 0.0
    %106 = vmatpush1.msra.mxu0 %v74
    %107 = vmatprep.subr.mxu0 0.0
    %108 = vmatpush1.msra.mxu0 0.0
    %109 = vmatprep.subr.mxu0 0.0
    %110 = vmatpush1.msra.mxu0 0.0
    %111 = vmatprep.subr.mxu0 0.0
    %112 = vmatpush1.msra.mxu0 0.0
    %113 = vmatprep.subr.mxu0 0.0
    %114 = vmatpush1.msra.mxu0 0.0
    %115 = vmatprep.subr.mxu0 0.0
    %116 = vmatpush1.msra.mxu0 0.0
    %117 = vmatprep.subr.mxu0 0.0
    %118 = vmatpush1.msra.mxu0 0.0
    %119 = vmatprep.subr.mxu0 0.0
    %120 = vmatpush1.msra.mxu0 0.0
    %121 = vmatprep.subr.mxu0 0.0
    %122 = vmatpush1.msra.mxu0 0.0
    %123 = vmatprep.subr.mxu0 0.0
    %124 = vmatpush1.msra.mxu0 0.0
    %125 = vmatprep.subr.mxu0 0.0
    %126 = vmatpush1.msra.mxu0 0.0
    %127 = vmatprep.subr.mxu0 0.0
    %128 = vmatpush1.msra.mxu0 0.0
    %129 = vmatprep.subr.mxu0 0.0
    %130 = vmatpush1.msra.mxu0 0.0
    %131 = vmatprep.subr.mxu0 0.0
    %132 = vmatpush1.msra.mxu0 0.0
    %133 = vmatprep.subr.mxu0 0.0
    %134 = vmatpush1.msra.mxu0 0.0
    %135 = vmatprep.subr.mxu0 0.0
    %136 = vmatpush1.msra.mxu0 0.0
    %137 = vmatprep.subr.mxu0 0.0
    %138 = vmatpush1.msra.mxu0 0.0
    %139 = vmatprep.mubr.f32.mxu0 0.0
    %140 = vmatmul.mubr.f32.gmra.mrb[0].mxu0 %v51
    %v141 = vpop.f32.mrb[0].mxu0
    %v142 = vadd.f32 0.0, %v141
    %v143 = vpop.f32.mrb[0].mxu0
    %144 = vmatprep.mubr.f32.mxu0 0.0
    %145 = vmatmul.mubr.f32.gmra.mrb[0].mxu0 %v52
    %v146 = vpop.f32.mrb[0].mxu0
    %v147 = vadd.f32 0.0, %v146
    %v148 = vpop.f32.mrb[0].mxu0
    %149 = vmatprep.mubr.f32.mxu0 0.0
    %150 = vmatmul.mubr.f32.gmra.mrb[0].mxu0 %v57
    %v151 = vpop.f32.mrb[0].mxu0
    %v152 = vadd.f32 0.0, %v151
    %v153 = vpop.f32.mrb[0].mxu0
    %154 = vmatprep.mubr.f32.mxu0 0.0
    %155 = vmatmul.mubr.f32.gmra.mrb[0].mxu0 %v58
    %v156 = vpop.f32.mrb[0].mxu0
    %v157 = vadd.f32 0.0, %v156
    %v158 = vpop.f32.mrb[0].mxu0
    %159 = vdwg.mxu0
    %v160 = vld [vmem:[%s1 + $0x8] sm:$0xff]
    %v161 = vld [vmem:[%s1 + $0x40] sm:$0xff]
    %v162 = vmul.f32 %v160, 0.2
    %v163 = vmul.f32 %v161, 0.2
    %v164 = vadd.f32 %v152, %v162
    %v165 = vadd.f32 %v157, %v163
    %v166 = vadd.f32 %v142, %v147
    %v167 = vrot.slane %v166, 4
    %v168 = vadd.f32 %v166, %v167
    %v169 = vrot.slane %v168, 2
    %v170 = vadd.f32 %v168, %v169
    %v171 = vrot.slane %v170, 1
    %v172 = vadd.f32 %v170, %v171
    %v173 = vrcp.pop 16.0
    %v174 = vmul.f32 %v172, %v173
    %v175 = vsub.f32 %v142, %v174
    %v176 = vsub.f32 %v147, %v174
    %v177 = vmul.f32 %v175, %v175
    %v178 = vmul.f32 %v176, %v176
    %v179 = vadd.f32 %v177, %v178
    %v180 = vrot.slane %v179, 4
    %v181 = vadd.f32 %v179, %v180
    %v182 = vrot.slane %v181, 2
    %v183 = vadd.f32 %v181, %v182
    %v184 = vrot.slane %v183, 1
    %v185 = vadd.f32 %v183, %v184
    %v186 = vmul.f32 %v185, %v173
    %v187 = vmul.f32 %v186, 1.0666667
    %v188 = vadd.f32 %v186, 1e-05
    %v189 = vrsqrt.pop %v188
    %v190 = vmul.f32 %v175, %v189
    %v191 = vmul.f32 %v176, %v189
    %v192 = vadd.f32 %v164, %v165
    %v193 = vrot.slane %v192, 4
    %v194 = vadd.f32 %v192, %v193
    %v195 = vrot.slane %v194, 2
    %v196 = vadd.f32 %v194, %v195
    %v197 = vrot.slane %v196, 1
    %v198 = vadd.f32 %v196, %v197
    %v199 = vmul.f32 %v198, %v173
    %v200 = vsub.f32 %v164, %v199
    %v201 = vsub.f32 %v165, %v199
    %v202 = vmul.f32 %v200, %v200
    %v203 = vmul.f32 %v201, %v201
    %v204 = vadd.f32 %v202, %v203
    %v205 = vrot.slane %v204, 4
    %v206 = vadd.f32 %v204, %v205
    %v207 = vrot.slane %v206, 2
    %v208 = vadd.f32 %v206, %v207
    %v209 = vrot.slane %v208, 1
    %v210 = vadd.f32 %v208, %v209
    %v211 = vmul.f32 %v210, %v173
    %v212 = vadd.f32 %v211, 1e-05
    %v213 = vrsqrt.pop %v212
    %v214 = vmul.f32 %v200, %v213
    %v215 = vmul.f32 %v201, %v213
    %v216 = vmax.f32 %v190, 0.0
    %v217 = vmax.f32 %v191, 0.0
    %v218 = vmax.f32 %v214, 0.0
    %v219 = vmax.f32 %v215, 0.0
    %s220 = scalar_lea.vmem [#allocation2], 128
    %v221 = vld [vmem:[%s220] sm:$0xff]
    %v222 = vld [vmem:[%s220 + $0x8] sm:$0xff]
    %v223 = vld [vmem:[%s220 + $0x10] sm:$0xff]
    %v224 = vld [vmem:[%s220 + $0x18] sm:$0xff]
    %v225 = vld [vmem:[%s220 + $0x20] sm:$0xff]
    %v226 = vld [vmem:[%s220 + $0x28] sm:$0xff]
    %v227 = vld [vmem:[%s220 + $0x30] sm:$0xff]
    %v228 = vld [vmem:[%s220 + $0x38] sm:$0xff]
    %v229 = vld [vmem:[%s220 + $0x40] sm:$0xff]
    %v230 = vld [vmem:[%s220 + $0x48] sm:$0xff]
    %v231 = vld [vmem:[%s220 + $0x50] sm:$0xff]
    %v232 = vld [vmem:[%s220 + $0x58] sm:$0xff]
    %v233 = vld [vmem:[%s220 + $0x60] sm:$0xff]
    %v234 = vld [vmem:[%s220 + $0x68] sm:$0xff]
    %v235 = vld [vmem:[%s220 + $0x70] sm:$0xff]
    %v236 = vld [vmem:[%s220 + $0x78] sm:$0xff]
    %237 = vmatprep.subr.mxu0 0.0
    %238 = vmatpush1.msra.mxu0 %v221
    %239 = vmatprep.subr.mxu0 0.0
    %240 = vmatpush1.msra.mxu0 %v222
    %241 = vmatprep.subr.mxu0 0.0
    %242 = vmatpush1.msra.mxu0 %v223
    %243 = vmatprep.subr.mxu0 0.0
    %244 = vmatpush1.msra.mxu0 %v224
    %245 = vmatprep.subr.mxu0 0.0
    %246 = vmatpush1.msra.mxu0 %v225
    %247 = vmatprep.subr.mxu0 0.0
    %248 = vmatpush1.msra.mxu0 %v226
    %249 = vmatprep.subr.mxu0 0.0
    %250 = vmatpush1.msra.mxu0 %v227
    %251 = vmatprep.subr.mxu0 0.0
    %252 = vmatpush1.msra.mxu0 %v228
    %253 = vmatprep.subr.mxu0 0.0
    %254 = vmatpush1.msra.mxu0 %v229
    %255 = vmatprep.subr.mxu0 0.0
    %256 = vmatpush1.msra.mxu0 %v230
    %257 = vmatprep.subr.mxu0 0.0
    %258 = vmatpush1.msra.mxu0 %v231
    %259 = vmatprep.subr.mxu0 0.0
    %260 = vmatpush1.msra.mxu0 %v232
    %261 = vmatprep.subr.mxu0 0.0
    %262 = vmatpush1.msra.mxu0 %v233
    %263 = vmatprep.subr.mxu0 0.0
    %264 = vmatpush1.msra.mxu0 %v234
    %265 = vmatprep.subr.mxu0 0.0
    %266 = vmatpush1.msra.mxu0 %v235
    %267 = vmatprep.subr.mxu0 0.0
    %268 = vmatpush1.msra.mxu0 %v236
    %269 = vmatprep.subr.mxu0 0.0
    %270 = vmatpush1.msra.mxu0 0.0
    %271 = vmatprep.subr.mxu0 0.0
    %272 = vmatpush1.msra.mxu0 0.0
    %273 = vmatprep.subr.mxu0 0.0
    %274 = vmatpush1.msra.mxu0 0.0
    %275 = vmatprep.subr.mxu0 0.0
    %276 = vmatpush1.msra.mxu0 0.0
    %277 = vmatprep.subr.mxu0 0.0
    %278 = vmatpush1.msra.mxu0 0.0
    %279 = vmatprep.subr.mxu0 0.0
    %280 = vmatpush1.msra.mxu0 0.0
    %281 = vmatprep.subr.mxu0 0.0
    %282 = vmatpush1.msra.mxu0 0.0
    %283 = vmatprep.subr.mxu0 0.0
    %284 = vmatpush1.msra.mxu0 0.0
    %285 = vmatprep.subr.mxu0 0.0
    %286 = vmatpush1.msra.mxu0 0.0
    %287 = vmatprep.subr.mxu0 0.0
    %288 = vmatpush1.msra.mxu0 0.0
    %289 = vmatprep.subr.mxu0 0.0
    %290 = vmatpush1.msra.mxu0 0.0
    %291 = vmatprep.subr.mxu0 0.0
    %292 = vmatpush1.msra.mxu0 0.0
    %293 = vmatprep.subr.mxu0 0.0
    %294 = vmatpush1.msra.mxu0 0.0
    %295 = vmatprep.subr.mxu0 0.0
    %296 = vmatpush1.msra.mxu0 0.0
    %297 = vmatprep.subr.mxu0 0.0
    %298 = vmatpush1.msra.mxu0 0.0
    %299 = vmatprep.subr.mxu0 0.0
    %300 = vmatpush1.msra.mxu0 0.0
    %301 = vmatprep.mubr.f32.mxu0 0.0
    %302 = vmatmul.mubr.f32.gmra.mrb[0].mxu0 %v216
    %v303 = vpop.f32.mrb[0].mxu0
    %v304 = vadd.f32 0.0, %v303
    %v305 = vpop.f32.mrb[0].mxu0
    %306 = vmatprep.mubr.f32.mxu0 0.0
    %307 = vmatmul.mubr.f32.gmra.mrb[0].mxu0 %v217
    %v308 = vpop.f32.mrb[0].mxu0
    %v309 = vadd.f32 0.0, %v308
    %v310 = vpop.f32.mrb[0].mxu0
    %311 = vmatprep.mubr.f32.mxu0 0.0
    %312 = vmatmul.mubr.f32.gmra.mrb[0].mxu0 %v218
    %v313 = vpop.f32.mrb[0].mxu0
    %v314 = vadd.f32 0.0, %v313
    %v315 = vpop.f32.mrb[0].mxu0
    %316 = vmatprep.mubr.f32.mxu0 0.0
    %317 = vmatmul.mubr.f32.gmra.mrb[0].mxu0 %v219
    %v318 = vpop.f32.mrb[0].mxu0
    %v319 = vadd.f32 0.0, %v318
    %v320 = vpop.f32.mrb[0].mxu0
    %321 = vdwg.mxu0
    %v322 = vld [vmem:[%s1 + $0x10] sm:$0xff]
    %v323 = vld [vmem:[%s1 + $0x48] sm:$0xff]
    %v324 = vmul.f32 %v322, 0.2
    %v325 = vmul.f32 %v323, 0.2
    %v326 = vadd.f32 %v314, %v324
    %v327 = vadd.f32 %v319, %v325
    %v328 = vadd.f32 %v304, %v309
    %v329 = vrot.slane %v328, 4
    %v330 = vadd.f32 %v328, %v329
    %v331 = vrot.slane %v330, 2
    %v332 = vadd.f32 %v330, %v331
    %v333 = vrot.slane %v332, 1
    %v334 = vadd.f32 %v332, %v333
    %v335 = vmul.f32 %v334, %v173
    %v336 = vsub.f32 %v304, %v335
    %v337 = vsub.f32 %v309, %v335
    %v338 = vmul.f32 %v336, %v336
    %v339 = vmul.f32 %v337, %v337
    %v340 = vadd.f32 %v338, %v339
    %v341 = vrot.slane %v340, 4
    %v342 = vadd.f32 %v340, %v341
    %v343 = vrot.slane %v342, 2
    %v344 = vadd.f32 %v342, %v343
    %v345 = vrot.slane %v344, 1
    %v346 = vadd.f32 %v344, %v345
    %v347 = vmul.f32 %v346, %v173
    %v348 = vmul.f32 %v347, 1.0666667
    %v349 = vadd.f32 %v347, 1e-05
    %v350 = vrsqrt.pop %v349
    %v351 = vmul.f32 %v336, %v350
    %v352 = vmul.f32 %v337, %v350
    %v353 = vadd.f32 %v326, %v327
    %v354 = vrot.slane %v353, 4
    %v355 = vadd.f32 %v353, %v354
    %v356 = vrot.slane %v355, 2
    %v357 = vadd.f32 %v355, %v356
    %v358 = vrot.slane %v357, 1
    %v359 = vadd.f32 %v357, %v358
    %v360 = vmul.f32 %v359, %v173
    %v361 = vsub.f32 %v326, %v360
    %v362 = vsub.f32 %v327, %v360
    %v363 = vmul.f32 %v361, %v361
    %v364 = vmul.f32 %v362, %v362
    %v365 = vadd.f32 %v363, %v364
    %v366 = vrot.slane %v365, 4
    %v367 = vadd.f32 %v365, %v366
    %v368 = vrot.slane %v367, 2
    %v369 = vadd.f32 %v367, %v368
    %v370 = vrot.slane %v369, 1
    %v371 = vadd.f32 %v369, %v370
    %v372 = vmul.f32 %v371, %v173
    %v373 = vadd.f32 %v372, 1e-05
    %v374 = vrsqrt.pop %v373
    %v375 = vmul.f32 %v361, %v374
    %v376 = vmul.f32 %v362, %v374
    %v377 = vmax.f32 %v351, 0.0
    %v378 = vmax.f32 %v352, 0.0
    %v379 = vmax.f32 %v375, 0.0
    %v380 = vmax.f32 %v376, 0.0
    %s381 = scalar_lea.vmem [#allocation2], 256
    %v382 = vld [vmem:[%s381] sm:$0xff]
    %v383 = vld [vmem:[%s381 + $0x8] sm:$0xff]
    %v384 = vld [vmem:[%s381 + $0x10] sm:$0xff]
    %v385 = vld [vmem:[%s381 + $0x18] sm:$0xff]
    %v386 = vld [vmem:[%s381 + $0x20] sm:$0xff]
    %v387 = vld [vmem:[%s381 + $0x28] sm:$0xff]
    %v388 = vld [vmem:[%s381 + $0x30] sm:$0xff]
    %v389 = vld [vmem:[%s381 + $0x38] sm:$0xff]
    %v390 = vld [vmem:[%s381 + $0x40] sm:$0xff]
    %v391 = vld [vmem:[%s381 + $0x48] sm:$0xff]
    %v392 = vld [vmem:[%s381 + $0x50] sm:$0xff]
    %v393 = vld [vmem:[%s381 + $0x58] sm:$0xff]
    %v394 = vld [vmem:[%s381 + $0x60] sm:$0xff]
    %v395 = vld [vmem:[%s381 + $0x68] sm:$0xff]
    %v396 = vld [vmem:[%s381 + $0x70] sm:$0xff]
    %v397 = vld [vmem:[%s381 + $0x78] sm:$0xff]
    %398 = vmatprep.subr.mxu0 0.0
    %399 = vmatpush1.msra.mxu0 %v382
    %400 = vmatprep.subr.mxu0 0.0
    %401 = vmatpush1.msra.mxu0 %v383
    %402 = vmatprep.subr.mxu0 0.0
    %403 = vmatpush1.msra.mxu0 %v384
    %404 = vmatprep.subr.mxu0 0.0
    %405 = vmatpush1.msra.mxu0 %v385
    %406 = vmatprep.subr.mxu0 0.0
    %407 = vmatpush1.msra.mxu0 %v386
    %408 = vmatprep.subr.mxu0 0.0
    %409 = vmatpush1.msra.mxu0 %v387
    %410 = vmatprep.subr.mxu0 0.0
    %411 = vmatpush1.msra.mxu0 %v388
    %412 = vmatprep.subr.mxu0 0.0
    %413 = vmatpush1.msra.mxu0 %v389
    %414 = vmatprep.subr.mxu0 0.0
    %415 = vmatpush1.msra.mxu0 %v390
    %416 = vmatprep.subr.mxu0 0.0
    %417 = vmatpush1.msra.mxu0 %v391
    %418 = vmatprep.subr.mxu0 0.0
    %419 = vmatpush1.msra.mxu0 %v392
    %420 = vmatprep.subr.mxu0 0.0
    %421 = vmatpush1.msra.mxu0 %v393
    %422 = vmatprep.subr.mxu0 0.0
    %423 = vmatpush1.msra.mxu0 %v394
    %424 = vmatprep.subr.mxu0 0.0
    %425 = vmatpush1.msra.mxu0 %v395
    %426 = vmatprep.subr.mxu0 0.0
    %427 = vmatpush1.msra.mxu0 %v396
    %428 = vmatprep.subr.mxu0 0.0
    %429 = vmatpush1.msra.mxu0 %v397
    %430 = vmatprep.subr.mxu0 0.0
    %431 = vmatpush1.msra.mxu0 0.0
    %432 = vmatprep.subr.mxu0 0.0
    %433 = vmatpush1.msra.mxu0 0.0
    %434 = vmatprep.subr.mxu0 0.0
    %435 = vmatpush1.msra.mxu0 0.0
    %436 = vmatprep.subr.mxu0 0.0
    %437 = vmatpush1.msra.mxu0 0.0
    %438 = vmatprep.subr.mxu0 0.0
    %439 = vmatpush1.msra.mxu0 0.0
    %440 = vmatprep.subr.mxu0 0.0
    %441 = vmatpush1.msra.mxu0 0.0
    %442 = vmatprep.subr.mxu0 0.0
    %443 = vmatpush1.msra.mxu0 0.0
    %444 = vmatprep.subr.mxu0 0.0
    %445 = vmatpush1.msra.mxu0 0.0
    %446 = vmatprep.subr.mxu0 0.0
    %447 = vmatpush1.msra.mxu0 0.0
    %448 = vmatprep.subr.mxu0 0.0
    %449 = vmatpush1.msra.mxu0 0.0
    %450 = vmatprep.subr.mxu0 0.0
    %451 = vmatpush1.msra.mxu0 0.0
    %452 = vmatprep.subr.mxu0 0.0
    %453 = vmatpush1.msra.mxu0 0.0
    %454 = vmatprep.subr.mxu0 0.0
    %455 = vmatpush1.msra.mxu0 0.0
    %456 = vmatprep.subr.mxu0 0.0
    %457 = vmatpush1.msra.mxu0 0.0
    %458 = vmatprep.subr.mxu0 0.0
    %459 = vmatpush1.msra.mxu0 0.0
    %460 = vmatprep.subr.mxu0 0.0
    %461 = vmatpush1.msra.mxu0 0.0
    %462 = vmatprep.mubr.f32.mxu0 0.0
    %463 = vmatmul.mubr.f32.gmra.mrb[0].mxu0 %v377
    %v464 = vpop.f32.mrb[0].mxu0
    %v465 = vadd.f32 0.0, %v464
    %v466 = vpop.f32.mrb[0].mxu0
    %467 = vmatprep.mubr.f32.mxu0 0.0
    %468 = vmatmul.mubr.f32.gmra.mrb[0].mxu0 %v378
    %v469 = vpop.f32.mrb[0].mxu0
    %v470 = vadd.f32 0.0, %v469
    %v471 = vpop.f32.mrb[0].mxu0
    %472 = vmatprep.mubr.f32.mxu0 0.0
    %473 = vmatmul.mubr.f32.gmra.mrb[0].mxu0 %v379
    %v474 = vpop.f32.mrb[0].mxu0
    %v475 = vadd.f32 0.0, %v474
    %v476 = vpop.f32.mrb[0].mxu0
    %477 = vmatprep.mubr.f32.mxu0 0.0
    %478 = vmatmul.mubr.f32.gmra.mrb[0].mxu0 %v380
    %v479 = vpop.f32.mrb[0].mxu0
    %v480 = vadd.f32 0.0, %v479
    %v481 = vpop.f32.mrb[0].mxu0
    %482 = vdwg.mxu0
    %v483 = vld [vmem:[%s1 + $0x18] sm:$0xff]
    %v484 = vld [vmem:[%s1 + $0x50] sm:$0xff]
    %v485 = vmul.f32 %v483, 0.2
    %v486 = vmul.f32 %v484, 0.2
    %v487 = vadd.f32 %v475, %v485
    %v488 = vadd.f32 %v480, %v486
    %v489 = vadd.f32 %v465, %v470
    %v490 = vrot.slane %v489, 4
    %v491 = vadd.f32 %v489, %v490
    %v492 = vrot.slane %v491, 2
    %v493 = vadd.f32 %v491, %v492
    %v494 = vrot.slane %v493, 1
    %v495 = vadd.f32 %v493, %v494
    %v496 = vmul.f32 %v495, %v173
    %v497 = vsub.f32 %v465, %v496
    %v498 = vsub.f32 %v470, %v496
    %v499 = vmul.f32 %v497, %v497
    %v500 = vmul.f32 %v498, %v498
    %v501 = vadd.f32 %v499, %v500
    %v502 = vrot.slane %v501, 4
    %v503 = vadd.f32 %v501, %v502
    %v504 = vrot.slane %v503, 2
    %v505 = vadd.f32 %v503, %v504
    %v506 = vrot.slane %v505, 1
    %v507 = vadd.f32 %v505, %v506
    %v508 = vmul.f32 %v507, %v173
    %v509 = vmul.f32 %v508, 1.0666667
    %v510 = vadd.f32 %v508, 1e-05
    %v511 = vrsqrt.pop %v510
    %v512 = vmul.f32 %v497, %v511
    %v513 = vmul.f32 %v498, %v511
    %v514 = vadd.f32 %v487, %v488
    %v515 = vrot.slane %v514, 4
    %v516 = vadd.f32 %v514, %v515
    %v517 = vrot.slane %v516, 2
    %v518 = vadd.f32 %v516, %v517
    %v519 = vrot.slane %v518, 1
    %v520 = vadd.f32 %v518, %v519
    %v521 = vmul.f32 %v520, %v173
    %v522 = vsub.f32 %v487, %v521
    %v523 = vsub.f32 %v488, %v521
    %v524 = vmul.f32 %v522, %v522
    %v525 = vmul.f32 %v523, %v523
    %v526 = vadd.f32 %v524, %v525
    %v527 = vrot.slane %v526, 4
    %v528 = vadd.f32 %v526, %v527
    %v529 = vrot.slane %v528, 2
    %v530 = vadd.f32 %v528, %v529
    %v531 = vrot.slane %v530, 1
    %v532 = vadd.f32 %v530, %v531
    %v533 = vmul.f32 %v532, %v173
    %v534 = vadd.f32 %v533, 1e-05
    %v535 = vrsqrt.pop %v534
    %v536 = vmul.f32 %v522, %v535
    %v537 = vmul.f32 %v523, %v535
    %v538 = vmax.f32 %v512, 0.0
    %v539 = vmax.f32 %v513, 0.0
    %v540 = vmax.f32 %v536, 0.0
    %v541 = vmax.f32 %v537, 0.0
    %s542 = scalar_lea.vmem [#allocation2], 384
    %v543 = vld [vmem:[%s542] sm:$0xff]
    %v544 = vld [vmem:[%s542 + $0x8] sm:$0xff]
    %v545 = vld [vmem:[%s542 + $0x10] sm:$0xff]
    %v546 = vld [vmem:[%s542 + $0x18] sm:$0xff]
    %v547 = vld [vmem:[%s542 + $0x20] sm:$0xff]
    %v548 = vld [vmem:[%s542 + $0x28] sm:$0xff]
    %v549 = vld [vmem:[%s542 + $0x30] sm:$0xff]
    %v550 = vld [vmem:[%s542 + $0x38] sm:$0xff]
    %v551 = vld [vmem:[%s542 + $0x40] sm:$0xff]
    %v552 = vld [vmem:[%s542 + $0x48] sm:$0xff]
    %v553 = vld [vmem:[%s542 + $0x50] sm:$0xff]
    %v554 = vld [vmem:[%s542 + $0x58] sm:$0xff]
    %v555 = vld [vmem:[%s542 + $0x60] sm:$0xff]
    %v556 = vld [vmem:[%s542 + $0x68] sm:$0xff]
    %v557 = vld [vmem:[%s542 + $0x70] sm:$0xff]
    %v558 = vld [vmem:[%s542 + $0x78] sm:$0xff]
    %559 = vmatprep.subr.mxu0 0.0
    %560 = vmatpush1.msra.mxu0 %v543
    %561 = vmatprep.subr.mxu0 0.0
    %562 = vmatpush1.msra.mxu0 %v544
    %563 = vmatprep.subr.mxu0 0.0
    %564 = vmatpush1.msra.mxu0 %v545
    %565 = vmatprep.subr.mxu0 0.0
    %566 = vmatpush1.msra.mxu0 %v546
    %567 = vmatprep.subr.mxu0 0.0
    %568 = vmatpush1.msra.mxu0 %v547
    %569 = vmatprep.subr.mxu0 0.0
    %570 = vmatpush1.msra.mxu0 %v548
    %571 = vmatprep.subr.mxu0 0.0
    %572 = vmatpush1.msra.mxu0 %v549
    %573 = vmatprep.subr.mxu0 0.0
    %574 = vmatpush1.msra.mxu0 %v550
    %575 = vmatprep.subr.mxu0 0.0
    %576 = vmatpush1.msra.mxu0 %v551
    %577 = vmatprep.subr.mxu0 0.0
    %578 = vmatpush1.msra.mxu0 %v552
    %579 = vmatprep.subr.mxu0 0.0
    %580 = vmatpush1.msra.mxu0 %v553
    %581 = vmatprep.subr.mxu0 0.0
    %582 = vmatpush1.msra.mxu0 %v554
    %583 = vmatprep.subr.mxu0 0.0
    %584 = vmatpush1.msra.mxu0 %v555
    %585 = vmatprep.subr.mxu0 0.0
    %586 = vmatpush1.msra.mxu0 %v556
    %587 = vmatprep.subr.mxu0 0.0
    %588 = vmatpush1.msra.mxu0 %v557
    %589 = vmatprep.subr.mxu0 0.0
    %590 = vmatpush1.msra.mxu0 %v558
    %591 = vmatprep.subr.mxu0 0.0
    %592 = vmatpush1.msra.mxu0 0.0
    %593 = vmatprep.subr.mxu0 0.0
    %594 = vmatpush1.msra.mxu0 0.0
    %595 = vmatprep.subr.mxu0 0.0
    %596 = vmatpush1.msra.mxu0 0.0
    %597 = vmatprep.subr.mxu0 0.0
    %598 = vmatpush1.msra.mxu0 0.0
    %599 = vmatprep.subr.mxu0 0.0
    %600 = vmatpush1.msra.mxu0 0.0
    %601 = vmatprep.subr.mxu0 0.0
    %602 = vmatpush1.msra.mxu0 0.0
    %603 = vmatprep.subr.mxu0 0.0
    %604 = vmatpush1.msra.mxu0 0.0
    %605 = vmatprep.subr.mxu0 0.0
    %606 = vmatpush1.msra.mxu0 0.0
    %607 = vmatprep.subr.mxu0 0.0
    %608 = vmatpush1.msra.mxu0 0.0
    %609 = vmatprep.subr.mxu0 0.0
    %610 = vmatpush1.msra.mxu0 0.0
    %611 = vmatprep.subr.mxu0 0.0
    %612 = vmatpush1.msra.mxu0 0.0
    %613 = vmatprep.subr.mxu0 0.0
    %614 = vmatpush1.msra.mxu0 0.0
    %615 = vmatprep.subr.mxu0 0.0
    %616 = vmatpush1.msra.mxu0 0.0
    %617 = vmatprep.subr.mxu0 0.0
    %618 = vmatpush1.msra.mxu0 0.0
    %619 = vmatprep.subr.mxu0 0.0
    %620 = vmatpush1.msra.mxu0 0.0
    %621 = vmatprep.subr.mxu0 0.0
    %622 = vmatpush1.msra.mxu0 0.0
    %623 = vmatprep.mubr.f32.mxu0 0.0
    %624 = vmatmul.mubr.f32.gmra.mrb[0].mxu0 %v538
    %v625 = vpop.f32.mrb[0].mxu0
    %v626 = vadd.f32 0.0, %v625
    %v627 = vpop.f32.mrb[0].mxu0
    %628 = vmatprep.mubr.f32.mxu0 0.0
    %629 = vmatmul.mubr.f32.gmra.mrb[0].mxu0 %v539
    %v630 = vpop.f32.mrb[0].mxu0
    %v631 = vadd.f32 0.0, %v630
    %v632 = vpop.f32.mrb[0].mxu0
    %633 = vmatprep.mubr.f32.mxu0 0.0
    %634 = vmatmul.mubr.f32.gmra.mrb[0].mxu0 %v540
    %v635 = vpop.f32.mrb[0].mxu0
    %v636 = vadd.f32 0.0, %v635
    %v637 = vpop.f32.mrb[0].mxu0
    %638 = vmatprep.mubr.f32.mxu0 0.0
    %639 = vmatmul.mubr.f32.gmra.mrb[0].mxu0 %v541
    %v640 = vpop.f32.mrb[0].mxu0
    %v641 = vadd.f32 0.0, %v640
    %v642 = vpop.f32.mrb[0].mxu0
    %643 = vdwg.mxu0
    %v644 = vld [vmem:[%s1 + $0x20] sm:$0xff]
    %v645 = vld [vmem:[%s1 + $0x58] sm:$0xff]
    %v646 = vmul.f32 %v644, 0.2
    %v647 = vmul.f32 %v645, 0.2
    %v648 = vadd.f32 %v636, %v646
    %v649 = vadd.f32 %v641, %v647
    %v650 = vadd.f32 %v626, %v631
    %v651 = vrot.slane %v650, 4
    %v652 = vadd.f32 %v650, %v651
    %v653 = vrot.slane %v652, 2
    %v654 = vadd.f32 %v652, %v653
    %v655 = vrot.slane %v654, 1
    %v656 = vadd.f32 %v654, %v655
    %v657 = vmul.f32 %v656, %v173
    %v658 = vsub.f32 %v626, %v657
    %v659 = vsub.f32 %v631, %v657
    %v660 = vmul.f32 %v658, %v658
    %v661 = vmul.f32 %v659, %v659
    %v662 = vadd.f32 %v660, %v661
    %v663 = vrot.slane %v662, 4
    %v664 = vadd.f32 %v662, %v663
    %v665 = vrot.slane %v664, 2
    %v666 = vadd.f32 %v664, %v665
    %v667 = vrot.slane %v666, 1
    %v668 = vadd.f32 %v666, %v667
    %v669 = vmul.f32 %v668, %v173
    %v670 = vmul.f32 %v669, 1.0666667
    %v671 = vadd.f32 %v669, 1e-05
    %v672 = vrsqrt.pop %v671
    %v673 = vmul.f32 %v658, %v672
    %v674 = vmul.f32 %v659, %v672
    %v675 = vadd.f32 %v648, %v649
    %v676 = vrot.slane %v675, 4
    %v677 = vadd.f32 %v675, %v676
    %v678 = vrot.slane %v677, 2
    %v679 = vadd.f32 %v677, %v678
    %v680 = vrot.slane %v679, 1
    %v681 = vadd.f32 %v679, %v680
    %v682 = vmul.f32 %v681, %v173
    %v683 = vsub.f32 %v648, %v682
    %v684 = vsub.f32 %v649, %v682
    %v685 = vmul.f32 %v683, %v683
    %v686 = vmul.f32 %v684, %v684
    %v687 = vadd.f32 %v685, %v686
    %v688 = vrot.slane %v687, 4
    %v689 = vadd.f32 %v687, %v688
    %v690 = vrot.slane %v689, 2
    %v691 = vadd.f32 %v689, %v690
    %v692 = vrot.slane %v691, 1
    %v693 = vadd.f32 %v691, %v692
    %v694 = vmul.f32 %v693, %v173
    %v695 = vadd.f32 %v694, 1e-05
    %v696 = vrsqrt.pop %v695
    %v697 = vmul.f32 %v683, %v696
    %v698 = vmul.f32 %v684, %v696
    %v699 = vmax.f32 %v673, 0.0
    %v700 = vmax.f32 %v674, 0.0
    %v701 = vmax.f32 %v697, 0.0
    %v702 = vmax.f32 %v698, 0.0
    %s703 = scalar_lea.vmem [#allocation2], 512
    %v704 = vld [vmem:[%s703] sm:$0xff]
    %v705 = vld [vmem:[%s703 + $0x8] sm:$0xff]
    %v706 = vld [vmem:[%s703 + $0x10] sm:$0xff]
    %v707 = vld [vmem:[%s703 + $0x18] sm:$0xff]
    %v708 = vld [vmem:[%s703 + $0x20] sm:$0xff]
    %v709 = vld [vmem:[%s703 + $0x28] sm:$0xff]
    %v710 = vld [vmem:[%s703 + $0x30] sm:$0xff]
    %v711 = vld [vmem:[%s703 + $0x38] sm:$0xff]
    %v712 = vld [vmem:[%s703 + $0x40] sm:$0xff]
    %v713 = vld [vmem:[%s703 + $0x48] sm:$0xff]
    %v714 = vld [vmem:[%s703 + $0x50] sm:$0xff]
    %v715 = vld [vmem:[%s703 + $0x58] sm:$0xff]
    %v716 = vld [vmem:[%s703 + $0x60] sm:$0xff]
    %v717 = vld [vmem:[%s703 + $0x68] sm:$0xff]
    %v718 = vld [vmem:[%s703 + $0x70] sm:$0xff]
    %v719 = vld [vmem:[%s703 + $0x78] sm:$0xff]
    %720 = vmatprep.subr.mxu0 0.0
    %721 = vmatpush1.msra.mxu0 %v704
    %722 = vmatprep.subr.mxu0 0.0
    %723 = vmatpush1.msra.mxu0 %v705
    %724 = vmatprep.subr.mxu0 0.0
    %725 = vmatpush1.msra.mxu0 %v706
    %726 = vmatprep.subr.mxu0 0.0
    %727 = vmatpush1.msra.mxu0 %v707
    %728 = vmatprep.subr.mxu0 0.0
    %729 = vmatpush1.msra.mxu0 %v708
    %730 = vmatprep.subr.mxu0 0.0
    %731 = vmatpush1.msra.mxu0 %v709
    %732 = vmatprep.subr.mxu0 0.0
    %733 = vmatpush1.msra.mxu0 %v710
    %734 = vmatprep.subr.mxu0 0.0
    %735 = vmatpush1.msra.mxu0 %v711
    %736 = vmatprep.subr.mxu0 0.0
    %737 = vmatpush1.msra.mxu0 %v712
    %738 = vmatprep.subr.mxu0 0.0
    %739 = vmatpush1.msra.mxu0 %v713
    %740 = vmatprep.subr.mxu0 0.0
    %741 = vmatpush1.msra.mxu0 %v714
    %742 = vmatprep.subr.mxu0 0.0
    %743 = vmatpush1.msra.mxu0 %v715
    %744 = vmatprep.subr.mxu0 0.0
    %745 = vmatpush1.msra.mxu0 %v716
    %746 = vmatprep.subr.mxu0 0.0
    %747 = vmatpush1.msra.mxu0 %v717
    %748 = vmatprep.subr.mxu0 0.0
    %749 = vmatpush1.msra.mxu0 %v718
    %750 = vmatprep.subr.mxu0 0.0
    %751 = vmatpush1.msra.mxu0 %v719
    %752 = vmatprep.subr.mxu0 0.0
    %753 = vmatpush1.msra.mxu0 0.0
    %754 = vmatprep.subr.mxu0 0.0
    %755 = vmatpush1.msra.mxu0 0.0
    %756 = vmatprep.subr.mxu0 0.0
    %757 = vmatpush1.msra.mxu0 0.0
    %758 = vmatprep.subr.mxu0 0.0
    %759 = vmatpush1.msra.mxu0 0.0
    %760 = vmatprep.subr.mxu0 0.0
    %761 = vmatpush1.msra.mxu0 0.0
    %762 = vmatprep.subr.mxu0 0.0
    %763 = vmatpush1.msra.mxu0 0.0
    %764 = vmatprep.subr.mxu0 0.0
    %765 = vmatpush1.msra.mxu0 0.0
    %766 = vmatprep.subr.mxu0 0.0
    %767 = vmatpush1.msra.mxu0 0.0
    %768 = vmatprep.subr.mxu0 0.0
    %769 = vmatpush1.msra.mxu0 0.0
    %770 = vmatprep.subr.mxu0 0.0
    %771 = vmatpush1.msra.mxu0 0.0
    %772 = vmatprep.subr.mxu0 0.0
    %773 = vmatpush1.msra.mxu0 0.0
    %774 = vmatprep.subr.mxu0 0.0
    %775 = vmatpush1.msra.mxu0 0.0
    %776 = vmatprep.subr.mxu0 0.0
    %777 = vmatpush1.msra.mxu0 0.0
    %778 = vmatprep.subr.mxu0 0.0
    %779 = vmatpush1.msra.mxu0 0.0
    %780 = vmatprep.subr.mxu0 0.0
    %781 = vmatpush1.msra.mxu0 0.0
    %782 = vmatprep.subr.mxu0 0.0
    %783 = vmatpush1.msra.mxu0 0.0
    %784 = vmatprep.mubr.f32.mxu0 0.0
    %785 = vmatmul.mubr.f32.gmra.mrb[0].mxu0 %v699
    %v786 = vpop.f32.mrb[0].mxu0
    %v787 = vadd.f32 0.0, %v786
    %v788 = vpop.f32.mrb[0].mxu0
    %789 = vmatprep.mubr.f32.mxu0 0.0
    %790 = vmatmul.mubr.f32.gmra.mrb[0].mxu0 %v700
    %v791 = vpop.f32.mrb[0].mxu0
    %v792 = vadd.f32 0.0, %v791
    %v793 = vpop.f32.mrb[0].mxu0
    %794 = vmatprep.mubr.f32.mxu0 0.0
    %795 = vmatmul.mubr.f32.gmra.mrb[0].mxu0 %v701
    %v796 = vpop.f32.mrb[0].mxu0
    %v797 = vadd.f32 0.0, %v796
    %v798 = vpop.f32.mrb[0].mxu0
    %799 = vmatprep.mubr.f32.mxu0 0.0
    %800 = vmatmul.mubr.f32.gmra.mrb[0].mxu0 %v702
    %v801 = vpop.f32.mrb[0].mxu0
    %v802 = vadd.f32 0.0, %v801
    %v803 = vpop.f32.mrb[0].mxu0
    %804 = vdwg.mxu0
    %v805 = vld [vmem:[%s1 + $0x28] sm:$0xff]
    %v806 = vld [vmem:[%s1 + $0x60] sm:$0xff]
    %v807 = vmul.f32 %v805, 0.2
    %v808 = vmul.f32 %v806, 0.2
    %v809 = vadd.f32 %v797, %v807
    %v810 = vadd.f32 %v802, %v808
    %v811 = vadd.f32 %v787, %v792
    %v812 = vrot.slane %v811, 4
    %v813 = vadd.f32 %v811, %v812
    %v814 = vrot.slane %v813, 2
    %v815 = vadd.f32 %v813, %v814
    %v816 = vrot.slane %v815, 1
    %v817 = vadd.f32 %v815, %v816
    %v818 = vmul.f32 %v817, %v173
    %v819 = vsub.f32 %v787, %v818
    %v820 = vsub.f32 %v792, %v818
    %v821 = vmul.f32 %v819, %v819
    %v822 = vmul.f32 %v820, %v820
    %v823 = vadd.f32 %v821, %v822
    %v824 = vrot.slane %v823, 4
    %v825 = vadd.f32 %v823, %v824
    %v826 = vrot.slane %v825, 2
    %v827 = vadd.f32 %v825, %v826
    %v828 = vrot.slane %v827, 1
    %v829 = vadd.f32 %v827, %v828
    %v830 = vmul.f32 %v829, %v173
    %v831 = vmul.f32 %v830, 1.0666667
    %v832 = vadd.f32 %v830, 1e-05
    %v833 = vrsqrt.pop %v832
    %v834 = vmul.f32 %v819, %v833
    %v835 = vmul.f32 %v820, %v833
    %v836 = vadd.f32 %v809, %v810
    %v837 = vrot.slane %v836, 4
    %v838 = vadd.f32 %v836, %v837
    %v839 = vrot.slane %v838, 2
    %v840 = vadd.f32 %v838, %v839
    %v841 = vrot.slane %v840, 1
    %v842 = vadd.f32 %v840, %v841
    %v843 = vmul.f32 %v842, %v173
    %v844 = vsub.f32 %v809, %v843
    %v845 = vsub.f32 %v810, %v843
    %v846 = vmul.f32 %v844, %v844
    %v847 = vmul.f32 %v845, %v845
    %v848 = vadd.f32 %v846, %v847
    %v849 = vrot.slane %v848, 4
    %v850 = vadd.f32 %v848, %v849
    %v851 = vrot.slane %v850, 2
    %v852 = vadd.f32 %v850, %v851
    %v853 = vrot.slane %v852, 1
    %v854 = vadd.f32 %v852, %v853
    %v855 = vmul.f32 %v854, %v173
    %v856 = vadd.f32 %v855, 1e-05
    %v857 = vrsqrt.pop %v856
    %v858 = vmul.f32 %v844, %v857
    %v859 = vmul.f32 %v845, %v857
    %v860 = vmax.f32 %v834, 0.0
    %v861 = vmax.f32 %v835, 0.0
    %v862 = vmax.f32 %v858, 0.0
    %v863 = vmax.f32 %v859, 0.0
    %s864 = scalar_lea.vmem [#allocation2], 640
    %v865 = vld [vmem:[%s864] sm:$0xff]
    %v866 = vld [vmem:[%s864 + $0x8] sm:$0xff]
    %v867 = vld [vmem:[%s864 + $0x10] sm:$0xff]
    %v868 = vld [vmem:[%s864 + $0x18] sm:$0xff]
    %v869 = vld [vmem:[%s864 + $0x20] sm:$0xff]
    %v870 = vld [vmem:[%s864 + $0x28] sm:$0xff]
    %v871 = vld [vmem:[%s864 + $0x30] sm:$0xff]
    %v872 = vld [vmem:[%s864 + $0x38] sm:$0xff]
    %v873 = vld [vmem:[%s864 + $0x40] sm:$0xff]
    %v874 = vld [vmem:[%s864 + $0x48] sm:$0xff]
    %v875 = vld [vmem:[%s864 + $0x50] sm:$0xff]
    %v876 = vld [vmem:[%s864 + $0x58] sm:$0xff]
    %v877 = vld [vmem:[%s864 + $0x60] sm:$0xff]
    %v878 = vld [vmem:[%s864 + $0x68] sm:$0xff]
    %v879 = vld [vmem:[%s864 + $0x70] sm:$0xff]
    %v880 = vld [vmem:[%s864 + $0x78] sm:$0xff]
    %881 = vmatprep.subr.mxu0 0.0
    %882 = vmatpush1.msra.mxu0 %v865
    %883 = vmatprep.subr.mxu0 0.0
    %884 = vmatpush1.msra.mxu0 %v866
    %885 = vmatprep.subr.mxu0 0.0
    %886 = vmatpush1.msra.mxu0 %v867
    %887 = vmatprep.subr.mxu0 0.0
    %888 = vmatpush1.msra.mxu0 %v868
    %889 = vmatprep.subr.mxu0 0.0
    %890 = vmatpush1.msra.mxu0 %v869
    %891 = vmatprep.subr.mxu0 0.0
    %892 = vmatpush1.msra.mxu0 %v870
    %893 = vmatprep.subr.mxu0 0.0
    %894 = vmatpush1.msra.mxu0 %v871
    %895 = vmatprep.subr.mxu0 0.0
    %896 = vmatpush1.msra.mxu0 %v872
    %897 = vmatprep.subr.mxu0 0.0
    %898 = vmatpush1.msra.mxu0 %v873
    %899 = vmatprep.subr.mxu0 0.0
    %900 = vmatpush1.msra.mxu0 %v874
    %901 = vmatprep.subr.mxu0 0.0
    %902 = vmatpush1.msra.mxu0 %v875
    %903 = vmatprep.subr.mxu0 0.0
    %904 = vmatpush1.msra.mxu0 %v876
    %905 = vmatprep.subr.mxu0 0.0
    %906 = vmatpush1.msra.mxu0 %v877
    %907 = vmatprep.subr.mxu0 0.0
    %908 = vmatpush1.msra.mxu0 %v878
    %909 = vmatprep.subr.mxu0 0.0
    %910 = vmatpush1.msra.mxu0 %v879
    %911 = vmatprep.subr.mxu0 0.0
    %912 = vmatpush1.msra.mxu0 %v880
    %913 = vmatprep.subr.mxu0 0.0
    %914 = vmatpush1.msra.mxu0 0.0
    %915 = vmatprep.subr.mxu0 0.0
    %916 = vmatpush1.msra.mxu0 0.0
    %917 = vmatprep.subr.mxu0 0.0
    %918 = vmatpush1.msra.mxu0 0.0
    %919 = vmatprep.subr.mxu0 0.0
    %920 = vmatpush1.msra.mxu0 0.0
    %921 = vmatprep.subr.mxu0 0.0
    %922 = vmatpush1.msra.mxu0 0.0
    %923 = vmatprep.subr.mxu0 0.0
    %924 = vmatpush1.msra.mxu0 0.0
    %925 = vmatprep.subr.mxu0 0.0
    %926 = vmatpush1.msra.mxu0 0.0
    %927 = vmatprep.subr.mxu0 0.0
    %928 = vmatpush1.msra.mxu0 0.0
    %929 = vmatprep.subr.mxu0 0.0
    %930 = vmatpush1.msra.mxu0 0.0
    %931 = vmatprep.subr.mxu0 0.0
    %932 = vmatpush1.msra.mxu0 0.0
    %933 = vmatprep.subr.mxu0 0.0
    %934 = vmatpush1.msra.mxu0 0.0
    %935 = vmatprep.subr.mxu0 0.0
    %936 = vmatpush1.msra.mxu0 0.0
    %937 = vmatprep.subr.mxu0 0.0
    %938 = vmatpush1.msra.mxu0 0.0
    %939 = vmatprep.subr.mxu0 0.0
    %940 = vmatpush1.msra.mxu0 0.0
    %941 = vmatprep.subr.mxu0 0.0
    %942 = vmatpush1.msra.mxu0 0.0
    %943 = vmatprep.subr.mxu0 0.0
    %944 = vmatpush1.msra.mxu0 0.0
    %945 = vmatprep.mubr.f32.mxu0 0.0
    %946 = vmatmul.mubr.f32.gmra.mrb[0].mxu0 %v860
    %v947 = vpop.f32.mrb[0].mxu0
    %v948 = vadd.f32 0.0, %v947
    %v949 = vpop.f32.mrb[0].mxu0
    %950 = vmatprep.mubr.f32.mxu0 0.0
    %951 = vmatmul.mubr.f32.gmra.mrb[0].mxu0 %v861
    %v952 = vpop.f32.mrb[0].mxu0
    %v953 = vadd.f32 0.0, %v952
    %v954 = vpop.f32.mrb[0].mxu0
    %955 = vmatprep.mubr.f32.mxu0 0.0
    %956 = vmatmul.mubr.f32.gmra.mrb[0].mxu0 %v862
    %v957 = vpop.f32.mrb[0].mxu0
    %v958 = vadd.f32 0.0, %v957
    %v959 = vpop.f32.mrb[0].mxu0
    %960 = vmatprep.mubr.f32.mxu0 0.0
    %961 = vmatmul.mubr.f32.gmra.mrb[0].mxu0 %v863
    %v962 = vpop.f32.mrb[0].mxu0
    %v963 = vadd.f32 0.0, %v962
    %v964 = vpop.f32.mrb[0].mxu0
    %965 = vdwg.mxu0
    %v966 = vld [vmem:[%s1 + $0x30] sm:$0xff]
    %v967 = vld [vmem:[%s1 + $0x68] sm:$0xff]
    %v968 = vmul.f32 %v966, 0.2
    %v969 = vmul.f32 %v967, 0.2
    %v970 = vadd.f32 %v958, %v968
    %v971 = vadd.f32 %v963, %v969
    %v972 = vadd.f32 %v948, %v953
    %v973 = vrot.slane %v972, 4
    %v974 = vadd.f32 %v972, %v973
    %v975 = vrot.slane %v974, 2
    %v976 = vadd.f32 %v974, %v975
    %v977 = vrot.slane %v976, 1
    %v978 = vadd.f32 %v976, %v977
    %v979 = vmul.f32 %v978, %v173
    %v980 = vsub.f32 %v948, %v979
    %v981 = vsub.f32 %v953, %v979
    %v982 = vmul.f32 %v980, %v980
    %v983 = vmul.f32 %v981, %v981
    %v984 = vadd.f32 %v982, %v983
    %v985 = vrot.slane %v984, 4
    %v986 = vadd.f32 %v984, %v985
    %v987 = vrot.slane %v986, 2
    %v988 = vadd.f32 %v986, %v987
    %v989 = vrot.slane %v988, 1
    %v990 = vadd.f32 %v988, %v989
    %v991 = vmul.f32 %v990, %v173
    %v992 = vmul.f32 %v991, 1.0666667
    %v993 = vadd.f32 %v991, 1e-05
    %v994 = vrsqrt.pop %v993
    %v995 = vmul.f32 %v980, %v994
    %v996 = vmul.f32 %v981, %v994
    %v997 = vadd.f32 %v970, %v971
    %v998 = vrot.slane %v997, 4
    %v999 = vadd.f32 %v997, %v998
    %v1000 = vrot.slane %v999, 2
    %v1001 = vadd.f32 %v999, %v1000
    %v1002 = vrot.slane %v1001, 1
    %v1003 = vadd.f32 %v1001, %v1002
    %v1004 = vmul.f32 %v1003, %v173
    %v1005 = vsub.f32 %v970, %v1004
    %v1006 = vsub.f32 %v971, %v1004
    %v1007 = vmul.f32 %v1005, %v1005
    %v1008 = vmul.f32 %v1006, %v1006
    %v1009 = vadd.f32 %v1007, %v1008
    %v1010 = vrot.slane %v1009, 4
    %v1011 = vadd.f32 %v1009, %v1010
    %v1012 = vrot.slane %v1011, 2
    %v1013 = vadd.f32 %v1011, %v1012
    %v1014 = vrot.slane %v1013, 1
    %v1015 = vadd.f32 %v1013, %v1014
    %v1016 = vmul.f32 %v1015, %v173
    %v1017 = vadd.f32 %v1016, 1e-05
    %v1018 = vrsqrt.pop %v1017
    %v1019 = vmul.f32 %v1005, %v1018
    %v1020 = vmul.f32 %v1006, %v1018
    %v1021 = vlaneseq
    %v1022 = vand.u32 %v1021, 127
    %vm1023 = vcmp.lt.s32.totalorder %v1022, 8
    %v1024 = vsel %vm1023, %v995, -1e+30
    %v1025 = vsel %vm1023, %v996, -1e+30
    %1026 = vmax.xlane.f32.xlu0 %v1024
    %v1027 = vpop.xlane.xlu0 %1026
    %1028 = vmax.xlane.f32.xlu0 %v1025
    %v1029 = vpop.xlane.xlu0 %1028
    %v1030 = vsub.f32 %v1024, %v1027
    %v1031 = vsub.f32 %v1025, %v1029
    %v1032 = vmul.f32 %v1030, 1.442695
    %v1033 = vpow.pop %v1032
    %v1034 = vmul.f32 %v1031, 1.442695
    %v1035 = vpow.pop %v1034
    %1036 = vadd.xlane.f32.xlu0 %v1033
    %v1037 = vpop.xlane.xlu0 %1036
    %1038 = vadd.xlane.f32.xlu0 %v1035
    %v1039 = vpop.xlane.xlu0 %1038
    %v1040 = vrcp.pop %v1037
    %v1041 = vmul.f32 %v1033, %v1040
    %v1042 = vrcp.pop %v1039
    %v1043 = vmul.f32 %v1035, %v1042
    %v1044 = vmax.f32 %v1019, 0.0
    %v1045 = vmax.f32 %v1020, 0.0
    %1046 = vst [vmem:[%s5] sm:$0xff] %v1041
    %1047 = vst [vmem:[%s5 + $0x8] sm:$0xff] %v1043
    %1048 = vst [vmem:[%s5 + $0x10] sm:$0xff] %v1044
    %1049 = vst [vmem:[%s5 + $0x18] sm:$0xff] %v1045
    %v1050 = vadd.f32 %v1044, %v1045
    %v1051 = vrot.slane %v1050, 4
    %v1052 = vadd.f32 %v1050, %v1051
    %v1053 = vrot.slane %v1052, 2
    %v1054 = vadd.f32 %v1052, %v1053
    %v1055 = vrot.slane %v1054, 1
    %v1056 = vadd.f32 %v1054, %v1055
    %v1057 = vmul.f32 %v1056, %v173
    %v1058 = vsub.f32 %v1044, %v1057
    %v1059 = vsub.f32 %v1045, %v1057
    %v1060 = vmul.f32 %v1058, %v1058
    %v1061 = vmul.f32 %v1059, %v1059
    %v1062 = vadd.f32 %v1060, %v1061
    %v1063 = vrot.slane %v1062, 4
    %v1064 = vadd.f32 %v1062, %v1063
    %v1065 = vrot.slane %v1064, 2
    %v1066 = vadd.f32 %v1064, %v1065
    %v1067 = vrot.slane %v1066, 1
    %v1068 = vadd.f32 %v1066, %v1067
    %v1069 = vmul.f32 %v1068, %v173
    %v1070 = vadd.f32 %v1069, 1e-05
    %v1071 = vrsqrt.pop %v1070
    %v1072 = vmul.f32 %v1058, %v1071
    %v1073 = vmul.f32 %v1059, %v1071
    %s1074 = scalar_lea.vmem %s4, 80
    %v1075 = vld [vmem:[%s1074] sm:$0xff]
    %v1076 = vld [vmem:[%s1074 + $0x8] sm:$0x3]
    %v1077 = vlaneseq
    %v1078 = vshrl.u32 %v1077, 7
    %v1079 = vsub.s32 1, %v1078
    %v1080 = vrot.slane %v1075, %v1079
    %v1081 = vmul.f32 %v1080, %v1072
    %v1082 = vmul.f32 %v1080, %v1073
    %v1083 = vlaneseq
    %v1084 = vshrl.u32 %v1083, 7
    %v1085 = vsub.s32 2, %v1084
    %v1086 = vrot.slane %v1075, %v1085
    %v1087 = vadd.f32 %v1081, %v1086
    %v1088 = vadd.f32 %v1082, %v1086
    %v1089 = vxor.u32 %v1087, 2147483648
    %v1090 = vxor.u32 %v1088, 2147483648
    %v1091 = vmul.f32 %v1089, 1.442695
    %v1092 = vpow.pop %v1091
    %v1093 = vmul.f32 %v1090, 1.442695
    %v1094 = vpow.pop %v1093
    %v1095 = vadd.f32 %v1092, 1.0
    %v1096 = vadd.f32 %v1094, 1.0
    %v1097 = vrcp.pop %v1095
    %v1098 = vmul.f32 1.0, %v1097
    %v1099 = vrcp.pop %v1096
    %v1100 = vmul.f32 1.0, %v1099
    %v1101 = vlaneseq
    %v1102 = vshrl.u32 %v1101, 7
    %v1103 = vsub.s32 0, %v1102
    %v1104 = vrot.slane %v1075, %v1103
    %v1105 = vmul.f32 %v1104, %v1098
    %v1106 = vmul.f32 %v1104, %v1100
    %v1107 = vlaneseq
    %v1108 = vshrl.u32 %v1107, 7
    %v1109 = vsub.s32 3, %v1108
    %v1110 = vrot.slane %v1075, %v1109
    %v1111 = vmul.f32 %v1110, %v1072
    %v1112 = vmul.f32 %v1110, %v1073
    %v1113 = vadd.f32 %v1105, %v1111
    %v1114 = vadd.f32 %v1106, %v1112
    %v1115 = vlaneseq
    %v1116 = vshrl.u32 %v1115, 7
    %v1117 = vsub.s32 4, %v1116
    %v1118 = vrot.slane %v1075, %v1117
    %v1119 = vadd.f32 %v1113, %v1118
    %v1120 = vadd.f32 %v1114, %v1118
    %v1121 = vlaneseq
    %v1122 = vshrl.u32 %v1121, 7
    %v1123 = vsub.s32 6, %v1122
    %v1124 = vrot.slane %v1075, %v1123
    %v1125 = vmul.f32 %v1124, %v1072
    %v1126 = vmul.f32 %v1124, %v1073
    %v1127 = vlaneseq
    %v1128 = vshrl.u32 %v1127, 7
    %v1129 = vsub.s32 7, %v1128
    %v1130 = vrot.slane %v1075, %v1129
    %v1131 = vadd.f32 %v1125, %v1130
    %v1132 = vadd.f32 %v1126, %v1130
    %v1133 = vxor.u32 %v1131, 2147483648
    %v1134 = vxor.u32 %v1132, 2147483648
    %v1135 = vmul.f32 %v1133, 1.442695
    %v1136 = vpow.pop %v1135
    %v1137 = vmul.f32 %v1134, 1.442695
    %v1138 = vpow.pop %v1137
    %v1139 = vadd.f32 %v1136, 1.0
    %v1140 = vadd.f32 %v1138, 1.0
    %v1141 = vrcp.pop %v1139
    %v1142 = vmul.f32 1.0, %v1141
    %v1143 = vrcp.pop %v1140
    %v1144 = vmul.f32 1.0, %v1143
    %v1145 = vlaneseq
    %v1146 = vshrl.u32 %v1145, 7
    %v1147 = vsub.s32 5, %v1146
    %v1148 = vrot.slane %v1075, %v1147
    %v1149 = vmul.f32 %v1148, %v1142
    %v1150 = vmul.f32 %v1148, %v1144
    %v1151 = vlaneseq
    %v1152 = vshrl.u32 %v1151, 7
    %v1153 = vsub.s32 0, %v1152
    %v1154 = vrot.slane %v1076, %v1153
    %v1155 = vmul.f32 %v1154, %v1072
    %v1156 = vmul.f32 %v1154, %v1073
    %v1157 = vadd.f32 %v1149, %v1155
    %v1158 = vadd.f32 %v1150, %v1156
    %v1159 = vlaneseq
    %v1160 = vshrl.u32 %v1159, 7
    %v1161 = vsub.s32 1, %v1160
    %v1162 = vrot.slane %v1076, %v1161
    %v1163 = vadd.f32 %v1157, %v1162
    %v1164 = vadd.f32 %v1158, %v1162
    %v1165 = vsub.f32 %v1019, %v1119
    %v1166 = vsub.f32 %v1020, %v1120
    %v1167 = vmul.f32 %v1165, %v1163
    %v1168 = vmul.f32 %v1166, %v1164
    %v1169 = vadd.f32 %v1167, %v1119
    %v1170 = vadd.f32 %v1168, %v1120
    %v1171 = vsub.f32 %v1169, %v979
    %v1172 = vsub.f32 %v1170, %v979
    %v1173 = vadd.f32 %v992, 1e-06
    %v1174 = vrsqrt.pop %v1173
    %v1175 = vmul.f32 %v1171, %v1174
    %v1176 = vmul.f32 %v1172, %v1174
    %v1177 = vsub.f32 %v1175, %v995
    %v1178 = vsub.f32 %v1176, %v996
    %v1179 = vmul.f32 %v1177, %v1177
    %v1180 = vmul.f32 %v1178, %v1178
    %1181 = vadd.xlane.f32.xlu0 %v1179
    %v1182 = vpop.xlane.xlu0 %1181
    %1183 = vadd.xlane.f32.xlu0 %v1180
    %v1184 = vpop.xlane.xlu0 %1183
    %v1185 = vrsqrt.pop %v1182
    %v1186 = vmul.f32 %v1182, %v1185
    %vm1187 = vcmp.eq.f32.partialorder %v1182, inf
    %v1188 = vsel %vm1187, %v1182, %v1186
    %vm1189 = vcmp.eq.f32.partialorder %v1182, 0.0
    %v1190 = vand.u32 %v1182, 2147483648
    %v1191 = vsel %vm1189, %v1190, %v1188
    %v1192 = vrsqrt.pop %v1184
    %v1193 = vmul.f32 %v1184, %v1192
    %vm1194 = vcmp.eq.f32.partialorder %v1184, inf
    %v1195 = vsel %vm1194, %v1184, %v1193
    %vm1196 = vcmp.eq.f32.partialorder %v1184, 0.0
    %v1197 = vand.u32 %v1184, 2147483648
    %v1198 = vsel %vm1196, %v1197, %v1195
    %v1199 = vmul.f32 %v1191, 0.1
    %v1200 = vmul.f32 %v1198, 0.1
    %v1201 = vadd.f32 %v1199, 0.0
    %v1202 = vadd.f32 %v1200, 0.0
    %s1203 = scalar_lea.vmem [#allocation5], 512
    %v1204 = vld [vmem:[%s1203] sm:$0xff]
    %v1205 = vld [vmem:[%s1203 + $0x8] sm:$0xff]
    %v1206 = vld [vmem:[%s1203 + $0x10] sm:$0xff]
    %v1207 = vld [vmem:[%s1203 + $0x18] sm:$0xff]
    %v1208 = vld [vmem:[%s1203 + $0x20] sm:$0xff]
    %v1209 = vld [vmem:[%s1203 + $0x28] sm:$0xff]
    %v1210 = vld [vmem:[%s1203 + $0x30] sm:$0xff]
    %v1211 = vld [vmem:[%s1203 + $0x38] sm:$0xff]
    %v1212 = vld [vmem:[%s1203 + $0x40] sm:$0xff]
    %v1213 = vld [vmem:[%s1203 + $0x48] sm:$0xff]
    %v1214 = vld [vmem:[%s1203 + $0x50] sm:$0xff]
    %v1215 = vld [vmem:[%s1203 + $0x58] sm:$0xff]
    %v1216 = vld [vmem:[%s1203 + $0x60] sm:$0xff]
    %v1217 = vld [vmem:[%s1203 + $0x68] sm:$0xff]
    %v1218 = vld [vmem:[%s1203 + $0x70] sm:$0xff]
    %v1219 = vld [vmem:[%s1203 + $0x78] sm:$0xff]
    %1220 = vmatprep.subr.mxu0 0.0
    %1221 = vmatpush1.msra.mxu0 %v1204
    %1222 = vmatprep.subr.mxu0 0.0
    %1223 = vmatpush1.msra.mxu0 %v1205
    %1224 = vmatprep.subr.mxu0 0.0
    %1225 = vmatpush1.msra.mxu0 %v1206
    %1226 = vmatprep.subr.mxu0 0.0
    %1227 = vmatpush1.msra.mxu0 %v1207
    %1228 = vmatprep.subr.mxu0 0.0
    %1229 = vmatpush1.msra.mxu0 %v1208
    %1230 = vmatprep.subr.mxu0 0.0
    %1231 = vmatpush1.msra.mxu0 %v1209
    %1232 = vmatprep.subr.mxu0 0.0
    %1233 = vmatpush1.msra.mxu0 %v1210
    %1234 = vmatprep.subr.mxu0 0.0
    %1235 = vmatpush1.msra.mxu0 %v1211
    %1236 = vmatprep.subr.mxu0 0.0
    %1237 = vmatpush1.msra.mxu0 %v1212
    %1238 = vmatprep.subr.mxu0 0.0
    %1239 = vmatpush1.msra.mxu0 %v1213
    %1240 = vmatprep.subr.mxu0 0.0
    %1241 = vmatpush1.msra.mxu0 %v1214
    %1242 = vmatprep.subr.mxu0 0.0
    %1243 = vmatpush1.msra.mxu0 %v1215
    %1244 = vmatprep.subr.mxu0 0.0
    %1245 = vmatpush1.msra.mxu0 %v1216
    %1246 = vmatprep.subr.mxu0 0.0
    %1247 = vmatpush1.msra.mxu0 %v1217
    %1248 = vmatprep.subr.mxu0 0.0
    %1249 = vmatpush1.msra.mxu0 %v1218
    %1250 = vmatprep.subr.mxu0 0.0
    %1251 = vmatpush1.msra.mxu0 %v1219
    %1252 = vmatprep.subr.mxu0 0.0
    %1253 = vmatpush1.msra.mxu0 0.0
    %1254 = vmatprep.subr.mxu0 0.0
    %1255 = vmatpush1.msra.mxu0 0.0
    %1256 = vmatprep.subr.mxu0 0.0
    %1257 = vmatpush1.msra.mxu0 0.0
    %1258 = vmatprep.subr.mxu0 0.0
    %1259 = vmatpush1.msra.mxu0 0.0
    %1260 = vmatprep.subr.mxu0 0.0
    %1261 = vmatpush1.msra.mxu0 0.0
    %1262 = vmatprep.subr.mxu0 0.0
    %1263 = vmatpush1.msra.mxu0 0.0
    %1264 = vmatprep.subr.mxu0 0.0
    %1265 = vmatpush1.msra.mxu0 0.0
    %1266 = vmatprep.subr.mxu0 0.0
    %1267 = vmatpush1.msra.mxu0 0.0
    %1268 = vmatprep.subr.mxu0 0.0
    %1269 = vmatpush1.msra.mxu0 0.0
    %1270 = vmatprep.subr.mxu0 0.0
    %1271 = vmatpush1.msra.mxu0 0.0
    %1272 = vmatprep.subr.mxu0 0.0
    %1273 = vmatpush1.msra.mxu0 0.0
    %1274 = vmatprep.subr.mxu0 0.0
    %1275 = vmatpush1.msra.mxu0 0.0
    %1276 = vmatprep.subr.mxu0 0.0
    %1277 = vmatpush1.msra.mxu0 0.0
    %1278 = vmatprep.subr.mxu0 0.0
    %1279 = vmatpush1.msra.mxu0 0.0
    %1280 = vmatprep.subr.mxu0 0.0
    %1281 = vmatpush1.msra.mxu0 0.0
    %1282 = vmatprep.subr.mxu0 0.0
    %1283 = vmatpush1.msra.mxu0 0.0
    %1284 = vmatprep.mubr.f32.mxu0 0.0
    %1285 = vmatmul.mubr.f32.gmra.mrb[0].mxu0 %v1175
    %v1286 = vpop.f32.mrb[0].mxu0
    %v1287 = vadd.f32 0.0, %v1286
    %v1288 = vpop.f32.mrb[0].mxu0
    %1289 = vmatprep.mubr.f32.mxu0 0.0
    %1290 = vmatmul.mubr.f32.gmra.mrb[0].mxu0 %v1176
    %v1291 = vpop.f32.mrb[0].mxu0
    %v1292 = vadd.f32 0.0, %v1291
    %v1293 = vpop.f32.mrb[0].mxu0
    %1294 = vdwg.mxu0
    %v1295 = vadd.f32 %v1287, %v1292
    %v1296 = vrot.slane %v1295, 4
    %v1297 = vadd.f32 %v1295, %v1296
    %v1298 = vrot.slane %v1297, 2
    %v1299 = vadd.f32 %v1297, %v1298
    %v1300 = vrot.slane %v1299, 1
    %v1301 = vadd.f32 %v1299, %v1300
    %v1302 = vmul.f32 %v1301, %v173
    %v1303 = vsub.f32 %v1287, %v1302
    %v1304 = vsub.f32 %v1292, %v1302
    %v1305 = vmul.f32 %v1303, %v1303
    %v1306 = vmul.f32 %v1304, %v1304
    %v1307 = vadd.f32 %v1305, %v1306
    %v1308 = vrot.slane %v1307, 4
    %v1309 = vadd.f32 %v1307, %v1308
    %v1310 = vrot.slane %v1309, 2
    %v1311 = vadd.f32 %v1309, %v1310
    %v1312 = vrot.slane %v1311, 1
    %v1313 = vadd.f32 %v1311, %v1312
    %v1314 = vmul.f32 %v1313, %v173
    %v1315 = vadd.f32 %v1314, 1e-05
    %v1316 = vrsqrt.pop %v1315
    %v1317 = vmul.f32 %v1303, %v1316
    %v1318 = vmul.f32 %v1304, %v1316
    %s1319 = scalar_lea.vmem %s4, 64
    %v1320 = vld [vmem:[%s1319] sm:$0xff]
    %v1321 = vld [vmem:[%s1319 + $0x8] sm:$0x3]
    %v1322 = vlaneseq
    %v1323 = vshrl.u32 %v1322, 7
    %v1324 = vsub.s32 1, %v1323
    %v1325 = vrot.slane %v1320, %v1324
    %v1326 = vmul.f32 %v1325, %v1317
    %v1327 = vmul.f32 %v1325, %v1318
    %v1328 = vlaneseq
    %v1329 = vshrl.u32 %v1328, 7
    %v1330 = vsub.s32 2, %v1329
    %v1331 = vrot.slane %v1320, %v1330
    %v1332 = vadd.f32 %v1326, %v1331
    %v1333 = vadd.f32 %v1327, %v1331
    %v1334 = vxor.u32 %v1332, 2147483648
    %v1335 = vxor.u32 %v1333, 2147483648
    %v1336 = vmul.f32 %v1334, 1.442695
    %v1337 = vpow.pop %v1336
    %v1338 = vmul.f32 %v1335, 1.442695
    %v1339 = vpow.pop %v1338
    %v1340 = vadd.f32 %v1337, 1.0
    %v1341 = vadd.f32 %v1339, 1.0
    %v1342 = vrcp.pop %v1340
    %v1343 = vmul.f32 1.0, %v1342
    %v1344 = vrcp.pop %v1341
    %v1345 = vmul.f32 1.0, %v1344
    %v1346 = vlaneseq
    %v1347 = vshrl.u32 %v1346, 7
    %v1348 = vsub.s32 0, %v1347
    %v1349 = vrot.slane %v1320, %v1348
    %v1350 = vmul.f32 %v1349, %v1343
    %v1351 = vmul.f32 %v1349, %v1345
    %v1352 = vlaneseq
    %v1353 = vshrl.u32 %v1352, 7
    %v1354 = vsub.s32 3, %v1353
    %v1355 = vrot.slane %v1320, %v1354
    %v1356 = vmul.f32 %v1355, %v1317
    %v1357 = vmul.f32 %v1355, %v1318
    %v1358 = vadd.f32 %v1350, %v1356
    %v1359 = vadd.f32 %v1351, %v1357
    %v1360 = vlaneseq
    %v1361 = vshrl.u32 %v1360, 7
    %v1362 = vsub.s32 4, %v1361
    %v1363 = vrot.slane %v1320, %v1362
    %v1364 = vadd.f32 %v1358, %v1363
    %v1365 = vadd.f32 %v1359, %v1363
    %v1366 = vlaneseq
    %v1367 = vshrl.u32 %v1366, 7
    %v1368 = vsub.s32 6, %v1367
    %v1369 = vrot.slane %v1320, %v1368
    %v1370 = vmul.f32 %v1369, %v1317
    %v1371 = vmul.f32 %v1369, %v1318
    %v1372 = vlaneseq
    %v1373 = vshrl.u32 %v1372, 7
    %v1374 = vsub.s32 7, %v1373
    %v1375 = vrot.slane %v1320, %v1374
    %v1376 = vadd.f32 %v1370, %v1375
    %v1377 = vadd.f32 %v1371, %v1375
    %v1378 = vxor.u32 %v1376, 2147483648
    %v1379 = vxor.u32 %v1377, 2147483648
    %v1380 = vmul.f32 %v1378, 1.442695
    %v1381 = vpow.pop %v1380
    %v1382 = vmul.f32 %v1379, 1.442695
    %v1383 = vpow.pop %v1382
    %v1384 = vadd.f32 %v1381, 1.0
    %v1385 = vadd.f32 %v1383, 1.0
    %v1386 = vrcp.pop %v1384
    %v1387 = vmul.f32 1.0, %v1386
    %v1388 = vrcp.pop %v1385
    %v1389 = vmul.f32 1.0, %v1388
    %v1390 = vlaneseq
    %v1391 = vshrl.u32 %v1390, 7
    %v1392 = vsub.s32 5, %v1391
    %v1393 = vrot.slane %v1320, %v1392
    %v1394 = vmul.f32 %v1393, %v1387
    %v1395 = vmul.f32 %v1393, %v1389
    %v1396 = vlaneseq
    %v1397 = vshrl.u32 %v1396, 7
    %v1398 = vsub.s32 0, %v1397
    %v1399 = vrot.slane %v1321, %v1398
    %v1400 = vmul.f32 %v1399, %v1317
    %v1401 = vmul.f32 %v1399, %v1318
    %v1402 = vadd.f32 %v1394, %v1400
    %v1403 = vadd.f32 %v1395, %v1401
    %v1404 = vlaneseq
    %v1405 = vshrl.u32 %v1404, 7
    %v1406 = vsub.s32 1, %v1405
    %v1407 = vrot.slane %v1321, %v1406
    %v1408 = vadd.f32 %v1402, %v1407
    %v1409 = vadd.f32 %v1403, %v1407
    %v1410 = vsub.f32 %v858, %v1364
    %v1411 = vsub.f32 %v859, %v1365
    %v1412 = vmul.f32 %v1410, %v1408
    %v1413 = vmul.f32 %v1411, %v1409
    %v1414 = vadd.f32 %v1412, %v1364
    %v1415 = vadd.f32 %v1413, %v1365
    %v1416 = vsub.f32 %v1414, %v818
    %v1417 = vsub.f32 %v1415, %v818
    %v1418 = vadd.f32 %v831, 1e-06
    %v1419 = vrsqrt.pop %v1418
    %v1420 = vmul.f32 %v1416, %v1419
    %v1421 = vmul.f32 %v1417, %v1419
    %v1422 = vsub.f32 %v1420, %v834
    %v1423 = vsub.f32 %v1421, %v835
    %v1424 = vmul.f32 %v1422, %v1422
    %v1425 = vmul.f32 %v1423, %v1423
    %1426 = vadd.xlane.f32.xlu0 %v1424
    %v1427 = vpop.xlane.xlu0 %1426
    %1428 = vadd.xlane.f32.xlu0 %v1425
    %v1429 = vpop.xlane.xlu0 %1428
    %v1430 = vrsqrt.pop %v1427
    %v1431 = vmul.f32 %v1427, %v1430
    %vm1432 = vcmp.eq.f32.partialorder %v1427, inf
    %v1433 = vsel %vm1432, %v1427, %v1431
    %vm1434 = vcmp.eq.f32.partialorder %v1427, 0.0
    %v1435 = vand.u32 %v1427, 2147483648
    %v1436 = vsel %vm1434, %v1435, %v1433
    %v1437 = vrsqrt.pop %v1429
    %v1438 = vmul.f32 %v1429, %v1437
    %vm1439 = vcmp.eq.f32.partialorder %v1429, inf
    %v1440 = vsel %vm1439, %v1429, %v1438
    %vm1441 = vcmp.eq.f32.partialorder %v1429, 0.0
    %v1442 = vand.u32 %v1429, 2147483648
    %v1443 = vsel %vm1441, %v1442, %v1440
    %v1444 = vmul.f32 %v1436, 0.1
    %v1445 = vmul.f32 %v1443, 0.1
    %v1446 = vadd.f32 %v1201, %v1444
    %v1447 = vadd.f32 %v1202, %v1445
    %s1448 = scalar_lea.vmem [#allocation5], 384
    %v1449 = vld [vmem:[%s1448] sm:$0xff]
    %v1450 = vld [vmem:[%s1448 + $0x8] sm:$0xff]
    %v1451 = vld [vmem:[%s1448 + $0x10] sm:$0xff]
    %v1452 = vld [vmem:[%s1448 + $0x18] sm:$0xff]
    %v1453 = vld [vmem:[%s1448 + $0x20] sm:$0xff]
    %v1454 = vld [vmem:[%s1448 + $0x28] sm:$0xff]
    %v1455 = vld [vmem:[%s1448 + $0x30] sm:$0xff]
    %v1456 = vld [vmem:[%s1448 + $0x38] sm:$0xff]
    %v1457 = vld [vmem:[%s1448 + $0x40] sm:$0xff]
    %v1458 = vld [vmem:[%s1448 + $0x48] sm:$0xff]
    %v1459 = vld [vmem:[%s1448 + $0x50] sm:$0xff]
    %v1460 = vld [vmem:[%s1448 + $0x58] sm:$0xff]
    %v1461 = vld [vmem:[%s1448 + $0x60] sm:$0xff]
    %v1462 = vld [vmem:[%s1448 + $0x68] sm:$0xff]
    %v1463 = vld [vmem:[%s1448 + $0x70] sm:$0xff]
    %v1464 = vld [vmem:[%s1448 + $0x78] sm:$0xff]
    %1465 = vmatprep.subr.mxu0 0.0
    %1466 = vmatpush1.msra.mxu0 %v1449
    %1467 = vmatprep.subr.mxu0 0.0
    %1468 = vmatpush1.msra.mxu0 %v1450
    %1469 = vmatprep.subr.mxu0 0.0
    %1470 = vmatpush1.msra.mxu0 %v1451
    %1471 = vmatprep.subr.mxu0 0.0
    %1472 = vmatpush1.msra.mxu0 %v1452
    %1473 = vmatprep.subr.mxu0 0.0
    %1474 = vmatpush1.msra.mxu0 %v1453
    %1475 = vmatprep.subr.mxu0 0.0
    %1476 = vmatpush1.msra.mxu0 %v1454
    %1477 = vmatprep.subr.mxu0 0.0
    %1478 = vmatpush1.msra.mxu0 %v1455
    %1479 = vmatprep.subr.mxu0 0.0
    %1480 = vmatpush1.msra.mxu0 %v1456
    %1481 = vmatprep.subr.mxu0 0.0
    %1482 = vmatpush1.msra.mxu0 %v1457
    %1483 = vmatprep.subr.mxu0 0.0
    %1484 = vmatpush1.msra.mxu0 %v1458
    %1485 = vmatprep.subr.mxu0 0.0
    %1486 = vmatpush1.msra.mxu0 %v1459
    %1487 = vmatprep.subr.mxu0 0.0
    %1488 = vmatpush1.msra.mxu0 %v1460
    %1489 = vmatprep.subr.mxu0 0.0
    %1490 = vmatpush1.msra.mxu0 %v1461
    %1491 = vmatprep.subr.mxu0 0.0
    %1492 = vmatpush1.msra.mxu0 %v1462
    %1493 = vmatprep.subr.mxu0 0.0
    %1494 = vmatpush1.msra.mxu0 %v1463
    %1495 = vmatprep.subr.mxu0 0.0
    %1496 = vmatpush1.msra.mxu0 %v1464
    %1497 = vmatprep.subr.mxu0 0.0
    %1498 = vmatpush1.msra.mxu0 0.0
    %1499 = vmatprep.subr.mxu0 0.0
    %1500 = vmatpush1.msra.mxu0 0.0
    %1501 = vmatprep.subr.mxu0 0.0
    %1502 = vmatpush1.msra.mxu0 0.0
    %1503 = vmatprep.subr.mxu0 0.0
    %1504 = vmatpush1.msra.mxu0 0.0
    %1505 = vmatprep.subr.mxu0 0.0
    %1506 = vmatpush1.msra.mxu0 0.0
    %1507 = vmatprep.subr.mxu0 0.0
    %1508 = vmatpush1.msra.mxu0 0.0
    %1509 = vmatprep.subr.mxu0 0.0
    %1510 = vmatpush1.msra.mxu0 0.0
    %1511 = vmatprep.subr.mxu0 0.0
    %1512 = vmatpush1.msra.mxu0 0.0
    %1513 = vmatprep.subr.mxu0 0.0
    %1514 = vmatpush1.msra.mxu0 0.0
    %1515 = vmatprep.subr.mxu0 0.0
    %1516 = vmatpush1.msra.mxu0 0.0
    %1517 = vmatprep.subr.mxu0 0.0
    %1518 = vmatpush1.msra.mxu0 0.0
    %1519 = vmatprep.subr.mxu0 0.0
    %1520 = vmatpush1.msra.mxu0 0.0
    %1521 = vmatprep.subr.mxu0 0.0
    %1522 = vmatpush1.msra.mxu0 0.0
    %1523 = vmatprep.subr.mxu0 0.0
    %1524 = vmatpush1.msra.mxu0 0.0
    %1525 = vmatprep.subr.mxu0 0.0
    %1526 = vmatpush1.msra.mxu0 0.0
    %1527 = vmatprep.subr.mxu0 0.0
    %1528 = vmatpush1.msra.mxu0 0.0
    %1529 = vmatprep.mubr.f32.mxu0 0.0
    %1530 = vmatmul.mubr.f32.gmra.mrb[0].mxu0 %v1420
    %v1531 = vpop.f32.mrb[0].mxu0
    %v1532 = vadd.f32 0.0, %v1531
    %v1533 = vpop.f32.mrb[0].mxu0
    %1534 = vmatprep.mubr.f32.mxu0 0.0
    %1535 = vmatmul.mubr.f32.gmra.mrb[0].mxu0 %v1421
    %v1536 = vpop.f32.mrb[0].mxu0
    %v1537 = vadd.f32 0.0, %v1536
    %v1538 = vpop.f32.mrb[0].mxu0
    %1539 = vdwg.mxu0
    %v1540 = vadd.f32 %v1532, %v1537
    %v1541 = vrot.slane %v1540, 4
    %v1542 = vadd.f32 %v1540, %v1541
    %v1543 = vrot.slane %v1542, 2
    %v1544 = vadd.f32 %v1542, %v1543
    %v1545 = vrot.slane %v1544, 1
    %v1546 = vadd.f32 %v1544, %v1545
    %v1547 = vmul.f32 %v1546, %v173
    %v1548 = vsub.f32 %v1532, %v1547
    %v1549 = vsub.f32 %v1537, %v1547
    %v1550 = vmul.f32 %v1548, %v1548
    %v1551 = vmul.f32 %v1549, %v1549
    %v1552 = vadd.f32 %v1550, %v1551
    %v1553 = vrot.slane %v1552, 4
    %v1554 = vadd.f32 %v1552, %v1553
    %v1555 = vrot.slane %v1554, 2
    %v1556 = vadd.f32 %v1554, %v1555
    %v1557 = vrot.slane %v1556, 1
    %v1558 = vadd.f32 %v1556, %v1557
    %v1559 = vmul.f32 %v1558, %v173
    %v1560 = vadd.f32 %v1559, 1e-05
    %v1561 = vrsqrt.pop %v1560
    %v1562 = vmul.f32 %v1548, %v1561
    %v1563 = vmul.f32 %v1549, %v1561
    %s1564 = scalar_lea.vmem %s4, 48
    %v1565 = vld [vmem:[%s1564] sm:$0xff]
    %v1566 = vld [vmem:[%s1564 + $0x8] sm:$0x3]
    %v1567 = vlaneseq
    %v1568 = vshrl.u32 %v1567, 7
    %v1569 = vsub.s32 1, %v1568
    %v1570 = vrot.slane %v1565, %v1569
    %v1571 = vmul.f32 %v1570, %v1562
    %v1572 = vmul.f32 %v1570, %v1563
    %v1573 = vlaneseq
    %v1574 = vshrl.u32 %v1573, 7
    %v1575 = vsub.s32 2, %v1574
    %v1576 = vrot.slane %v1565, %v1575
    %v1577 = vadd.f32 %v1571, %v1576
    %v1578 = vadd.f32 %v1572, %v1576
    %v1579 = vxor.u32 %v1577, 2147483648
    %v1580 = vxor.u32 %v1578, 2147483648
    %v1581 = vmul.f32 %v1579, 1.442695
    %v1582 = vpow.pop %v1581
    %v1583 = vmul.f32 %v1580, 1.442695
    %v1584 = vpow.pop %v1583
    %v1585 = vadd.f32 %v1582, 1.0
    %v1586 = vadd.f32 %v1584, 1.0
    %v1587 = vrcp.pop %v1585
    %v1588 = vmul.f32 1.0, %v1587
    %v1589 = vrcp.pop %v1586
    %v1590 = vmul.f32 1.0, %v1589
    %v1591 = vlaneseq
    %v1592 = vshrl.u32 %v1591, 7
    %v1593 = vsub.s32 0, %v1592
    %v1594 = vrot.slane %v1565, %v1593
    %v1595 = vmul.f32 %v1594, %v1588
    %v1596 = vmul.f32 %v1594, %v1590
    %v1597 = vlaneseq
    %v1598 = vshrl.u32 %v1597, 7
    %v1599 = vsub.s32 3, %v1598
    %v1600 = vrot.slane %v1565, %v1599
    %v1601 = vmul.f32 %v1600, %v1562
    %v1602 = vmul.f32 %v1600, %v1563
    %v1603 = vadd.f32 %v1595, %v1601
    %v1604 = vadd.f32 %v1596, %v1602
    %v1605 = vlaneseq
    %v1606 = vshrl.u32 %v1605, 7
    %v1607 = vsub.s32 4, %v1606
    %v1608 = vrot.slane %v1565, %v1607
    %v1609 = vadd.f32 %v1603, %v1608
    %v1610 = vadd.f32 %v1604, %v1608
    %v1611 = vlaneseq
    %v1612 = vshrl.u32 %v1611, 7
    %v1613 = vsub.s32 6, %v1612
    %v1614 = vrot.slane %v1565, %v1613
    %v1615 = vmul.f32 %v1614, %v1562
    %v1616 = vmul.f32 %v1614, %v1563
    %v1617 = vlaneseq
    %v1618 = vshrl.u32 %v1617, 7
    %v1619 = vsub.s32 7, %v1618
    %v1620 = vrot.slane %v1565, %v1619
    %v1621 = vadd.f32 %v1615, %v1620
    %v1622 = vadd.f32 %v1616, %v1620
    %v1623 = vxor.u32 %v1621, 2147483648
    %v1624 = vxor.u32 %v1622, 2147483648
    %v1625 = vmul.f32 %v1623, 1.442695
    %v1626 = vpow.pop %v1625
    %v1627 = vmul.f32 %v1624, 1.442695
    %v1628 = vpow.pop %v1627
    %v1629 = vadd.f32 %v1626, 1.0
    %v1630 = vadd.f32 %v1628, 1.0
    %v1631 = vrcp.pop %v1629
    %v1632 = vmul.f32 1.0, %v1631
    %v1633 = vrcp.pop %v1630
    %v1634 = vmul.f32 1.0, %v1633
    %v1635 = vlaneseq
    %v1636 = vshrl.u32 %v1635, 7
    %v1637 = vsub.s32 5, %v1636
    %v1638 = vrot.slane %v1565, %v1637
    %v1639 = vmul.f32 %v1638, %v1632
    %v1640 = vmul.f32 %v1638, %v1634
    %v1641 = vlaneseq
    %v1642 = vshrl.u32 %v1641, 7
    %v1643 = vsub.s32 0, %v1642
    %v1644 = vrot.slane %v1566, %v1643
    %v1645 = vmul.f32 %v1644, %v1562
    %v1646 = vmul.f32 %v1644, %v1563
    %v1647 = vadd.f32 %v1639, %v1645
    %v1648 = vadd.f32 %v1640, %v1646
    %v1649 = vlaneseq
    %v1650 = vshrl.u32 %v1649, 7
    %v1651 = vsub.s32 1, %v1650
    %v1652 = vrot.slane %v1566, %v1651
    %v1653 = vadd.f32 %v1647, %v1652
    %v1654 = vadd.f32 %v1648, %v1652
    %v1655 = vsub.f32 %v697, %v1609
    %v1656 = vsub.f32 %v698, %v1610
    %v1657 = vmul.f32 %v1655, %v1653
    %v1658 = vmul.f32 %v1656, %v1654
    %v1659 = vadd.f32 %v1657, %v1609
    %v1660 = vadd.f32 %v1658, %v1610
    %v1661 = vsub.f32 %v1659, %v657
    %v1662 = vsub.f32 %v1660, %v657
    %v1663 = vadd.f32 %v670, 1e-06
    %v1664 = vrsqrt.pop %v1663
    %v1665 = vmul.f32 %v1661, %v1664
    %v1666 = vmul.f32 %v1662, %v1664
    %v1667 = vsub.f32 %v1665, %v673
    %v1668 = vsub.f32 %v1666, %v674
    %v1669 = vmul.f32 %v1667, %v1667
    %v1670 = vmul.f32 %v1668, %v1668
    %1671 = vadd.xlane.f32.xlu0 %v1669
    %v1672 = vpop.xlane.xlu0 %1671
    %1673 = vadd.xlane.f32.xlu0 %v1670
    %v1674 = vpop.xlane.xlu0 %1673
    %v1675 = vrsqrt.pop %v1672
    %v1676 = vmul.f32 %v1672, %v1675
    %vm1677 = vcmp.eq.f32.partialorder %v1672, inf
    %v1678 = vsel %vm1677, %v1672, %v1676
    %vm1679 = vcmp.eq.f32.partialorder %v1672, 0.0
    %v1680 = vand.u32 %v1672, 2147483648
    %v1681 = vsel %vm1679, %v1680, %v1678
    %v1682 = vrsqrt.pop %v1674
    %v1683 = vmul.f32 %v1674, %v1682
    %vm1684 = vcmp.eq.f32.partialorder %v1674, inf
    %v1685 = vsel %vm1684, %v1674, %v1683
    %vm1686 = vcmp.eq.f32.partialorder %v1674, 0.0
    %v1687 = vand.u32 %v1674, 2147483648
    %v1688 = vsel %vm1686, %v1687, %v1685
    %v1689 = vmul.f32 %v1681, 0.1
    %v1690 = vmul.f32 %v1688, 0.1
    %v1691 = vadd.f32 %v1446, %v1689
    %v1692 = vadd.f32 %v1447, %v1690
    %s1693 = scalar_lea.vmem [#allocation5], 256
    %v1694 = vld [vmem:[%s1693] sm:$0xff]
    %v1695 = vld [vmem:[%s1693 + $0x8] sm:$0xff]
    %v1696 = vld [vmem:[%s1693 + $0x10] sm:$0xff]
    %v1697 = vld [vmem:[%s1693 + $0x18] sm:$0xff]
    %v1698 = vld [vmem:[%s1693 + $0x20] sm:$0xff]
    %v1699 = vld [vmem:[%s1693 + $0x28] sm:$0xff]
    %v1700 = vld [vmem:[%s1693 + $0x30] sm:$0xff]
    %v1701 = vld [vmem:[%s1693 + $0x38] sm:$0xff]
    %v1702 = vld [vmem:[%s1693 + $0x40] sm:$0xff]
    %v1703 = vld [vmem:[%s1693 + $0x48] sm:$0xff]
    %v1704 = vld [vmem:[%s1693 + $0x50] sm:$0xff]
    %v1705 = vld [vmem:[%s1693 + $0x58] sm:$0xff]
    %v1706 = vld [vmem:[%s1693 + $0x60] sm:$0xff]
    %v1707 = vld [vmem:[%s1693 + $0x68] sm:$0xff]
    %v1708 = vld [vmem:[%s1693 + $0x70] sm:$0xff]
    %v1709 = vld [vmem:[%s1693 + $0x78] sm:$0xff]
    %1710 = vmatprep.subr.mxu0 0.0
    %1711 = vmatpush1.msra.mxu0 %v1694
    %1712 = vmatprep.subr.mxu0 0.0
    %1713 = vmatpush1.msra.mxu0 %v1695
    %1714 = vmatprep.subr.mxu0 0.0
    %1715 = vmatpush1.msra.mxu0 %v1696
    %1716 = vmatprep.subr.mxu0 0.0
    %1717 = vmatpush1.msra.mxu0 %v1697
    %1718 = vmatprep.subr.mxu0 0.0
    %1719 = vmatpush1.msra.mxu0 %v1698
    %1720 = vmatprep.subr.mxu0 0.0
    %1721 = vmatpush1.msra.mxu0 %v1699
    %1722 = vmatprep.subr.mxu0 0.0
    %1723 = vmatpush1.msra.mxu0 %v1700
    %1724 = vmatprep.subr.mxu0 0.0
    %1725 = vmatpush1.msra.mxu0 %v1701
    %1726 = vmatprep.subr.mxu0 0.0
    %1727 = vmatpush1.msra.mxu0 %v1702
    %1728 = vmatprep.subr.mxu0 0.0
    %1729 = vmatpush1.msra.mxu0 %v1703
    %1730 = vmatprep.subr.mxu0 0.0
    %1731 = vmatpush1.msra.mxu0 %v1704
    %1732 = vmatprep.subr.mxu0 0.0
    %1733 = vmatpush1.msra.mxu0 %v1705
    %1734 = vmatprep.subr.mxu0 0.0
    %1735 = vmatpush1.msra.mxu0 %v1706
    %1736 = vmatprep.subr.mxu0 0.0
    %1737 = vmatpush1.msra.mxu0 %v1707
    %1738 = vmatprep.subr.mxu0 0.0
    %1739 = vmatpush1.msra.mxu0 %v1708
    %1740 = vmatprep.subr.mxu0 0.0
    %1741 = vmatpush1.msra.mxu0 %v1709
    %1742 = vmatprep.subr.mxu0 0.0
    %1743 = vmatpush1.msra.mxu0 0.0
    %1744 = vmatprep.subr.mxu0 0.0
    %1745 = vmatpush1.msra.mxu0 0.0
    %1746 = vmatprep.subr.mxu0 0.0
    %1747 = vmatpush1.msra.mxu0 0.0
    %1748 = vmatprep.subr.mxu0 0.0
    %1749 = vmatpush1.msra.mxu0 0.0
    %1750 = vmatprep.subr.mxu0 0.0
    %1751 = vmatpush1.msra.mxu0 0.0
    %1752 = vmatprep.subr.mxu0 0.0
    %1753 = vmatpush1.msra.mxu0 0.0
    %1754 = vmatprep.subr.mxu0 0.0
    %1755 = vmatpush1.msra.mxu0 0.0
    %1756 = vmatprep.subr.mxu0 0.0
    %1757 = vmatpush1.msra.mxu0 0.0
    %1758 = vmatprep.subr.mxu0 0.0
    %1759 = vmatpush1.msra.mxu0 0.0
    %1760 = vmatprep.subr.mxu0 0.0
    %1761 = vmatpush1.msra.mxu0 0.0
    %1762 = vmatprep.subr.mxu0 0.0
    %1763 = vmatpush1.msra.mxu0 0.0
    %1764 = vmatprep.subr.mxu0 0.0
    %1765 = vmatpush1.msra.mxu0 0.0
    %1766 = vmatprep.subr.mxu0 0.0
    %1767 = vmatpush1.msra.mxu0 0.0
    %1768 = vmatprep.subr.mxu0 0.0
    %1769 = vmatpush1.msra.mxu0 0.0
    %1770 = vmatprep.subr.mxu0 0.0
    %1771 = vmatpush1.msra.mxu0 0.0
    %1772 = vmatprep.subr.mxu0 0.0
    %1773 = vmatpush1.msra.mxu0 0.0
    %1774 = vmatprep.mubr.f32.mxu0 0.0
    %1775 = vmatmul.mubr.f32.gmra.mrb[0].mxu0 %v1665
    %v1776 = vpop.f32.mrb[0].mxu0
    %v1777 = vadd.f32 0.0, %v1776
    %v1778 = vpop.f32.mrb[0].mxu0
    %1779 = vmatprep.mubr.f32.mxu0 0.0
    %1780 = vmatmul.mubr.f32.gmra.mrb[0].mxu0 %v1666
    %v1781 = vpop.f32.mrb[0].mxu0
    %v1782 = vadd.f32 0.0, %v1781
    %v1783 = vpop.f32.mrb[0].mxu0
    %1784 = vdwg.mxu0
    %v1785 = vadd.f32 %v1777, %v1782
    %v1786 = vrot.slane %v1785, 4
    %v1787 = vadd.f32 %v1785, %v1786
    %v1788 = vrot.slane %v1787, 2
    %v1789 = vadd.f32 %v1787, %v1788
    %v1790 = vrot.slane %v1789, 1
    %v1791 = vadd.f32 %v1789, %v1790
    %v1792 = vmul.f32 %v1791, %v173
    %v1793 = vsub.f32 %v1777, %v1792
    %v1794 = vsub.f32 %v1782, %v1792
    %v1795 = vmul.f32 %v1793, %v1793
    %v1796 = vmul.f32 %v1794, %v1794
    %v1797 = vadd.f32 %v1795, %v1796
    %v1798 = vrot.slane %v1797, 4
    %v1799 = vadd.f32 %v1797, %v1798
    %v1800 = vrot.slane %v1799, 2
    %v1801 = vadd.f32 %v1799, %v1800
    %v1802 = vrot.slane %v1801, 1
    %v1803 = vadd.f32 %v1801, %v1802
    %v1804 = vmul.f32 %v1803, %v173
    %v1805 = vadd.f32 %v1804, 1e-05
    %v1806 = vrsqrt.pop %v1805
    %v1807 = vmul.f32 %v1793, %v1806
    %v1808 = vmul.f32 %v1794, %v1806
    %s1809 = scalar_lea.vmem %s4, 32
    %v1810 = vld [vmem:[%s1809] sm:$0xff]
    %v1811 = vld [vmem:[%s1809 + $0x8] sm:$0x3]
    %v1812 = vlaneseq
    %v1813 = vshrl.u32 %v1812, 7
    %v1814 = vsub.s32 1, %v1813
    %v1815 = vrot.slane %v1810, %v1814
    %v1816 = vmul.f32 %v1815, %v1807
    %v1817 = vmul.f32 %v1815, %v1808
    %v1818 = vlaneseq
    %v1819 = vshrl.u32 %v1818, 7
    %v1820 = vsub.s32 2, %v1819
    %v1821 = vrot.slane %v1810, %v1820
    %v1822 = vadd.f32 %v1816, %v1821
    %v1823 = vadd.f32 %v1817, %v1821
    %v1824 = vxor.u32 %v1822, 2147483648
    %v1825 = vxor.u32 %v1823, 2147483648
    %v1826 = vmul.f32 %v1824, 1.442695
    %v1827 = vpow.pop %v1826
    %v1828 = vmul.f32 %v1825, 1.442695
    %v1829 = vpow.pop %v1828
    %v1830 = vadd.f32 %v1827, 1.0
    %v1831 = vadd.f32 %v1829, 1.0
    %v1832 = vrcp.pop %v1830
    %v1833 = vmul.f32 1.0, %v1832
    %v1834 = vrcp.pop %v1831
    %v1835 = vmul.f32 1.0, %v1834
    %v1836 = vlaneseq
    %v1837 = vshrl.u32 %v1836, 7
    %v1838 = vsub.s32 0, %v1837
    %v1839 = vrot.slane %v1810, %v1838
    %v1840 = vmul.f32 %v1839, %v1833
    %v1841 = vmul.f32 %v1839, %v1835
    %v1842 = vlaneseq
    %v1843 = vshrl.u32 %v1842, 7
    %v1844 = vsub.s32 3, %v1843
    %v1845 = vrot.slane %v1810, %v1844
    %v1846 = vmul.f32 %v1845, %v1807
    %v1847 = vmul.f32 %v1845, %v1808
    %v1848 = vadd.f32 %v1840, %v1846
    %v1849 = vadd.f32 %v1841, %v1847
    %v1850 = vlaneseq
    %v1851 = vshrl.u32 %v1850, 7
    %v1852 = vsub.s32 4, %v1851
    %v1853 = vrot.slane %v1810, %v1852
    %v1854 = vadd.f32 %v1848, %v1853
    %v1855 = vadd.f32 %v1849, %v1853
    %v1856 = vlaneseq
    %v1857 = vshrl.u32 %v1856, 7
    %v1858 = vsub.s32 6, %v1857
    %v1859 = vrot.slane %v1810, %v1858
    %v1860 = vmul.f32 %v1859, %v1807
    %v1861 = vmul.f32 %v1859, %v1808
    %v1862 = vlaneseq
    %v1863 = vshrl.u32 %v1862, 7
    %v1864 = vsub.s32 7, %v1863
    %v1865 = vrot.slane %v1810, %v1864
    %v1866 = vadd.f32 %v1860, %v1865
    %v1867 = vadd.f32 %v1861, %v1865
    %v1868 = vxor.u32 %v1866, 2147483648
    %v1869 = vxor.u32 %v1867, 2147483648
    %v1870 = vmul.f32 %v1868, 1.442695
    %v1871 = vpow.pop %v1870
    %v1872 = vmul.f32 %v1869, 1.442695
    %v1873 = vpow.pop %v1872
    %v1874 = vadd.f32 %v1871, 1.0
    %v1875 = vadd.f32 %v1873, 1.0
    %v1876 = vrcp.pop %v1874
    %v1877 = vmul.f32 1.0, %v1876
    %v1878 = vrcp.pop %v1875
    %v1879 = vmul.f32 1.0, %v1878
    %v1880 = vlaneseq
    %v1881 = vshrl.u32 %v1880, 7
    %v1882 = vsub.s32 5, %v1881
    %v1883 = vrot.slane %v1810, %v1882
    %v1884 = vmul.f32 %v1883, %v1877
    %v1885 = vmul.f32 %v1883, %v1879
    %v1886 = vlaneseq
    %v1887 = vshrl.u32 %v1886, 7
    %v1888 = vsub.s32 0, %v1887
    %v1889 = vrot.slane %v1811, %v1888
    %v1890 = vmul.f32 %v1889, %v1807
    %v1891 = vmul.f32 %v1889, %v1808
    %v1892 = vadd.f32 %v1884, %v1890
    %v1893 = vadd.f32 %v1885, %v1891
    %v1894 = vlaneseq
    %v1895 = vshrl.u32 %v1894, 7
    %v1896 = vsub.s32 1, %v1895
    %v1897 = vrot.slane %v1811, %v1896
    %v1898 = vadd.f32 %v1892, %v1897
    %v1899 = vadd.f32 %v1893, %v1897
    %v1900 = vsub.f32 %v536, %v1854
    %v1901 = vsub.f32 %v537, %v1855
    %v1902 = vmul.f32 %v1900, %v1898
    %v1903 = vmul.f32 %v1901, %v1899
    %v1904 = vadd.f32 %v1902, %v1854
    %v1905 = vadd.f32 %v1903, %v1855
    %v1906 = vsub.f32 %v1904, %v496
    %v1907 = vsub.f32 %v1905, %v496
    %v1908 = vadd.f32 %v509, 1e-06
    %v1909 = vrsqrt.pop %v1908
    %v1910 = vmul.f32 %v1906, %v1909
    %v1911 = vmul.f32 %v1907, %v1909
    %v1912 = vsub.f32 %v1910, %v512
    %v1913 = vsub.f32 %v1911, %v513
    %v1914 = vmul.f32 %v1912, %v1912
    %v1915 = vmul.f32 %v1913, %v1913
    %1916 = vadd.xlane.f32.xlu0 %v1914
    %v1917 = vpop.xlane.xlu0 %1916
    %1918 = vadd.xlane.f32.xlu0 %v1915
    %v1919 = vpop.xlane.xlu0 %1918
    %v1920 = vrsqrt.pop %v1917
    %v1921 = vmul.f32 %v1917, %v1920
    %vm1922 = vcmp.eq.f32.partialorder %v1917, inf
    %v1923 = vsel %vm1922, %v1917, %v1921
    %vm1924 = vcmp.eq.f32.partialorder %v1917, 0.0
    %v1925 = vand.u32 %v1917, 2147483648
    %v1926 = vsel %vm1924, %v1925, %v1923
    %v1927 = vrsqrt.pop %v1919
    %v1928 = vmul.f32 %v1919, %v1927
    %vm1929 = vcmp.eq.f32.partialorder %v1919, inf
    %v1930 = vsel %vm1929, %v1919, %v1928
    %vm1931 = vcmp.eq.f32.partialorder %v1919, 0.0
    %v1932 = vand.u32 %v1919, 2147483648
    %v1933 = vsel %vm1931, %v1932, %v1930
    %v1934 = vmul.f32 %v1926, 0.1
    %v1935 = vmul.f32 %v1933, 0.1
    %v1936 = vadd.f32 %v1691, %v1934
    %v1937 = vadd.f32 %v1692, %v1935
    %s1938 = scalar_lea.vmem [#allocation5], 128
    %v1939 = vld [vmem:[%s1938] sm:$0xff]
    %v1940 = vld [vmem:[%s1938 + $0x8] sm:$0xff]
    %v1941 = vld [vmem:[%s1938 + $0x10] sm:$0xff]
    %v1942 = vld [vmem:[%s1938 + $0x18] sm:$0xff]
    %v1943 = vld [vmem:[%s1938 + $0x20] sm:$0xff]
    %v1944 = vld [vmem:[%s1938 + $0x28] sm:$0xff]
    %v1945 = vld [vmem:[%s1938 + $0x30] sm:$0xff]
    %v1946 = vld [vmem:[%s1938 + $0x38] sm:$0xff]
    %v1947 = vld [vmem:[%s1938 + $0x40] sm:$0xff]
    %v1948 = vld [vmem:[%s1938 + $0x48] sm:$0xff]
    %v1949 = vld [vmem:[%s1938 + $0x50] sm:$0xff]
    %v1950 = vld [vmem:[%s1938 + $0x58] sm:$0xff]
    %v1951 = vld [vmem:[%s1938 + $0x60] sm:$0xff]
    %v1952 = vld [vmem:[%s1938 + $0x68] sm:$0xff]
    %v1953 = vld [vmem:[%s1938 + $0x70] sm:$0xff]
    %v1954 = vld [vmem:[%s1938 + $0x78] sm:$0xff]
    %1955 = vmatprep.subr.mxu0 0.0
    %1956 = vmatpush1.msra.mxu0 %v1939
    %1957 = vmatprep.subr.mxu0 0.0
    %1958 = vmatpush1.msra.mxu0 %v1940
    %1959 = vmatprep.subr.mxu0 0.0
    %1960 = vmatpush1.msra.mxu0 %v1941
    %1961 = vmatprep.subr.mxu0 0.0
    %1962 = vmatpush1.msra.mxu0 %v1942
    %1963 = vmatprep.subr.mxu0 0.0
    %1964 = vmatpush1.msra.mxu0 %v1943
    %1965 = vmatprep.subr.mxu0 0.0
    %1966 = vmatpush1.msra.mxu0 %v1944
    %1967 = vmatprep.subr.mxu0 0.0
    %1968 = vmatpush1.msra.mxu0 %v1945
    %1969 = vmatprep.subr.mxu0 0.0
    %1970 = vmatpush1.msra.mxu0 %v1946
    %1971 = vmatprep.subr.mxu0 0.0
    %1972 = vmatpush1.msra.mxu0 %v1947
    %1973 = vmatprep.subr.mxu0 0.0
    %1974 = vmatpush1.msra.mxu0 %v1948
    %1975 = vmatprep.subr.mxu0 0.0
    %1976 = vmatpush1.msra.mxu0 %v1949
    %1977 = vmatprep.subr.mxu0 0.0
    %1978 = vmatpush1.msra.mxu0 %v1950
    %1979 = vmatprep.subr.mxu0 0.0
    %1980 = vmatpush1.msra.mxu0 %v1951
    %1981 = vmatprep.subr.mxu0 0.0
    %1982 = vmatpush1.msra.mxu0 %v1952
    %1983 = vmatprep.subr.mxu0 0.0
    %1984 = vmatpush1.msra.mxu0 %v1953
    %1985 = vmatprep.subr.mxu0 0.0
    %1986 = vmatpush1.msra.mxu0 %v1954
    %1987 = vmatprep.subr.mxu0 0.0
    %1988 = vmatpush1.msra.mxu0 0.0
    %1989 = vmatprep.subr.mxu0 0.0
    %1990 = vmatpush1.msra.mxu0 0.0
    %1991 = vmatprep.subr.mxu0 0.0
    %1992 = vmatpush1.msra.mxu0 0.0
    %1993 = vmatprep.subr.mxu0 0.0
    %1994 = vmatpush1.msra.mxu0 0.0
    %1995 = vmatprep.subr.mxu0 0.0
    %1996 = vmatpush1.msra.mxu0 0.0
    %1997 = vmatprep.subr.mxu0 0.0
    %1998 = vmatpush1.msra.mxu0 0.0
    %1999 = vmatprep.subr.mxu0 0.0
    %2000 = vmatpush1.msra.mxu0 0.0
    %2001 = vmatprep.subr.mxu0 0.0
    %2002 = vmatpush1.msra.mxu0 0.0
    %2003 = vmatprep.subr.mxu0 0.0
    %2004 = vmatpush1.msra.mxu0 0.0
    %2005 = vmatprep.subr.mxu0 0.0
    %2006 = vmatpush1.msra.mxu0 0.0
    %2007 = vmatprep.subr.mxu0 0.0
    %2008 = vmatpush1.msra.mxu0 0.0
    %2009 = vmatprep.subr.mxu0 0.0
    %2010 = vmatpush1.msra.mxu0 0.0
    %2011 = vmatprep.subr.mxu0 0.0
    %2012 = vmatpush1.msra.mxu0 0.0
    %2013 = vmatprep.subr.mxu0 0.0
    %2014 = vmatpush1.msra.mxu0 0.0
    %2015 = vmatprep.subr.mxu0 0.0
    %2016 = vmatpush1.msra.mxu0 0.0
    %2017 = vmatprep.subr.mxu0 0.0
    %2018 = vmatpush1.msra.mxu0 0.0
    %2019 = vmatprep.mubr.f32.mxu0 0.0
    %2020 = vmatmul.mubr.f32.gmra.mrb[0].mxu0 %v1910
    %v2021 = vpop.f32.mrb[0].mxu0
    %v2022 = vadd.f32 0.0, %v2021
    %v2023 = vpop.f32.mrb[0].mxu0
    %2024 = vmatprep.mubr.f32.mxu0 0.0
    %2025 = vmatmul.mubr.f32.gmra.mrb[0].mxu0 %v1911
    %v2026 = vpop.f32.mrb[0].mxu0
    %v2027 = vadd.f32 0.0, %v2026
    %v2028 = vpop.f32.mrb[0].mxu0
    %2029 = vdwg.mxu0
    %v2030 = vadd.f32 %v2022, %v2027
    %v2031 = vrot.slane %v2030, 4
    %v2032 = vadd.f32 %v2030, %v2031
    %v2033 = vrot.slane %v2032, 2
    %v2034 = vadd.f32 %v2032, %v2033
    %v2035 = vrot.slane %v2034, 1
    %v2036 = vadd.f32 %v2034, %v2035
    %v2037 = vmul.f32 %v2036, %v173
    %v2038 = vsub.f32 %v2022, %v2037
    %v2039 = vsub.f32 %v2027, %v2037
    %v2040 = vmul.f32 %v2038, %v2038
    %v2041 = vmul.f32 %v2039, %v2039
    %v2042 = vadd.f32 %v2040, %v2041
    %v2043 = vrot.slane %v2042, 4
    %v2044 = vadd.f32 %v2042, %v2043
    %v2045 = vrot.slane %v2044, 2
    %v2046 = vadd.f32 %v2044, %v2045
    %v2047 = vrot.slane %v2046, 1
    %v2048 = vadd.f32 %v2046, %v2047
    %v2049 = vmul.f32 %v2048, %v173
    %v2050 = vadd.f32 %v2049, 1e-05
    %v2051 = vrsqrt.pop %v2050
    %v2052 = vmul.f32 %v2038, %v2051
    %v2053 = vmul.f32 %v2039, %v2051
    %s2054 = scalar_lea.vmem %s4, 16
    %v2055 = vld [vmem:[%s2054] sm:$0xff]
    %v2056 = vld [vmem:[%s2054 + $0x8] sm:$0x3]
    %v2057 = vlaneseq
    %v2058 = vshrl.u32 %v2057, 7
    %v2059 = vsub.s32 1, %v2058
    %v2060 = vrot.slane %v2055, %v2059
    %v2061 = vmul.f32 %v2060, %v2052
    %v2062 = vmul.f32 %v2060, %v2053
    %v2063 = vlaneseq
    %v2064 = vshrl.u32 %v2063, 7
    %v2065 = vsub.s32 2, %v2064
    %v2066 = vrot.slane %v2055, %v2065
    %v2067 = vadd.f32 %v2061, %v2066
    %v2068 = vadd.f32 %v2062, %v2066
    %v2069 = vxor.u32 %v2067, 2147483648
    %v2070 = vxor.u32 %v2068, 2147483648
    %v2071 = vmul.f32 %v2069, 1.442695
    %v2072 = vpow.pop %v2071
    %v2073 = vmul.f32 %v2070, 1.442695
    %v2074 = vpow.pop %v2073
    %v2075 = vadd.f32 %v2072, 1.0
    %v2076 = vadd.f32 %v2074, 1.0
    %v2077 = vrcp.pop %v2075
    %v2078 = vmul.f32 1.0, %v2077
    %v2079 = vrcp.pop %v2076
    %v2080 = vmul.f32 1.0, %v2079
    %v2081 = vlaneseq
    %v2082 = vshrl.u32 %v2081, 7
    %v2083 = vsub.s32 0, %v2082
    %v2084 = vrot.slane %v2055, %v2083
    %v2085 = vmul.f32 %v2084, %v2078
    %v2086 = vmul.f32 %v2084, %v2080
    %v2087 = vlaneseq
    %v2088 = vshrl.u32 %v2087, 7
    %v2089 = vsub.s32 3, %v2088
    %v2090 = vrot.slane %v2055, %v2089
    %v2091 = vmul.f32 %v2090, %v2052
    %v2092 = vmul.f32 %v2090, %v2053
    %v2093 = vadd.f32 %v2085, %v2091
    %v2094 = vadd.f32 %v2086, %v2092
    %v2095 = vlaneseq
    %v2096 = vshrl.u32 %v2095, 7
    %v2097 = vsub.s32 4, %v2096
    %v2098 = vrot.slane %v2055, %v2097
    %v2099 = vadd.f32 %v2093, %v2098
    %v2100 = vadd.f32 %v2094, %v2098
    %v2101 = vlaneseq
    %v2102 = vshrl.u32 %v2101, 7
    %v2103 = vsub.s32 6, %v2102
    %v2104 = vrot.slane %v2055, %v2103
    %v2105 = vmul.f32 %v2104, %v2052
    %v2106 = vmul.f32 %v2104, %v2053
    %v2107 = vlaneseq
    %v2108 = vshrl.u32 %v2107, 7
    %v2109 = vsub.s32 7, %v2108
    %v2110 = vrot.slane %v2055, %v2109
    %v2111 = vadd.f32 %v2105, %v2110
    %v2112 = vadd.f32 %v2106, %v2110
    %v2113 = vxor.u32 %v2111, 2147483648
    %v2114 = vxor.u32 %v2112, 2147483648
    %v2115 = vmul.f32 %v2113, 1.442695
    %v2116 = vpow.pop %v2115
    %v2117 = vmul.f32 %v2114, 1.442695
    %v2118 = vpow.pop %v2117
    %v2119 = vadd.f32 %v2116, 1.0
    %v2120 = vadd.f32 %v2118, 1.0
    %v2121 = vrcp.pop %v2119
    %v2122 = vmul.f32 1.0, %v2121
    %v2123 = vrcp.pop %v2120
    %v2124 = vmul.f32 1.0, %v2123
    %v2125 = vlaneseq
    %v2126 = vshrl.u32 %v2125, 7
    %v2127 = vsub.s32 5, %v2126
    %v2128 = vrot.slane %v2055, %v2127
    %v2129 = vmul.f32 %v2128, %v2122
    %v2130 = vmul.f32 %v2128, %v2124
    %v2131 = vlaneseq
    %v2132 = vshrl.u32 %v2131, 7
    %v2133 = vsub.s32 0, %v2132
    %v2134 = vrot.slane %v2056, %v2133
    %v2135 = vmul.f32 %v2134, %v2052
    %v2136 = vmul.f32 %v2134, %v2053
    %v2137 = vadd.f32 %v2129, %v2135
    %v2138 = vadd.f32 %v2130, %v2136
    %v2139 = vlaneseq
    %v2140 = vshrl.u32 %v2139, 7
    %v2141 = vsub.s32 1, %v2140
    %v2142 = vrot.slane %v2056, %v2141
    %v2143 = vadd.f32 %v2137, %v2142
    %v2144 = vadd.f32 %v2138, %v2142
    %v2145 = vsub.f32 %v375, %v2099
    %v2146 = vsub.f32 %v376, %v2100
    %v2147 = vmul.f32 %v2145, %v2143
    %v2148 = vmul.f32 %v2146, %v2144
    %v2149 = vadd.f32 %v2147, %v2099
    %v2150 = vadd.f32 %v2148, %v2100
    %v2151 = vsub.f32 %v2149, %v335
    %v2152 = vsub.f32 %v2150, %v335
    %v2153 = vadd.f32 %v348, 1e-06
    %v2154 = vrsqrt.pop %v2153
    %v2155 = vmul.f32 %v2151, %v2154
    %v2156 = vmul.f32 %v2152, %v2154
    %v2157 = vsub.f32 %v2155, %v351
    %v2158 = vsub.f32 %v2156, %v352
    %v2159 = vmul.f32 %v2157, %v2157
    %v2160 = vmul.f32 %v2158, %v2158
    %2161 = vadd.xlane.f32.xlu0 %v2159
    %v2162 = vpop.xlane.xlu0 %2161
    %2163 = vadd.xlane.f32.xlu0 %v2160
    %v2164 = vpop.xlane.xlu0 %2163
    %v2165 = vrsqrt.pop %v2162
    %v2166 = vmul.f32 %v2162, %v2165
    %vm2167 = vcmp.eq.f32.partialorder %v2162, inf
    %v2168 = vsel %vm2167, %v2162, %v2166
    %vm2169 = vcmp.eq.f32.partialorder %v2162, 0.0
    %v2170 = vand.u32 %v2162, 2147483648
    %v2171 = vsel %vm2169, %v2170, %v2168
    %v2172 = vrsqrt.pop %v2164
    %v2173 = vmul.f32 %v2164, %v2172
    %vm2174 = vcmp.eq.f32.partialorder %v2164, inf
    %v2175 = vsel %vm2174, %v2164, %v2173
    %vm2176 = vcmp.eq.f32.partialorder %v2164, 0.0
    %v2177 = vand.u32 %v2164, 2147483648
    %v2178 = vsel %vm2176, %v2177, %v2175
    %v2179 = vmul.f32 %v2171, 0.1
    %v2180 = vmul.f32 %v2178, 0.1
    %v2181 = vadd.f32 %v1936, %v2179
    %v2182 = vadd.f32 %v1937, %v2180
    %v2183 = vld [vmem:[#allocation5] sm:$0xff]
    %v2184 = vld [vmem:[#allocation5 + $0x8] sm:$0xff]
    %v2185 = vld [vmem:[#allocation5 + $0x10] sm:$0xff]
    %v2186 = vld [vmem:[#allocation5 + $0x18] sm:$0xff]
    %v2187 = vld [vmem:[#allocation5 + $0x20] sm:$0xff]
    %v2188 = vld [vmem:[#allocation5 + $0x28] sm:$0xff]
    %v2189 = vld [vmem:[#allocation5 + $0x30] sm:$0xff]
    %v2190 = vld [vmem:[#allocation5 + $0x38] sm:$0xff]
    %v2191 = vld [vmem:[#allocation5 + $0x40] sm:$0xff]
    %v2192 = vld [vmem:[#allocation5 + $0x48] sm:$0xff]
    %v2193 = vld [vmem:[#allocation5 + $0x50] sm:$0xff]
    %v2194 = vld [vmem:[#allocation5 + $0x58] sm:$0xff]
    %v2195 = vld [vmem:[#allocation5 + $0x60] sm:$0xff]
    %v2196 = vld [vmem:[#allocation5 + $0x68] sm:$0xff]
    %v2197 = vld [vmem:[#allocation5 + $0x70] sm:$0xff]
    %v2198 = vld [vmem:[#allocation5 + $0x78] sm:$0xff]
    %2199 = vmatprep.subr.mxu0 0.0
    %2200 = vmatpush1.msra.mxu0 %v2183
    %2201 = vmatprep.subr.mxu0 0.0
    %2202 = vmatpush1.msra.mxu0 %v2184
    %2203 = vmatprep.subr.mxu0 0.0
    %2204 = vmatpush1.msra.mxu0 %v2185
    %2205 = vmatprep.subr.mxu0 0.0
    %2206 = vmatpush1.msra.mxu0 %v2186
    %2207 = vmatprep.subr.mxu0 0.0
    %2208 = vmatpush1.msra.mxu0 %v2187
    %2209 = vmatprep.subr.mxu0 0.0
    %2210 = vmatpush1.msra.mxu0 %v2188
    %2211 = vmatprep.subr.mxu0 0.0
    %2212 = vmatpush1.msra.mxu0 %v2189
    %2213 = vmatprep.subr.mxu0 0.0
    %2214 = vmatpush1.msra.mxu0 %v2190
    %2215 = vmatprep.subr.mxu0 0.0
    %2216 = vmatpush1.msra.mxu0 %v2191
    %2217 = vmatprep.subr.mxu0 0.0
    %2218 = vmatpush1.msra.mxu0 %v2192
    %2219 = vmatprep.subr.mxu0 0.0
    %2220 = vmatpush1.msra.mxu0 %v2193
    %2221 = vmatprep.subr.mxu0 0.0
    %2222 = vmatpush1.msra.mxu0 %v2194
    %2223 = vmatprep.subr.mxu0 0.0
    %2224 = vmatpush1.msra.mxu0 %v2195
    %2225 = vmatprep.subr.mxu0 0.0
    %2226 = vmatpush1.msra.mxu0 %v2196
    %2227 = vmatprep.subr.mxu0 0.0
    %2228 = vmatpush1.msra.mxu0 %v2197
    %2229 = vmatprep.subr.mxu0 0.0
    %2230 = vmatpush1.msra.mxu0 %v2198
    %2231 = vmatprep.subr.mxu0 0.0
    %2232 = vmatpush1.msra.mxu0 0.0
    %2233 = vmatprep.subr.mxu0 0.0
    %2234 = vmatpush1.msra.mxu0 0.0
    %2235 = vmatprep.subr.mxu0 0.0
    %2236 = vmatpush1.msra.mxu0 0.0
    %2237 = vmatprep.subr.mxu0 0.0
    %2238 = vmatpush1.msra.mxu0 0.0
    %2239 = vmatprep.subr.mxu0 0.0
    %2240 = vmatpush1.msra.mxu0 0.0
    %2241 = vmatprep.subr.mxu0 0.0
    %2242 = vmatpush1.msra.mxu0 0.0
    %2243 = vmatprep.subr.mxu0 0.0
    %2244 = vmatpush1.msra.mxu0 0.0
    %2245 = vmatprep.subr.mxu0 0.0
    %2246 = vmatpush1.msra.mxu0 0.0
    %2247 = vmatprep.subr.mxu0 0.0
    %2248 = vmatpush1.msra.mxu0 0.0
    %2249 = vmatprep.subr.mxu0 0.0
    %2250 = vmatpush1.msra.mxu0 0.0
    %2251 = vmatprep.subr.mxu0 0.0
    %2252 = vmatpush1.msra.mxu0 0.0
    %2253 = vmatprep.subr.mxu0 0.0
    %2254 = vmatpush1.msra.mxu0 0.0
    %2255 = vmatprep.subr.mxu0 0.0
    %2256 = vmatpush1.msra.mxu0 0.0
    %2257 = vmatprep.subr.mxu0 0.0
    %2258 = vmatpush1.msra.mxu0 0.0
    %2259 = vmatprep.subr.mxu0 0.0
    %2260 = vmatpush1.msra.mxu0 0.0
    %2261 = vmatprep.subr.mxu0 0.0
    %2262 = vmatpush1.msra.mxu0 0.0
    %2263 = vmatprep.mubr.f32.mxu0 0.0
    %2264 = vmatmul.mubr.f32.gmra.mrb[0].mxu0 %v2155
    %v2265 = vpop.f32.mrb[0].mxu0
    %v2266 = vadd.f32 0.0, %v2265
    %v2267 = vpop.f32.mrb[0].mxu0
    %2268 = vmatprep.mubr.f32.mxu0 0.0
    %2269 = vmatmul.mubr.f32.gmra.mrb[0].mxu0 %v2156
    %v2270 = vpop.f32.mrb[0].mxu0
    %v2271 = vadd.f32 0.0, %v2270
    %v2272 = vpop.f32.mrb[0].mxu0
    %2273 = vdwg.mxu0
    %v2274 = vadd.f32 %v2266, %v2271
    %v2275 = vrot.slane %v2274, 4
    %v2276 = vadd.f32 %v2274, %v2275
    %v2277 = vrot.slane %v2276, 2
    %v2278 = vadd.f32 %v2276, %v2277
    %v2279 = vrot.slane %v2278, 1
    %v2280 = vadd.f32 %v2278, %v2279
    %v2281 = vmul.f32 %v2280, %v173
    %v2282 = vsub.f32 %v2266, %v2281
    %v2283 = vsub.f32 %v2271, %v2281
    %v2284 = vmul.f32 %v2282, %v2282
    %v2285 = vmul.f32 %v2283, %v2283
    %v2286 = vadd.f32 %v2284, %v2285
    %v2287 = vrot.slane %v2286, 4
    %v2288 = vadd.f32 %v2286, %v2287
    %v2289 = vrot.slane %v2288, 2
    %v2290 = vadd.f32 %v2288, %v2289
    %v2291 = vrot.slane %v2290, 1
    %v2292 = vadd.f32 %v2290, %v2291
    %v2293 = vmul.f32 %v2292, %v173
    %v2294 = vadd.f32 %v2293, 1e-05
    %v2295 = vrsqrt.pop %v2294
    %v2296 = vmul.f32 %v2282, %v2295
    %v2297 = vmul.f32 %v2283, %v2295
    %v2298 = vld [vmem:[%s4] sm:$0xff]
    %v2299 = vld [vmem:[%s4 + $0x8] sm:$0x3]
    %v2300 = vlaneseq
    %v2301 = vshrl.u32 %v2300, 7
    %v2302 = vsub.s32 1, %v2301
    %v2303 = vrot.slane %v2298, %v2302
    %v2304 = vmul.f32 %v2303, %v2296
    %v2305 = vmul.f32 %v2303, %v2297
    %v2306 = vlaneseq
    %v2307 = vshrl.u32 %v2306, 7
    %v2308 = vsub.s32 2, %v2307
    %v2309 = vrot.slane %v2298, %v2308
    %v2310 = vadd.f32 %v2304, %v2309
    %v2311 = vadd.f32 %v2305, %v2309
    %v2312 = vxor.u32 %v2310, 2147483648
    %v2313 = vxor.u32 %v2311, 2147483648
    %v2314 = vmul.f32 %v2312, 1.442695
    %v2315 = vpow.pop %v2314
    %v2316 = vmul.f32 %v2313, 1.442695
    %v2317 = vpow.pop %v2316
    %v2318 = vadd.f32 %v2315, 1.0
    %v2319 = vadd.f32 %v2317, 1.0
    %v2320 = vrcp.pop %v2318
    %v2321 = vmul.f32 1.0, %v2320
    %v2322 = vrcp.pop %v2319
    %v2323 = vmul.f32 1.0, %v2322
    %v2324 = vlaneseq
    %v2325 = vshrl.u32 %v2324, 7
    %v2326 = vsub.s32 0, %v2325
    %v2327 = vrot.slane %v2298, %v2326
    %v2328 = vmul.f32 %v2327, %v2321
    %v2329 = vmul.f32 %v2327, %v2323
    %v2330 = vlaneseq
    %v2331 = vshrl.u32 %v2330, 7
    %v2332 = vsub.s32 3, %v2331
    %v2333 = vrot.slane %v2298, %v2332
    %v2334 = vmul.f32 %v2333, %v2296
    %v2335 = vmul.f32 %v2333, %v2297
    %v2336 = vadd.f32 %v2328, %v2334
    %v2337 = vadd.f32 %v2329, %v2335
    %v2338 = vlaneseq
    %v2339 = vshrl.u32 %v2338, 7
    %v2340 = vsub.s32 4, %v2339
    %v2341 = vrot.slane %v2298, %v2340
    %v2342 = vadd.f32 %v2336, %v2341
    %v2343 = vadd.f32 %v2337, %v2341
    %v2344 = vlaneseq
    %v2345 = vshrl.u32 %v2344, 7
    %v2346 = vsub.s32 6, %v2345
    %v2347 = vrot.slane %v2298, %v2346
    %v2348 = vmul.f32 %v2347, %v2296
    %v2349 = vmul.f32 %v2347, %v2297
    %v2350 = vlaneseq
    %v2351 = vshrl.u32 %v2350, 7
    %v2352 = vsub.s32 7, %v2351
    %v2353 = vrot.slane %v2298, %v2352
    %v2354 = vadd.f32 %v2348, %v2353
    %v2355 = vadd.f32 %v2349, %v2353
    %v2356 = vxor.u32 %v2354, 2147483648
    %v2357 = vxor.u32 %v2355, 2147483648
    %v2358 = vmul.f32 %v2356, 1.442695
    %v2359 = vpow.pop %v2358
    %v2360 = vmul.f32 %v2357, 1.442695
    %v2361 = vpow.pop %v2360
    %v2362 = vadd.f32 %v2359, 1.0
    %v2363 = vadd.f32 %v2361, 1.0
    %v2364 = vrcp.pop %v2362
    %v2365 = vmul.f32 1.0, %v2364
    %v2366 = vrcp.pop %v2363
    %v2367 = vmul.f32 1.0, %v2366
    %v2368 = vlaneseq
    %v2369 = vshrl.u32 %v2368, 7
    %v2370 = vsub.s32 5, %v2369
    %v2371 = vrot.slane %v2298, %v2370
    %v2372 = vmul.f32 %v2371, %v2365
    %v2373 = vmul.f32 %v2371, %v2367
    %v2374 = vlaneseq
    %v2375 = vshrl.u32 %v2374, 7
    %v2376 = vsub.s32 0, %v2375
    %v2377 = vrot.slane %v2299, %v2376
    %v2378 = vmul.f32 %v2377, %v2296
    %v2379 = vmul.f32 %v2377, %v2297
    %v2380 = vadd.f32 %v2372, %v2378
    %v2381 = vadd.f32 %v2373, %v2379
    %v2382 = vlaneseq
    %v2383 = vshrl.u32 %v2382, 7
    %v2384 = vsub.s32 1, %v2383
    %v2385 = vrot.slane %v2299, %v2384
    %v2386 = vadd.f32 %v2380, %v2385
    %v2387 = vadd.f32 %v2381, %v2385
    %v2388 = vsub.f32 %v214, %v2342
    %v2389 = vsub.f32 %v215, %v2343
    %v2390 = vmul.f32 %v2388, %v2386
    %v2391 = vmul.f32 %v2389, %v2387
    %v2392 = vadd.f32 %v2390, %v2342
    %v2393 = vadd.f32 %v2391, %v2343
    %v2394 = vsub.f32 %v2392, %v174
    %v2395 = vsub.f32 %v2393, %v174
    %v2396 = vadd.f32 %v187, 1e-06
    %v2397 = vrsqrt.pop %v2396
    %v2398 = vmul.f32 %v2394, %v2397
    %v2399 = vmul.f32 %v2395, %v2397
    %v2400 = vsub.f32 %v2398, %v190
    %v2401 = vsub.f32 %v2399, %v191
    %v2402 = vmul.f32 %v2400, %v2400
    %v2403 = vmul.f32 %v2401, %v2401
    %2404 = vadd.xlane.f32.xlu0 %v2402
    %v2405 = vpop.xlane.xlu0 %2404
    %2406 = vadd.xlane.f32.xlu0 %v2403
    %v2407 = vpop.xlane.xlu0 %2406
    %v2408 = vrsqrt.pop %v2405
    %v2409 = vmul.f32 %v2405, %v2408
    %vm2410 = vcmp.eq.f32.partialorder %v2405, inf
    %v2411 = vsel %vm2410, %v2405, %v2409
    %vm2412 = vcmp.eq.f32.partialorder %v2405, 0.0
    %v2413 = vand.u32 %v2405, 2147483648
    %v2414 = vsel %vm2412, %v2413, %v2411
    %v2415 = vrsqrt.pop %v2407
    %v2416 = vmul.f32 %v2407, %v2415
    %vm2417 = vcmp.eq.f32.partialorder %v2407, inf
    %v2418 = vsel %vm2417, %v2407, %v2416
    %vm2419 = vcmp.eq.f32.partialorder %v2407, 0.0
    %v2420 = vand.u32 %v2407, 2147483648
    %v2421 = vsel %vm2419, %v2420, %v2418
    %v2422 = vadd.f32 %v2181, %v2414
    %v2423 = vadd.f32 %v2182, %v2421
    %v2424 = vadd.f32 %v2422, %v2423
    %v2425 = vrot.slane %v2424, 4
    %v2426 = vadd.f32 %v2424, %v2425
    %v2427 = vrot.slane %v2426, 2
    %v2428 = vadd.f32 %v2426, %v2427
    %v2429 = vrot.slane %v2428, 1
    %v2430 = vadd.f32 %v2428, %v2429
    %2431 = vst [vmem:[#allocation7] sm:$0x1] %v2430
    // Predicated region
    $region30: #{dae_forward.1} parent=1 // pred_check
      _
    $region31: #{dae_forward.1} parent=1 // pred_check_branch
      %2433 = sbr.rel (0) target = $region33
    $region32: #{dae_forward.1} parent=1 // pred_region
      _
    $region33: #{dae_forward.1} parent=1 // pred_fallthru
      _
    // Predicated region
    $region34: #{dae_forward.1} parent=1 // pred_check
      _
    $region35: #{dae_forward.1} parent=1 // pred_check_branch
      %2435 = sbr.rel (0) target = $region37
    $region36: #{dae_forward.1} parent=1 // pred_region
      %s2437 = ssub.s32 16, 16
      %2438 = vsyncadd [#allocation4], %s2437
      %s2440 = sshll.u32 [#allocation7], 4
      %s2441 = int_to_ptr.vmem [resolvable:$true] %s2440
      %2443 = dma.vmem_to_hbm [thread:$0]  %s2441, 16, %s6, [#allocation4]
    $region37: #{dae_forward.1} parent=1 // pred_fallthru
      _
    // Predicated region
    $region38: #{dae_forward.1} parent=1 // pred_check
      _
    $region39: #{dae_forward.1} parent=1 // pred_check_branch
      %2445 = sbr.rel (0) target = $region41
    $region40: #{dae_forward.1} parent=1 // pred_region
      _
    $region41: #{dae_forward.1} parent=1 // pred_fallthru
      _
    // Predicated region
    $region42: #{dae_forward.1} parent=1 // pred_check
      _
    $region43: #{dae_forward.1} parent=1 // pred_check_branch
      %2447 = sbr.rel (0) target = $region45
    $region44: #{dae_forward.1} parent=1 // pred_region
      %2448 = dma.done [#allocation4], 16
    $region45: #{dae_forward.1} parent=1 // pred_fallthru
      _
    %2449 = vsyncpa [#allocation3], 1
    %2450 = vsyncpa [#allocation6], 1
    %2451 = vsyncpa [#allocation4], 1

</llo_original>
